<compile_context>
chip_gen: v7x
topology: tpu7x:2x2x1
jax: 0.10.0
libtpu: 0.0.40
codegen_flags: <defaults>
</compile_context>

<pallas_src>
import jax
import jax.numpy as jnp
from jax.experimental import pallas as pl
from jax.experimental.pallas import tpu as pltpu


IN_DIM = 28 * 28

# encoder / decoder layer sizes, in order
LAYER_DIMS = [
    (784, 128), (128, 64), (64, 12), (12, 3),      # encoder
    (3, 12), (12, 64), (64, 128), (128, 784),      # decoder
]
N_LAYERS = len(LAYER_DIMS)

# Layers whose matmuls dominate FLOPs / weight bytes -> bf16 MXU inputs with
# f32 accumulation.  The 12/3-wide middle layers are not worth touching.
BF16_LAYERS = (0, 1, 6, 7)


def _round_up(x, m):
    return ((x + m - 1) // m) * m


def _cdiv(a, b):
    return -(-a // b)


def _default_use_bf16():
    """All current TPU MXUs (v5e/v6e/v7x) are bf16-native; accumulate in f32."""
    try:
        return jax.devices()[0].platform == "tpu"
    except Exception:
        return False


def _choose_tiling(B, batch_tile):
    """Pick (tile, padded_B) so the batch grid has >=2 balanced steps (even
    step count -> both v7x TensorCores get equal work) with minimal padding."""
    n_steps = max(2, _cdiv(B, batch_tile))
    n_steps = _round_up(n_steps, 2)          # even -> megacore load-balanced
    tile = _round_up(_cdiv(B, n_steps), 8)   # sublane-aligned
    Bp = _round_up(B, tile)
    return tile, Bp


def autoencoder_kernel(x_ref, *refs):
    """refs = (w1, b1, w2, b2, ..., w8, b8, out_ref)."""
    param_refs = refs[:-1]
    o_ref = refs[-1]

    h = x_ref[...]                                  # (tile, 784) f32
    for layer in range(N_LAYERS):
        w = param_refs[2 * layer][...]              # (din, dout), f32 or bf16
        b = param_refs[2 * layer + 1][...]          # (1, dout) f32 -> broadcasts
        lhs = h.astype(w.dtype) if h.dtype != w.dtype else h
        h = jnp.dot(lhs, w, preferred_element_type=jnp.float32) + b
        if layer < N_LAYERS - 1:
            h = jnp.maximum(h, 0.0)                 # ReLU(inplace=True) semantics
        else:
            h = jnp.tanh(h)                         # final Tanh
    o_ref[...] = h.astype(o_ref.dtype)


def autoencoder_forward(x, params, *, batch_tile=512, use_bf16_matmul=None,
                        out_dtype=jnp.float32):
    """x: (B, 784) float32.  params: flat list [w1, b1, ..., w8, b8] (f32)."""
    B, D = x.shape
    assert D == IN_DIM

    if use_bf16_matmul is None:
        use_bf16_matmul = _default_use_bf16()

    params = list(params)
    if use_bf16_matmul:
        # Halve DMA bytes + use the bf16-native MXU path on the dominant layers.
        for layer in BF16_LAYERS:
            params[2 * layer] = params[2 * layer].astype(jnp.bfloat16)

    # >=2 balanced grid steps, minimal zero padding; padded rows sliced off.
    tile, Bp = _choose_tiling(B, batch_tile)
    if Bp != B:
        x = jnp.pad(x, ((0, Bp - B), (0, 0)))

    # x / out are tiled over the batch; every weight/bias lives fully in VMEM
    # (fetched once, resident for all grid steps).
    x_spec = pl.BlockSpec((tile, D), lambda i: (i, 0))
    out_spec = pl.BlockSpec((tile, D), lambda i: (i, 0))
    param_specs = [pl.BlockSpec(memory_space=pltpu.MemorySpace.VMEM)
                   for _ in params]

    out = pl.pallas_call(
        autoencoder_kernel,
        out_shape=jax.ShapeDtypeStruct((Bp, D), out_dtype),
        grid_spec=pltpu.PrefetchScalarGridSpec(
            num_scalar_prefetch=0,
            grid=(Bp // tile,),
            in_specs=[x_spec] + param_specs,
            out_specs=out_spec,
        ),
        compiler_params=pltpu.CompilerParams(
            dimension_semantics=("parallel",),      # batch axis -> megacore split
        ),
    )(x, *params)

    return out[:B] if Bp != B else out


def init_params(key):
    """Deterministic synthetic parameters with the module's shapes."""
    params = []
    for (din, dout) in LAYER_DIMS:
        key, kw, kb = jax.random.split(key, 3)
        scale = 1.0 / jnp.sqrt(jnp.float32(din))    # mimic nn.Linear's uniform scale
        w = jax.random.uniform(kw, (din, dout), jnp.float32, -scale, scale)
        b = jax.random.uniform(kb, (1, dout), jnp.float32, -scale, scale)
        params.append(w)
        params.append(b)
    return params


def reference_forward(x, params, use_bf16_matmul):
    """Pure-JAX reference; optionally mirrors the kernel's bf16 strategy."""
    h = x
    for layer in range(N_LAYERS):
        w = params[2 * layer]
        b = params[2 * layer + 1]
        if use_bf16_matmul and layer in BF16_LAYERS:
            lhs = h.astype(jnp.bfloat16)
            w = w.astype(jnp.bfloat16)
        else:
            lhs = h
        h = jnp.dot(lhs, w, preferred_element_type=jnp.float32) + b
        h = jnp.maximum(h, 0.0) if layer < N_LAYERS - 1 else jnp.tanh(h)
    return h


if __name__ == "__main__":
    key = jax.random.PRNGKey(0)
    key, kx = jax.random.split(key)

    # B=300 with batch_tile=512 -> tile=152, Bp=304, grid=2 (balanced steps,
    # only 4 padded rows); exercises padding + the 2-step parallel grid.
    B = 300
    x = jax.random.normal(kx, (B, IN_DIM), jnp.float32)
    params = init_params(key)

    use_bf16 = _default_use_bf16()
    out = autoencoder_forward(x, params, use_bf16_matmul=use_bf16)
    out = jax.block_until_ready(out)
    assert out.shape == (B, IN_DIM)

    # Check against a reference mirroring the kernel's dtype strategy...
    ref = reference_forward(x, params, use_bf16)
    tol = 5e-3 if use_bf16 else 1e-4
    assert jnp.allclose(out, ref, atol=tol, rtol=tol), "mismatch vs mirrored reference"
    # ...and against a pure-f32 reference (true bf16-vs-f32 drift, loose bound;
    # output is tanh-bounded in [-1, 1]).
    ref_f32 = reference_forward(x, params, False)
    assert jnp.allclose(out, ref_f32, atol=1e-1), "bf16 path drifted too far from f32"

    print("KERNEL_OK")
</pallas_src>

<mosaic_0001>
module attributes {stable_mosaic.version = 11 : i64} {
  func.func @autoencoder_kernel(%arg0: i32, %arg1: memref<152x784xf32, #tpu.memory_space<vmem>>, %arg2: memref<784x128xf32, #tpu.memory_space<vmem>>, %arg3: memref<1x128xf32, #tpu.memory_space<vmem>>, %arg4: memref<128x64xf32, #tpu.memory_space<vmem>>, %arg5: memref<1x64xf32, #tpu.memory_space<vmem>>, %arg6: memref<64x12xf32, #tpu.memory_space<vmem>>, %arg7: memref<1x12xf32, #tpu.memory_space<vmem>>, %arg8: memref<12x3xf32, #tpu.memory_space<vmem>>, %arg9: memref<1x3xf32, #tpu.memory_space<vmem>>, %arg10: memref<3x12xf32, #tpu.memory_space<vmem>>, %arg11: memref<1x12xf32, #tpu.memory_space<vmem>>, %arg12: memref<12x64xf32, #tpu.memory_space<vmem>>, %arg13: memref<1x64xf32, #tpu.memory_space<vmem>>, %arg14: memref<64x128xf32, #tpu.memory_space<vmem>>, %arg15: memref<1x128xf32, #tpu.memory_space<vmem>>, %arg16: memref<128x784xf32, #tpu.memory_space<vmem>>, %arg17: memref<1x784xf32, #tpu.memory_space<vmem>>, %arg18: memref<152x784xf32, #tpu.memory_space<vmem>>) attributes {dimension_semantics = [#tpu.dimension_semantics<parallel>], iteration_bounds = array<i64: 2>, scalar_prefetch = 0 : i64, scratch_operands = 0 : i64, tpu.core_type = #tpu.core_type<tc>, window_params = [{transform_indices = @transform_0, window_bounds = array<i64: 152, 784>}, {pipeline_mode = #tpu.pipeline_mode<synchronous>, transform_indices = @transform_1, window_bounds = array<i64: 784, 128>}, {pipeline_mode = #tpu.pipeline_mode<synchronous>, transform_indices = @transform_2, window_bounds = array<i64: 1, 128>}, {pipeline_mode = #tpu.pipeline_mode<synchronous>, transform_indices = @transform_3, window_bounds = array<i64: 128, 64>}, {pipeline_mode = #tpu.pipeline_mode<synchronous>, transform_indices = @transform_4, window_bounds = array<i64: 1, 64>}, {pipeline_mode = #tpu.pipeline_mode<synchronous>, transform_indices = @transform_5, window_bounds = array<i64: 64, 12>}, {pipeline_mode = #tpu.pipeline_mode<synchronous>, transform_indices = @transform_6, window_bounds = array<i64: 1, 12>}, {pipeline_mode = #tpu.pipeline_mode<synchronous>, transform_indices = @transform_7, window_bounds = array<i64: 12, 3>}, {pipeline_mode = #tpu.pipeline_mode<synchronous>, transform_indices = @transform_8, window_bounds = array<i64: 1, 3>}, {pipeline_mode = #tpu.pipeline_mode<synchronous>, transform_indices = @transform_9, window_bounds = array<i64: 3, 12>}, {pipeline_mode = #tpu.pipeline_mode<synchronous>, transform_indices = @transform_10, window_bounds = array<i64: 1, 12>}, {pipeline_mode = #tpu.pipeline_mode<synchronous>, transform_indices = @transform_11, window_bounds = array<i64: 12, 64>}, {pipeline_mode = #tpu.pipeline_mode<synchronous>, transform_indices = @transform_12, window_bounds = array<i64: 1, 64>}, {pipeline_mode = #tpu.pipeline_mode<synchronous>, transform_indices = @transform_13, window_bounds = array<i64: 64, 128>}, {pipeline_mode = #tpu.pipeline_mode<synchronous>, transform_indices = @transform_14, window_bounds = array<i64: 1, 128>}, {pipeline_mode = #tpu.pipeline_mode<synchronous>, transform_indices = @transform_15, window_bounds = array<i64: 128, 784>}, {pipeline_mode = #tpu.pipeline_mode<synchronous>, transform_indices = @transform_16, window_bounds = array<i64: 1, 784>}, {transform_indices = @transform_17, window_bounds = array<i64: 152, 784>}]} {
    %c0 = arith.constant 0 : index
    %c0_0 = arith.constant 0 : index
    %0 = vector.load %arg1[%c0, %c0_0] : memref<152x784xf32, #tpu.memory_space<vmem>>, vector<152x784xf32>
    %c0_1 = arith.constant 0 : index
    %c0_2 = arith.constant 0 : index
    %1 = vector.load %arg2[%c0_1, %c0_2] : memref<784x128xf32, #tpu.memory_space<vmem>>, vector<784x128xf32>
    %c0_3 = arith.constant 0 : index
    %c0_4 = arith.constant 0 : index
    %2 = vector.load %arg3[%c0_3, %c0_4] : memref<1x128xf32, #tpu.memory_space<vmem>>, vector<1x128xf32>
    %cst = arith.constant dense<0.000000e+00> : vector<152x128xf32>
    %3 = tpu.matmul %0, %1, %cst {dimension_numbers = #tpu.dot_dimension_numbers<[1], [0], [0], [1], [0, 0, 1, 1], [], []>} : vector<152x784xf32>, vector<784x128xf32>, vector<152x128xf32> -> vector<152x128xf32>
    %4 = vector.broadcast %2 : vector<1x128xf32> to vector<152x128xf32>
    %5 = arith.addf %3, %4 : vector<152x128xf32>
    %cst_5 = arith.constant 0.000000e+00 : f32
    %6 = vector.broadcast %cst_5 : f32 to vector<152x128xf32>
    %7 = arith.maximumf %5, %6 : vector<152x128xf32>
    %c0_6 = arith.constant 0 : index
    %c0_7 = arith.constant 0 : index
    %8 = vector.load %arg4[%c0_6, %c0_7] : memref<128x64xf32, #tpu.memory_space<vmem>>, vector<128x64xf32>
    %c0_8 = arith.constant 0 : index
    %c0_9 = arith.constant 0 : index
    %9 = vector.load %arg5[%c0_8, %c0_9] : memref<1x64xf32, #tpu.memory_space<vmem>>, vector<1x64xf32>
    %cst_10 = arith.constant dense<0.000000e+00> : vector<152x64xf32>
    %10 = tpu.matmul %7, %8, %cst_10 {dimension_numbers = #tpu.dot_dimension_numbers<[1], [0], [0], [1], [0, 0, 1, 1], [], []>} : vector<152x128xf32>, vector<128x64xf32>, vector<152x64xf32> -> vector<152x64xf32>
    %11 = vector.broadcast %9 : vector<1x64xf32> to vector<152x64xf32>
    %12 = arith.addf %10, %11 : vector<152x64xf32>
    %cst_11 = arith.constant 0.000000e+00 : f32
    %13 = vector.broadcast %cst_11 : f32 to vector<152x64xf32>
    %14 = arith.maximumf %12, %13 : vector<152x64xf32>
    %c0_12 = arith.constant 0 : index
    %c0_13 = arith.constant 0 : index
    %15 = vector.load %arg6[%c0_12, %c0_13] : memref<64x12xf32, #tpu.memory_space<vmem>>, vector<64x12xf32>
    %c0_14 = arith.constant 0 : index
    %c0_15 = arith.constant 0 : index
    %16 = vector.load %arg7[%c0_14, %c0_15] : memref<1x12xf32, #tpu.memory_space<vmem>>, vector<1x12xf32>
    %cst_16 = arith.constant dense<0.000000e+00> : vector<152x12xf32>
    %17 = tpu.matmul %14, %15, %cst_16 {dimension_numbers = #tpu.dot_dimension_numbers<[1], [0], [0], [1], [0, 0, 1, 1], [], []>} : vector<152x64xf32>, vector<64x12xf32>, vector<152x12xf32> -> vector<152x12xf32>
    %18 = vector.broadcast %16 : vector<1x12xf32> to vector<152x12xf32>
    %19 = arith.addf %17, %18 : vector<152x12xf32>
    %cst_17 = arith.constant 0.000000e+00 : f32
    %20 = vector.broadcast %cst_17 : f32 to vector<152x12xf32>
    %21 = arith.maximumf %19, %20 : vector<152x12xf32>
    %c0_18 = arith.constant 0 : index
    %c0_19 = arith.constant 0 : index
    %22 = vector.load %arg8[%c0_18, %c0_19] : memref<12x3xf32, #tpu.memory_space<vmem>>, vector<12x3xf32>
    %c0_20 = arith.constant 0 : index
    %c0_21 = arith.constant 0 : index
    %23 = vector.load %arg9[%c0_20, %c0_21] : memref<1x3xf32, #tpu.memory_space<vmem>>, vector<1x3xf32>
    %cst_22 = arith.constant dense<0.000000e+00> : vector<152x3xf32>
    %24 = tpu.matmul %21, %22, %cst_22 {dimension_numbers = #tpu.dot_dimension_numbers<[1], [0], [0], [1], [0, 0, 1, 1], [], []>} : vector<152x12xf32>, vector<12x3xf32>, vector<152x3xf32> -> vector<152x3xf32>
    %25 = vector.broadcast %23 : vector<1x3xf32> to vector<152x3xf32>
    %26 = arith.addf %24, %25 : vector<152x3xf32>
    %cst_23 = arith.constant 0.000000e+00 : f32
    %27 = vector.broadcast %cst_23 : f32 to vector<152x3xf32>
    %28 = arith.maximumf %26, %27 : vector<152x3xf32>
    %c0_24 = arith.constant 0 : index
    %c0_25 = arith.constant 0 : index
    %29 = vector.load %arg10[%c0_24, %c0_25] : memref<3x12xf32, #tpu.memory_space<vmem>>, vector<3x12xf32>
    %c0_26 = arith.constant 0 : index
    %c0_27 = arith.constant 0 : index
    %30 = vector.load %arg11[%c0_26, %c0_27] : memref<1x12xf32, #tpu.memory_space<vmem>>, vector<1x12xf32>
    %cst_28 = arith.constant dense<0.000000e+00> : vector<152x12xf32>
    %31 = tpu.matmul %28, %29, %cst_28 {dimension_numbers = #tpu.dot_dimension_numbers<[1], [0], [0], [1], [0, 0, 1, 1], [], []>} : vector<152x3xf32>, vector<3x12xf32>, vector<152x12xf32> -> vector<152x12xf32>
    %32 = vector.broadcast %30 : vector<1x12xf32> to vector<152x12xf32>
    %33 = arith.addf %31, %32 : vector<152x12xf32>
    %cst_29 = arith.constant 0.000000e+00 : f32
    %34 = vector.broadcast %cst_29 : f32 to vector<152x12xf32>
    %35 = arith.maximumf %33, %34 : vector<152x12xf32>
    %c0_30 = arith.constant 0 : index
    %c0_31 = arith.constant 0 : index
    %36 = vector.load %arg12[%c0_30, %c0_31] : memref<12x64xf32, #tpu.memory_space<vmem>>, vector<12x64xf32>
    %c0_32 = arith.constant 0 : index
    %c0_33 = arith.constant 0 : index
    %37 = vector.load %arg13[%c0_32, %c0_33] : memref<1x64xf32, #tpu.memory_space<vmem>>, vector<1x64xf32>
    %cst_34 = arith.constant dense<0.000000e+00> : vector<152x64xf32>
    %38 = tpu.matmul %35, %36, %cst_34 {dimension_numbers = #tpu.dot_dimension_numbers<[1], [0], [0], [1], [0, 0, 1, 1], [], []>} : vector<152x12xf32>, vector<12x64xf32>, vector<152x64xf32> -> vector<152x64xf32>
    %39 = vector.broadcast %37 : vector<1x64xf32> to vector<152x64xf32>
    %40 = arith.addf %38, %39 : vector<152x64xf32>
    %cst_35 = arith.constant 0.000000e+00 : f32
    %41 = vector.broadcast %cst_35 : f32 to vector<152x64xf32>
    %42 = arith.maximumf %40, %41 : vector<152x64xf32>
    %c0_36 = arith.constant 0 : index
    %c0_37 = arith.constant 0 : index
    %43 = vector.load %arg14[%c0_36, %c0_37] : memref<64x128xf32, #tpu.memory_space<vmem>>, vector<64x128xf32>
    %c0_38 = arith.constant 0 : index
    %c0_39 = arith.constant 0 : index
    %44 = vector.load %arg15[%c0_38, %c0_39] : memref<1x128xf32, #tpu.memory_space<vmem>>, vector<1x128xf32>
    %cst_40 = arith.constant dense<0.000000e+00> : vector<152x128xf32>
    %45 = tpu.matmul %42, %43, %cst_40 {dimension_numbers = #tpu.dot_dimension_numbers<[1], [0], [0], [1], [0, 0, 1, 1], [], []>} : vector<152x64xf32>, vector<64x128xf32>, vector<152x128xf32> -> vector<152x128xf32>
    %46 = vector.broadcast %44 : vector<1x128xf32> to vector<152x128xf32>
    %47 = arith.addf %45, %46 : vector<152x128xf32>
    %cst_41 = arith.constant 0.000000e+00 : f32
    %48 = vector.broadcast %cst_41 : f32 to vector<152x128xf32>
    %49 = arith.maximumf %47, %48 : vector<152x128xf32>
    %c0_42 = arith.constant 0 : index
    %c0_43 = arith.constant 0 : index
    %50 = vector.load %arg16[%c0_42, %c0_43] : memref<128x784xf32, #tpu.memory_space<vmem>>, vector<128x784xf32>
    %c0_44 = arith.constant 0 : index
    %c0_45 = arith.constant 0 : index
    %51 = vector.load %arg17[%c0_44, %c0_45] : memref<1x784xf32, #tpu.memory_space<vmem>>, vector<1x784xf32>
    %cst_46 = arith.constant dense<0.000000e+00> : vector<152x784xf32>
    %52 = tpu.matmul %49, %50, %cst_46 {dimension_numbers = #tpu.dot_dimension_numbers<[1], [0], [0], [1], [0, 0, 1, 1], [], []>} : vector<152x128xf32>, vector<128x784xf32>, vector<152x784xf32> -> vector<152x784xf32>
    %53 = vector.broadcast %51 : vector<1x784xf32> to vector<152x784xf32>
    %54 = arith.addf %52, %53 : vector<152x784xf32>
    %55 = math.tanh %54 : vector<152x784xf32>
    %c0_47 = arith.constant 0 : index
    %c0_48 = arith.constant 0 : index
    %56 = vector.load %arg18[%c0_47, %c0_48] : memref<152x784xf32, #tpu.memory_space<vmem>>, vector<152x784xf32>
    tpu.vector_store %arg18[%c0_47, %c0_48], %55 {strides = array<i32>} : memref<152x784xf32, #tpu.memory_space<vmem>>, vector<152x784xf32>,
    return
  }
  func.func @transform_0(%arg0: i32) -> (i32, i32) {
    %c0_i32 = arith.constant 0 : i32
    %c0_i32_0 = arith.constant 0 : i32
    return %arg0, %c0_i32 : i32, i32
  }
  func.func @transform_1(%arg0: i32) -> (i32, i32) {
    %c0_i32 = arith.constant 0 : i32
    %c0_i32_0 = arith.constant 0 : i32
    %c0_i32_1 = arith.constant 0 : i32
    return %c0_i32, %c0_i32_0 : i32, i32
  }
  func.func @transform_2(%arg0: i32) -> (i32, i32) {
    %c0_i32 = arith.constant 0 : i32
    %c0_i32_0 = arith.constant 0 : i32
    %c0_i32_1 = arith.constant 0 : i32
    return %c0_i32, %c0_i32_0 : i32, i32
  }
  func.func @transform_3(%arg0: i32) -> (i32, i32) {
    %c0_i32 = arith.constant 0 : i32
    %c0_i32_0 = arith.constant 0 : i32
    %c0_i32_1 = arith.constant 0 : i32
    return %c0_i32, %c0_i32_0 : i32, i32
  }
  func.func @transform_4(%arg0: i32) -> (i32, i32) {
    %c0_i32 = arith.constant 0 : i32
    %c0_i32_0 = arith.constant 0 : i32
    %c0_i32_1 = arith.constant 0 : i32
    return %c0_i32, %c0_i32_0 : i32, i32
  }
  func.func @transform_5(%arg0: i32) -> (i32, i32) {
    %c0_i32 = arith.constant 0 : i32
    %c0_i32_0 = arith.constant 0 : i32
    %c0_i32_1 = arith.constant 0 : i32
    return %c0_i32, %c0_i32_0 : i32, i32
  }
  func.func @transform_6(%arg0: i32) -> (i32, i32) {
    %c0_i32 = arith.constant 0 : i32
    %c0_i32_0 = arith.constant 0 : i32
    %c0_i32_1 = arith.constant 0 : i32
    return %c0_i32, %c0_i32_0 : i32, i32
  }
  func.func @transform_7(%arg0: i32) -> (i32, i32) {
    %c0_i32 = arith.constant 0 : i32
    %c0_i32_0 = arith.constant 0 : i32
    %c0_i32_1 = arith.constant 0 : i32
    return %c0_i32, %c0_i32_0 : i32, i32
  }
  func.func @transform_8(%arg0: i32) -> (i32, i32) {
    %c0_i32 = arith.constant 0 : i32
    %c0_i32_0 = arith.constant 0 : i32
    %c0_i32_1 = arith.constant 0 : i32
    return %c0_i32, %c0_i32_0 : i32, i32
  }
  func.func @transform_9(%arg0: i32) -> (i32, i32) {
    %c0_i32 = arith.constant 0 : i32
    %c0_i32_0 = arith.constant 0 : i32
    %c0_i32_1 = arith.constant 0 : i32
    return %c0_i32, %c0_i32_0 : i32, i32
  }
  func.func @transform_10(%arg0: i32) -> (i32, i32) {
    %c0_i32 = arith.constant 0 : i32
    %c0_i32_0 = arith.constant 0 : i32
    %c0_i32_1 = arith.constant 0 : i32
    return %c0_i32, %c0_i32_0 : i32, i32
  }
  func.func @transform_11(%arg0: i32) -> (i32, i32) {
    %c0_i32 = arith.constant 0 : i32
    %c0_i32_0 = arith.constant 0 : i32
    %c0_i32_1 = arith.constant 0 : i32
    return %c0_i32, %c0_i32_0 : i32, i32
  }
  func.func @transform_12(%arg0: i32) -> (i32, i32) {
    %c0_i32 = arith.constant 0 : i32
    %c0_i32_0 = arith.constant 0 : i32
    %c0_i32_1 = arith.constant 0 : i32
    return %c0_i32, %c0_i32_0 : i32, i32
  }
  func.func @transform_13(%arg0: i32) -> (i32, i32) {
    %c0_i32 = arith.constant 0 : i32
    %c0_i32_0 = arith.constant 0 : i32
    %c0_i32_1 = arith.constant 0 : i32
    return %c0_i32, %c0_i32_0 : i32, i32
  }
  func.func @transform_14(%arg0: i32) -> (i32, i32) {
    %c0_i32 = arith.constant 0 : i32
    %c0_i32_0 = arith.constant 0 : i32
    %c0_i32_1 = arith.constant 0 : i32
    return %c0_i32, %c0_i32_0 : i32, i32
  }
  func.func @transform_15(%arg0: i32) -> (i32, i32) {
    %c0_i32 = arith.constant 0 : i32
    %c0_i32_0 = arith.constant 0 : i32
    %c0_i32_1 = arith.constant 0 : i32
    return %c0_i32, %c0_i32_0 : i32, i32
  }
  func.func @transform_16(%arg0: i32) -> (i32, i32) {
    %c0_i32 = arith.constant 0 : i32
    %c0_i32_0 = arith.constant 0 : i32
    %c0_i32_1 = arith.constant 0 : i32
    return %c0_i32, %c0_i32_0 : i32, i32
  }
  func.func @transform_17(%arg0: i32) -> (i32, i32) {
    %c0_i32 = arith.constant 0 : i32
    %c0_i32_0 = arith.constant 0 : i32
    return %arg0, %c0_i32 : i32, i32
  }
}

</mosaic_0001>

<llo_original>
// kernel: tpu_custom_call.1
$region0: #{tpu_custom_call.1}
  #allocation0 [shape = 'u32[]', space=smem, size = 0x4, offset = 0x4, fixed_abs, tag = 'smem constant byte address 0x4 - core index']
  #allocation1 [shape = 'u32[144,128]{1,0:T(1,128)}', space=vmem, size = 0x12000, scoped, tag = 'internal scratch']
  %s0 = inlined_call_operand.hbm [shape: f32[304,784], index: 0, kind: input, shape index: {}]
  %s1 = inlined_call_operand.vmem [shape: f32[784,128], index: 1, kind: input, shape index: {}]
  %s2 = inlined_call_operand.hbm [shape: f32[1,128], index: 2, kind: input, shape index: {}]
  %s3 = inlined_call_operand.vmem [shape: f32[128,64], index: 3, kind: input, shape index: {}]
  %s4 = inlined_call_operand.hbm [shape: f32[1,64], index: 4, kind: input, shape index: {}]
  %s5 = inlined_call_operand.vmem [shape: f32[64,12], index: 5, kind: input, shape index: {}]
  %s6 = inlined_call_operand.hbm [shape: f32[1,12], index: 6, kind: input, shape index: {}]
  %s7 = inlined_call_operand.vmem [shape: f32[12,3], index: 7, kind: input, shape index: {}]
  %s8 = inlined_call_operand.hbm [shape: f32[1,3], index: 8, kind: input, shape index: {}]
  %s9 = inlined_call_operand.hbm [shape: f32[3,12], index: 9, kind: input, shape index: {}]
  %s10 = inlined_call_operand.hbm [shape: f32[1,12], index: 10, kind: input, shape index: {}]
  %s11 = inlined_call_operand.hbm [shape: f32[12,64], index: 11, kind: input, shape index: {}]
  %s12 = inlined_call_operand.hbm [shape: f32[1,64], index: 12, kind: input, shape index: {}]
  %s13 = inlined_call_operand.hbm [shape: f32[64,128], index: 13, kind: input, shape index: {}]
  %s14 = inlined_call_operand.hbm [shape: f32[1,128], index: 14, kind: input, shape index: {}]
  %s15 = inlined_call_operand.vmem [shape: f32[128,784], index: 15, kind: input, shape index: {}]
  %s16 = inlined_call_operand.hbm [shape: f32[1,784], index: 16, kind: input, shape index: {}]
  %s17 = inlined_call_operand.hbm [shape: f32[304,784], index: 17, kind: output, shape index: {}]
  %s18 = sld [smem:[#allocation0]]
  $region149: #{tpu_custom_call.1} parent=0
    _
  %s20 = ssub.s32 1, %s18
  %s21 = scalar_select 0, %s20, %s18
  $region1: #{tpu_custom_call.1} parent=0
    #allocation2 [shape = 'u8[1089536]{0}', space=vmem, size = 0x10a000, scoped, tag = 'input window, operand 0']
    #allocation3 [shape = 's32[2]{0}', space=sflag, size = 0x8, scoped, tag = 'scoped memory for tpu_custom_call.1']
    #allocation4 [shape = 's32[2]{0}', space=sflag, size = 0x8, scoped, tag = 'scoped memory for tpu_custom_call.1']
    #allocation5 [shape = 'u8[512]{0}', space=vmem, size = 0x400, scoped, tag = 'input window, operand 2, single buffered']
    #allocation6 [shape = 's32[1]{0}', space=sflag, size = 0x4, scoped, tag = 'scoped memory for tpu_custom_call.1']
    #allocation7 [shape = 'u8[512]{0}', space=vmem, size = 0x400, scoped, tag = 'input window, operand 4, single buffered']
    #allocation8 [shape = 'u8[512]{0}', space=vmem, size = 0x400, scoped, tag = 'input window, operand 6, single buffered']
    #allocation9 [shape = 's32[1]{0}', space=sflag, size = 0x4, scoped, tag = 'scoped memory for tpu_custom_call.1']
    #allocation10 [shape = 'u8[512]{0}', space=vmem, size = 0x400, scoped, tag = 'input window, operand 8, single buffered']
    #allocation11 [shape = 'u8[2048]{0}', space=vmem, size = 0x800, scoped, tag = 'input window, operand 9, single buffered']
    #allocation12 [shape = 's32[1]{0}', space=sflag, size = 0x4, scoped, tag = 'scoped memory for tpu_custom_call.1']
    #allocation13 [shape = 'u8[512]{0}', space=vmem, size = 0x400, scoped, tag = 'input window, operand 10, single buffered']
    #allocation14 [shape = 'u8[8192]{0}', space=vmem, size = 0x2000, scoped, tag = 'input window, operand 11, single buffered']
    #allocation15 [shape = 's32[1]{0}', space=sflag, size = 0x4, scoped, tag = 'scoped memory for tpu_custom_call.1']
    #allocation16 [shape = 'u8[512]{0}', space=vmem, size = 0x400, scoped, tag = 'input window, operand 12, single buffered']
    #allocation17 [shape = 'u8[32768]{0}', space=vmem, size = 0x8000, scoped, tag = 'input window, operand 13, single buffered']
    #allocation18 [shape = 's32[1]{0}', space=sflag, size = 0x4, scoped, tag = 'scoped memory for tpu_custom_call.1']
    #allocation19 [shape = 'u8[512]{0}', space=vmem, size = 0x400, scoped, tag = 'input window, operand 14, single buffered']
    #allocation20 [shape = 'u8[3584]{0}', space=vmem, size = 0x1000, scoped, tag = 'input window, operand 16, single buffered']
    #allocation21 [shape = 's32[1]{0}', space=sflag, size = 0x4, scoped, tag = 'scoped memory for tpu_custom_call.1']
    #allocation22 [shape = 'u8[1089536]{0}', space=vmem, size = 0x10a000, scoped, tag = 'output window, operand 0']
    %22 = vsyncpa [#allocation3], 0
    %s23 = scalar_lea.sflag [#allocation3], 1
    %24 = vsyncpa %s23, 0
    %25 = vsyncpa [#allocation6], 0
    %26 = vsyncpa [#allocation9], 0
    %27 = vsyncpa [#allocation12], 0
    %28 = vsyncpa [#allocation15], 0
    %29 = vsyncpa [#allocation18], 0
    %30 = vsyncpa [#allocation21], 0
    %31 = vsyncpa [#allocation4], 0
    %s32 = scalar_lea.sflag [#allocation4], 1
    %33 = vsyncpa %s32, 0
    loop: start=0, step=1, limit=4
    $region2: #{tpu_custom_call.1} parent=1 // loop_pre_header
      _
    $region3: #{tpu_custom_call.1} parent=1 // loop_header
      %s35 = sphi 0, %s39
      %p36 = scmp.ge.s32.totalorder %s35, 4
      %s45 = sphi 0, %s47
      %s48 = sphi 0, %s45
      %s49 = sphi 0, %s48
      %s65 = sphi 0, %s49
      %s69 = sphi 0, %s69
      %s71 = sphi 0, %s69
      %s72 = sphi 0, %s71
      %s86 = sphi 0, %s72
      %s90 = sphi 0, %s90
      %s92 = sphi 0, %s90
      %s93 = sphi 0, %s92
      %s107 = sphi 0, %s93
      %s111 = sphi 0, %s111
      %s113 = sphi 0, %s111
      %s114 = sphi 0, %s113
      %s128 = sphi 0, %s114
      %s132 = sphi 0, %s132
      %s134 = sphi 0, %s132
      %s135 = sphi 0, %s134
      %s149 = sphi 0, %s135
      %s153 = sphi 0, %s153
      %s155 = sphi 0, %s153
      %s156 = sphi 0, %s155
      %s170 = sphi 0, %s156
      %s174 = sphi 0, %s174
      %s176 = sphi 0, %s174
      %s177 = sphi 0, %s176
      %s191 = sphi 0, %s177
      %s195 = sphi 0, %s195
      %s197 = sphi 0, %s195
      %s198 = sphi 0, %s197
      %s212 = sphi 0, %s198
      %s216 = sphi 0, %s216
      %s218 = sphi 0, %s216
      %s219 = sphi 0, %s218
      %s233 = sphi 0, %s219
      %s237 = sphi 0, %s237
      %s239 = sphi 0, %s237
      %s240 = sphi 0, %s239
      %s254 = sphi 0, %s240
      %s258 = sphi 0, %s258
      %s260 = sphi 0, %s258
      %s261 = sphi 0, %s260
      %s275 = sphi 0, %s261
      %s279 = sphi 0, %s279
      %s281 = sphi 0, %s279
      %s282 = sphi 0, %s281
      %s296 = sphi 0, %s282
      %s300 = sphi 0, %s300
      %s302 = sphi 0, %s300
      %s303 = sphi 0, %s302
      %s317 = sphi 0, %s303
      %s321 = sphi 0, %s321
      %s323 = sphi 0, %s321
      %s324 = sphi 0, %s323
      %s338 = sphi 0, %s324
      %s342 = sphi 0, %s342
      %s344 = sphi 0, %s342
      %s345 = sphi 0, %s344
      %s359 = sphi 0, %s345
      %s363 = sphi 0, %s363
      %s365 = sphi 0, %s363
      %s366 = sphi 0, %s365
      %s380 = sphi 0, %s366
      %s384 = sphi 0, %s384
      %s386 = sphi 0, %s384
      %s387 = sphi 0, %s386
      %s401 = sphi 0, %s387
      %s407 = sphi 0, %s409
      %s410 = sphi 0, %s407
      %s411 = sphi 0, %s410
      %s427 = sphi 0, %s411
    $region4: #{tpu_custom_call.1} parent=1 // loop_header_branch
      %38 = sbr.rel (%p36) target = $region8
    $region5: #{tpu_custom_call.1} parent=1 // loop_body
      %s40 = ssub.s32 %s35, 1
      %s41 = ssub.s32 %s35, 2
      %s42 = sadd.s32 %s35, 1
      %s43 = ssub.s32 %s35, %s42
      %p44 = scmp.eq.s32.totalorder %s43, 0
      %s46 = sadd.s32 %s45, 1
      %s47 = scalar_select %p44, %s45, %s46
      %p50 = pneg %p44
      %p51 = scmp.eq.s32.totalorder %s35, 1
      %p52 = por %p50, %p51
      %p53 = scmp.ne.s32.totalorder %s45, %s48
      %p54 = scmp.eq.s32.totalorder %s35, 0
      %p55 = por %p53, %p54
      %p56 = scmp.ne.s32.totalorder %s45, %s48
      %p57 = scmp.eq.s32.totalorder %s40, 1
      %p58 = por %p56, %p57
      %p59 = scmp.ne.s32.totalorder %s48, %s49
      %p60 = scmp.eq.s32.totalorder %s40, 0
      %p61 = por %p59, %p60
      %p62 = scmp.ne.s32.totalorder %s48, %s49
      %p63 = scmp.eq.s32.totalorder %s41, 1
      %p64 = por %p62, %p63
      %p66 = scmp.ne.s32.totalorder %s49, %s65
      %p67 = scmp.eq.s32.totalorder %s41, 0
      %p68 = por %p66, %p67
      %s70 = sadd.s32 %s69, 1
      %p73 = scmp.eq.s32.totalorder %s35, 1
      %p74 = scmp.ne.s32.totalorder %s69, %s71
      %p75 = scmp.eq.s32.totalorder %s35, 0
      %p76 = por %p74, %p75
      %p77 = scmp.ne.s32.totalorder %s69, %s71
      %p78 = scmp.eq.s32.totalorder %s40, 1
      %p79 = por %p77, %p78
      %p80 = scmp.ne.s32.totalorder %s71, %s72
      %p81 = scmp.eq.s32.totalorder %s40, 0
      %p82 = por %p80, %p81
      %p83 = scmp.ne.s32.totalorder %s71, %s72
      %p84 = scmp.eq.s32.totalorder %s41, 1
      %p85 = por %p83, %p84
      %p87 = scmp.ne.s32.totalorder %s72, %s86
      %p88 = scmp.eq.s32.totalorder %s41, 0
      %p89 = por %p87, %p88
      %s91 = sadd.s32 %s90, 1
      %p94 = scmp.eq.s32.totalorder %s35, 1
      %p95 = scmp.ne.s32.totalorder %s90, %s92
      %p96 = scmp.eq.s32.totalorder %s35, 0
      %p97 = por %p95, %p96
      %p98 = scmp.ne.s32.totalorder %s90, %s92
      %p99 = scmp.eq.s32.totalorder %s40, 1
      %p100 = por %p98, %p99
      %p101 = scmp.ne.s32.totalorder %s92, %s93
      %p102 = scmp.eq.s32.totalorder %s40, 0
      %p103 = por %p101, %p102
      %p104 = scmp.ne.s32.totalorder %s92, %s93
      %p105 = scmp.eq.s32.totalorder %s41, 1
      %p106 = por %p104, %p105
      %p108 = scmp.ne.s32.totalorder %s93, %s107
      %p109 = scmp.eq.s32.totalorder %s41, 0
      %p110 = por %p108, %p109
      %s112 = sadd.s32 %s111, 1
      %p115 = scmp.eq.s32.totalorder %s35, 1
      %p116 = scmp.ne.s32.totalorder %s111, %s113
      %p117 = scmp.eq.s32.totalorder %s35, 0
      %p118 = por %p116, %p117
      %p119 = scmp.ne.s32.totalorder %s111, %s113
      %p120 = scmp.eq.s32.totalorder %s40, 1
      %p121 = por %p119, %p120
      %p122 = scmp.ne.s32.totalorder %s113, %s114
      %p123 = scmp.eq.s32.totalorder %s40, 0
      %p124 = por %p122, %p123
      %p125 = scmp.ne.s32.totalorder %s113, %s114
      %p126 = scmp.eq.s32.totalorder %s41, 1
      %p127 = por %p125, %p126
      %p129 = scmp.ne.s32.totalorder %s114, %s128
      %p130 = scmp.eq.s32.totalorder %s41, 0
      %p131 = por %p129, %p130
      %s133 = sadd.s32 %s132, 1
      %p136 = scmp.eq.s32.totalorder %s35, 1
      %p137 = scmp.ne.s32.totalorder %s132, %s134
      %p138 = scmp.eq.s32.totalorder %s35, 0
      %p139 = por %p137, %p138
      %p140 = scmp.ne.s32.totalorder %s132, %s134
      %p141 = scmp.eq.s32.totalorder %s40, 1
      %p142 = por %p140, %p141
      %p143 = scmp.ne.s32.totalorder %s134, %s135
      %p144 = scmp.eq.s32.totalorder %s40, 0
      %p145 = por %p143, %p144
      %p146 = scmp.ne.s32.totalorder %s134, %s135
      %p147 = scmp.eq.s32.totalorder %s41, 1
      %p148 = por %p146, %p147
      %p150 = scmp.ne.s32.totalorder %s135, %s149
      %p151 = scmp.eq.s32.totalorder %s41, 0
      %p152 = por %p150, %p151
      %s154 = sadd.s32 %s153, 1
      %p157 = scmp.eq.s32.totalorder %s35, 1
      %p158 = scmp.ne.s32.totalorder %s153, %s155
      %p159 = scmp.eq.s32.totalorder %s35, 0
      %p160 = por %p158, %p159
      %p161 = scmp.ne.s32.totalorder %s153, %s155
      %p162 = scmp.eq.s32.totalorder %s40, 1
      %p163 = por %p161, %p162
      %p164 = scmp.ne.s32.totalorder %s155, %s156
      %p165 = scmp.eq.s32.totalorder %s40, 0
      %p166 = por %p164, %p165
      %p167 = scmp.ne.s32.totalorder %s155, %s156
      %p168 = scmp.eq.s32.totalorder %s41, 1
      %p169 = por %p167, %p168
      %p171 = scmp.ne.s32.totalorder %s156, %s170
      %p172 = scmp.eq.s32.totalorder %s41, 0
      %p173 = por %p171, %p172
      %s175 = sadd.s32 %s174, 1
      %p178 = scmp.eq.s32.totalorder %s35, 1
      %p179 = scmp.ne.s32.totalorder %s174, %s176
      %p180 = scmp.eq.s32.totalorder %s35, 0
      %p181 = por %p179, %p180
      %p182 = scmp.ne.s32.totalorder %s174, %s176
      %p183 = scmp.eq.s32.totalorder %s40, 1
      %p184 = por %p182, %p183
      %p185 = scmp.ne.s32.totalorder %s176, %s177
      %p186 = scmp.eq.s32.totalorder %s40, 0
      %p187 = por %p185, %p186
      %p188 = scmp.ne.s32.totalorder %s176, %s177
      %p189 = scmp.eq.s32.totalorder %s41, 1
      %p190 = por %p188, %p189
      %p192 = scmp.ne.s32.totalorder %s177, %s191
      %p193 = scmp.eq.s32.totalorder %s41, 0
      %p194 = por %p192, %p193
      %s196 = sadd.s32 %s195, 1
      %p199 = scmp.eq.s32.totalorder %s35, 1
      %p200 = scmp.ne.s32.totalorder %s195, %s197
      %p201 = scmp.eq.s32.totalorder %s35, 0
      %p202 = por %p200, %p201
      %p203 = scmp.ne.s32.totalorder %s195, %s197
      %p204 = scmp.eq.s32.totalorder %s40, 1
      %p205 = por %p203, %p204
      %p206 = scmp.ne.s32.totalorder %s197, %s198
      %p207 = scmp.eq.s32.totalorder %s40, 0
      %p208 = por %p206, %p207
      %p209 = scmp.ne.s32.totalorder %s197, %s198
      %p210 = scmp.eq.s32.totalorder %s41, 1
      %p211 = por %p209, %p210
      %p213 = scmp.ne.s32.totalorder %s198, %s212
      %p214 = scmp.eq.s32.totalorder %s41, 0
      %p215 = por %p213, %p214
      %s217 = sadd.s32 %s216, 1
      %p220 = scmp.eq.s32.totalorder %s35, 1
      %p221 = scmp.ne.s32.totalorder %s216, %s218
      %p222 = scmp.eq.s32.totalorder %s35, 0
      %p223 = por %p221, %p222
      %p224 = scmp.ne.s32.totalorder %s216, %s218
      %p225 = scmp.eq.s32.totalorder %s40, 1
      %p226 = por %p224, %p225
      %p227 = scmp.ne.s32.totalorder %s218, %s219
      %p228 = scmp.eq.s32.totalorder %s40, 0
      %p229 = por %p227, %p228
      %p230 = scmp.ne.s32.totalorder %s218, %s219
      %p231 = scmp.eq.s32.totalorder %s41, 1
      %p232 = por %p230, %p231
      %p234 = scmp.ne.s32.totalorder %s219, %s233
      %p235 = scmp.eq.s32.totalorder %s41, 0
      %p236 = por %p234, %p235
      %s238 = sadd.s32 %s237, 1
      %p241 = scmp.eq.s32.totalorder %s35, 1
      %p242 = scmp.ne.s32.totalorder %s237, %s239
      %p243 = scmp.eq.s32.totalorder %s35, 0
      %p244 = por %p242, %p243
      %p245 = scmp.ne.s32.totalorder %s237, %s239
      %p246 = scmp.eq.s32.totalorder %s40, 1
      %p247 = por %p245, %p246
      %p248 = scmp.ne.s32.totalorder %s239, %s240
      %p249 = scmp.eq.s32.totalorder %s40, 0
      %p250 = por %p248, %p249
      %p251 = scmp.ne.s32.totalorder %s239, %s240
      %p252 = scmp.eq.s32.totalorder %s41, 1
      %p253 = por %p251, %p252
      %p255 = scmp.ne.s32.totalorder %s240, %s254
      %p256 = scmp.eq.s32.totalorder %s41, 0
      %p257 = por %p255, %p256
      %s259 = sadd.s32 %s258, 1
      %p262 = scmp.eq.s32.totalorder %s35, 1
      %p263 = scmp.ne.s32.totalorder %s258, %s260
      %p264 = scmp.eq.s32.totalorder %s35, 0
      %p265 = por %p263, %p264
      %p266 = scmp.ne.s32.totalorder %s258, %s260
      %p267 = scmp.eq.s32.totalorder %s40, 1
      %p268 = por %p266, %p267
      %p269 = scmp.ne.s32.totalorder %s260, %s261
      %p270 = scmp.eq.s32.totalorder %s40, 0
      %p271 = por %p269, %p270
      %p272 = scmp.ne.s32.totalorder %s260, %s261
      %p273 = scmp.eq.s32.totalorder %s41, 1
      %p274 = por %p272, %p273
      %p276 = scmp.ne.s32.totalorder %s261, %s275
      %p277 = scmp.eq.s32.totalorder %s41, 0
      %p278 = por %p276, %p277
      %s280 = sadd.s32 %s279, 1
      %p283 = scmp.eq.s32.totalorder %s35, 1
      %p284 = scmp.ne.s32.totalorder %s279, %s281
      %p285 = scmp.eq.s32.totalorder %s35, 0
      %p286 = por %p284, %p285
      %p287 = scmp.ne.s32.totalorder %s279, %s281
      %p288 = scmp.eq.s32.totalorder %s40, 1
      %p289 = por %p287, %p288
      %p290 = scmp.ne.s32.totalorder %s281, %s282
      %p291 = scmp.eq.s32.totalorder %s40, 0
      %p292 = por %p290, %p291
      %p293 = scmp.ne.s32.totalorder %s281, %s282
      %p294 = scmp.eq.s32.totalorder %s41, 1
      %p295 = por %p293, %p294
      %p297 = scmp.ne.s32.totalorder %s282, %s296
      %p298 = scmp.eq.s32.totalorder %s41, 0
      %p299 = por %p297, %p298
      %s301 = sadd.s32 %s300, 1
      %p304 = scmp.eq.s32.totalorder %s35, 1
      %p305 = scmp.ne.s32.totalorder %s300, %s302
      %p306 = scmp.eq.s32.totalorder %s35, 0
      %p307 = por %p305, %p306
      %p308 = scmp.ne.s32.totalorder %s300, %s302
      %p309 = scmp.eq.s32.totalorder %s40, 1
      %p310 = por %p308, %p309
      %p311 = scmp.ne.s32.totalorder %s302, %s303
      %p312 = scmp.eq.s32.totalorder %s40, 0
      %p313 = por %p311, %p312
      %p314 = scmp.ne.s32.totalorder %s302, %s303
      %p315 = scmp.eq.s32.totalorder %s41, 1
      %p316 = por %p314, %p315
      %p318 = scmp.ne.s32.totalorder %s303, %s317
      %p319 = scmp.eq.s32.totalorder %s41, 0
      %p320 = por %p318, %p319
      %s322 = sadd.s32 %s321, 1
      %p325 = scmp.eq.s32.totalorder %s35, 1
      %p326 = scmp.ne.s32.totalorder %s321, %s323
      %p327 = scmp.eq.s32.totalorder %s35, 0
      %p328 = por %p326, %p327
      %p329 = scmp.ne.s32.totalorder %s321, %s323
      %p330 = scmp.eq.s32.totalorder %s40, 1
      %p331 = por %p329, %p330
      %p332 = scmp.ne.s32.totalorder %s323, %s324
      %p333 = scmp.eq.s32.totalorder %s40, 0
      %p334 = por %p332, %p333
      %p335 = scmp.ne.s32.totalorder %s323, %s324
      %p336 = scmp.eq.s32.totalorder %s41, 1
      %p337 = por %p335, %p336
      %p339 = scmp.ne.s32.totalorder %s324, %s338
      %p340 = scmp.eq.s32.totalorder %s41, 0
      %p341 = por %p339, %p340
      %s343 = sadd.s32 %s342, 1
      %p346 = scmp.eq.s32.totalorder %s35, 1
      %p347 = scmp.ne.s32.totalorder %s342, %s344
      %p348 = scmp.eq.s32.totalorder %s35, 0
      %p349 = por %p347, %p348
      %p350 = scmp.ne.s32.totalorder %s342, %s344
      %p351 = scmp.eq.s32.totalorder %s40, 1
      %p352 = por %p350, %p351
      %p353 = scmp.ne.s32.totalorder %s344, %s345
      %p354 = scmp.eq.s32.totalorder %s40, 0
      %p355 = por %p353, %p354
      %p356 = scmp.ne.s32.totalorder %s344, %s345
      %p357 = scmp.eq.s32.totalorder %s41, 1
      %p358 = por %p356, %p357
      %p360 = scmp.ne.s32.totalorder %s345, %s359
      %p361 = scmp.eq.s32.totalorder %s41, 0
      %p362 = por %p360, %p361
      %s364 = sadd.s32 %s363, 1
      %p367 = scmp.eq.s32.totalorder %s35, 1
      %p368 = scmp.ne.s32.totalorder %s363, %s365
      %p369 = scmp.eq.s32.totalorder %s35, 0
      %p370 = por %p368, %p369
      %p371 = scmp.ne.s32.totalorder %s363, %s365
      %p372 = scmp.eq.s32.totalorder %s40, 1
      %p373 = por %p371, %p372
      %p374 = scmp.ne.s32.totalorder %s365, %s366
      %p375 = scmp.eq.s32.totalorder %s40, 0
      %p376 = por %p374, %p375
      %p377 = scmp.ne.s32.totalorder %s365, %s366
      %p378 = scmp.eq.s32.totalorder %s41, 1
      %p379 = por %p377, %p378
      %p381 = scmp.ne.s32.totalorder %s366, %s380
      %p382 = scmp.eq.s32.totalorder %s41, 0
      %p383 = por %p381, %p382
      %s385 = sadd.s32 %s384, 1
      %p388 = scmp.eq.s32.totalorder %s35, 1
      %p389 = scmp.ne.s32.totalorder %s384, %s386
      %p390 = scmp.eq.s32.totalorder %s35, 0
      %p391 = por %p389, %p390
      %p392 = scmp.ne.s32.totalorder %s384, %s386
      %p393 = scmp.eq.s32.totalorder %s40, 1
      %p394 = por %p392, %p393
      %p395 = scmp.ne.s32.totalorder %s386, %s387
      %p396 = scmp.eq.s32.totalorder %s40, 0
      %p397 = por %p395, %p396
      %p398 = scmp.ne.s32.totalorder %s386, %s387
      %p399 = scmp.eq.s32.totalorder %s41, 1
      %p400 = por %p398, %p399
      %p402 = scmp.ne.s32.totalorder %s387, %s401
      %p403 = scmp.eq.s32.totalorder %s41, 0
      %p404 = por %p402, %p403
      %s405 = ssub.s32 %s35, %s42
      %p406 = scmp.eq.s32.totalorder %s405, 0
      %s408 = sadd.s32 %s407, 1
      %s409 = scalar_select %p406, %s407, %s408
      %p412 = pneg %p406
      %p413 = scmp.eq.s32.totalorder %s35, 1
      %p414 = por %p412, %p413
      %p415 = scmp.ne.s32.totalorder %s407, %s410
      %p416 = scmp.eq.s32.totalorder %s35, 0
      %p417 = por %p415, %p416
      %p418 = scmp.ne.s32.totalorder %s407, %s410
      %p419 = scmp.eq.s32.totalorder %s40, 1
      %p420 = por %p418, %p419
      %p421 = scmp.ne.s32.totalorder %s410, %s411
      %p422 = scmp.eq.s32.totalorder %s40, 0
      %p423 = por %p421, %p422
      %p424 = scmp.ne.s32.totalorder %s410, %s411
      %p425 = scmp.eq.s32.totalorder %s41, 1
      %p426 = por %p424, %p425
      %p428 = scmp.ne.s32.totalorder %s411, %s427
      %p429 = scmp.eq.s32.totalorder %s41, 0
      %p430 = por %p428, %p429
      %p431 = scmp.le.s32.totalorder 1, %s35
      %p432 = scmp.lt.s32.totalorder %s35, 3
      %p433 = pnand %p431, %p432
      %p434 = pneg %p433
      // Predicated region
      $region9: #{tpu_custom_call.1} parent=5 // pred_check
        _
      $region10: #{tpu_custom_call.1} parent=5 // pred_check_branch
        %436 = sbr.rel (%p433) target = $region12
      $region11: #{tpu_custom_call.1} parent=5 // pred_region
        %s437 = ssub.s32 %s35, 1
        // Predicated region
        $region13: #{tpu_custom_call.1} parent=11 // pred_check
          %p438 = pneg %p82
        $region14: #{tpu_custom_call.1} parent=11 // pred_check_branch
          %440 = sbr.rel (%p438) target = $region16
        $region15: #{tpu_custom_call.1} parent=11 // pred_region
          _
        $region16: #{tpu_custom_call.1} parent=11 // pred_fallthru
          _
        // Predicated region
        $region17: #{tpu_custom_call.1} parent=11 // pred_check
          %p441 = pneg %p103
        $region18: #{tpu_custom_call.1} parent=11 // pred_check_branch
          %443 = sbr.rel (%p441) target = $region20
        $region19: #{tpu_custom_call.1} parent=11 // pred_region
          %s445 = ssub.s32 16, 16
          %446 = vsyncadd [#allocation6], %s445
          %s448 = sshll.u32 [#allocation5], 4
          %s449 = int_to_ptr.vmem [resolvable:$true] %s448
          %451 = dma.hbm_to_vmem [thread:$0]  %s2, 16, %s449, [#allocation6]
        $region20: #{tpu_custom_call.1} parent=11 // pred_fallthru
          _
        // Predicated region
        $region21: #{tpu_custom_call.1} parent=11 // pred_check
          %p452 = pneg %p124
        $region22: #{tpu_custom_call.1} parent=11 // pred_check_branch
          %454 = sbr.rel (%p452) target = $region24
        $region23: #{tpu_custom_call.1} parent=11 // pred_region
          _
        $region24: #{tpu_custom_call.1} parent=11 // pred_fallthru
          _
        // Predicated region
        $region25: #{tpu_custom_call.1} parent=11 // pred_check
          %p455 = pneg %p145
        $region26: #{tpu_custom_call.1} parent=11 // pred_check_branch
          %457 = sbr.rel (%p455) target = $region28
        $region27: #{tpu_custom_call.1} parent=11 // pred_region
          %s459 = ssub.s32 16, 16
          %460 = vsyncadd [#allocation6], %s459
          %s462 = sshll.u32 [#allocation7], 4
          %s463 = int_to_ptr.vmem [resolvable:$true] %s462
          %465 = dma.hbm_to_vmem [thread:$0]  %s4, 16, %s463, [#allocation6]
        $region28: #{tpu_custom_call.1} parent=11 // pred_fallthru
          _
        // Predicated region
        $region29: #{tpu_custom_call.1} parent=11 // pred_check
          %p466 = pneg %p166
        $region30: #{tpu_custom_call.1} parent=11 // pred_check_branch
          %468 = sbr.rel (%p466) target = $region32
        $region31: #{tpu_custom_call.1} parent=11 // pred_region
          _
        $region32: #{tpu_custom_call.1} parent=11 // pred_fallthru
          _
        // Predicated region
        $region33: #{tpu_custom_call.1} parent=11 // pred_check
          %p469 = pneg %p187
        $region34: #{tpu_custom_call.1} parent=11 // pred_check_branch
          %471 = sbr.rel (%p469) target = $region36
        $region35: #{tpu_custom_call.1} parent=11 // pred_region
          %s473 = ssub.s32 16, 16
          %474 = vsyncadd [#allocation9], %s473
          %s476 = sshll.u32 [#allocation8], 4
          %s477 = int_to_ptr.vmem [resolvable:$true] %s476
          %479 = dma.hbm_to_vmem [thread:$0]  %s6, 16, %s477, [#allocation9]
        $region36: #{tpu_custom_call.1} parent=11 // pred_fallthru
          _
        // Predicated region
        $region37: #{tpu_custom_call.1} parent=11 // pred_check
          %p480 = pneg %p208
        $region38: #{tpu_custom_call.1} parent=11 // pred_check_branch
          %482 = sbr.rel (%p480) target = $region40
        $region39: #{tpu_custom_call.1} parent=11 // pred_region
          _
        $region40: #{tpu_custom_call.1} parent=11 // pred_fallthru
          _
        // Predicated region
        $region41: #{tpu_custom_call.1} parent=11 // pred_check
          %p483 = pneg %p229
        $region42: #{tpu_custom_call.1} parent=11 // pred_check_branch
          %485 = sbr.rel (%p483) target = $region44
        $region43: #{tpu_custom_call.1} parent=11 // pred_region
          %s487 = ssub.s32 16, 16
          %488 = vsyncadd [#allocation9], %s487
          %s490 = sshll.u32 [#allocation10], 4
          %s491 = int_to_ptr.vmem [resolvable:$true] %s490
          %493 = dma.hbm_to_vmem [thread:$0]  %s8, 16, %s491, [#allocation9]
        $region44: #{tpu_custom_call.1} parent=11 // pred_fallthru
          _
        // Predicated region
        $region45: #{tpu_custom_call.1} parent=11 // pred_check
          %p494 = pneg %p250
        $region46: #{tpu_custom_call.1} parent=11 // pred_check_branch
          %496 = sbr.rel (%p494) target = $region48
        $region47: #{tpu_custom_call.1} parent=11 // pred_region
          %s498 = ssub.s32 64, 64
          %499 = vsyncadd [#allocation12], %s498
          %s501 = sshll.u32 [#allocation11], 4
          %s502 = int_to_ptr.vmem [resolvable:$true] %s501
          %504 = dma.hbm_to_vmem [thread:$0]  %s9, 64, %s502, [#allocation12]
        $region48: #{tpu_custom_call.1} parent=11 // pred_fallthru
          _
        // Predicated region
        $region49: #{tpu_custom_call.1} parent=11 // pred_check
          %p505 = pneg %p271
        $region50: #{tpu_custom_call.1} parent=11 // pred_check_branch
          %507 = sbr.rel (%p505) target = $region52
        $region51: #{tpu_custom_call.1} parent=11 // pred_region
          %s509 = ssub.s32 16, 16
          %510 = vsyncadd [#allocation12], %s509
          %s512 = sshll.u32 [#allocation13], 4
          %s513 = int_to_ptr.vmem [resolvable:$true] %s512
          %515 = dma.hbm_to_vmem [thread:$0]  %s10, 16, %s513, [#allocation12]
        $region52: #{tpu_custom_call.1} parent=11 // pred_fallthru
          _
        // Predicated region
        $region53: #{tpu_custom_call.1} parent=11 // pred_check
          %p516 = pneg %p292
        $region54: #{tpu_custom_call.1} parent=11 // pred_check_branch
          %518 = sbr.rel (%p516) target = $region56
        $region55: #{tpu_custom_call.1} parent=11 // pred_region
          %s520 = ssub.s32 256, 256
          %521 = vsyncadd [#allocation15], %s520
          %s522 = sshll.u32 [#allocation14], 4
          %s523 = int_to_ptr.vmem [resolvable:$true] %s522
          %528 = dma.hbm_to_vmem [thread:$0]  %s11, 256, %s523, [#allocation15], 128, 128, 8
        $region56: #{tpu_custom_call.1} parent=11 // pred_fallthru
          _
        // Predicated region
        $region57: #{tpu_custom_call.1} parent=11 // pred_check
          %p529 = pneg %p313
        $region58: #{tpu_custom_call.1} parent=11 // pred_check_branch
          %531 = sbr.rel (%p529) target = $region60
        $region59: #{tpu_custom_call.1} parent=11 // pred_region
          %s533 = ssub.s32 16, 16
          %534 = vsyncadd [#allocation15], %s533
          %s536 = sshll.u32 [#allocation16], 4
          %s537 = int_to_ptr.vmem [resolvable:$true] %s536
          %539 = dma.hbm_to_vmem [thread:$0]  %s12, 16, %s537, [#allocation15]
        $region60: #{tpu_custom_call.1} parent=11 // pred_fallthru
          _
        // Predicated region
        $region61: #{tpu_custom_call.1} parent=11 // pred_check
          %p540 = pneg %p334
        $region62: #{tpu_custom_call.1} parent=11 // pred_check_branch
          %542 = sbr.rel (%p540) target = $region64
        $region63: #{tpu_custom_call.1} parent=11 // pred_region
          %s544 = ssub.s32 1024, 1024
          %545 = vsyncadd [#allocation18], %s544
          %s546 = sshll.u32 [#allocation17], 4
          %s547 = int_to_ptr.vmem [resolvable:$true] %s546
          %552 = dma.hbm_to_vmem [thread:$0]  %s13, 1024, %s547, [#allocation18], 128, 128, 8
        $region64: #{tpu_custom_call.1} parent=11 // pred_fallthru
          _
        // Predicated region
        $region65: #{tpu_custom_call.1} parent=11 // pred_check
          %p553 = pneg %p355
        $region66: #{tpu_custom_call.1} parent=11 // pred_check_branch
          %555 = sbr.rel (%p553) target = $region68
        $region67: #{tpu_custom_call.1} parent=11 // pred_region
          %s557 = ssub.s32 16, 16
          %558 = vsyncadd [#allocation18], %s557
          %s560 = sshll.u32 [#allocation19], 4
          %s561 = int_to_ptr.vmem [resolvable:$true] %s560
          %563 = dma.hbm_to_vmem [thread:$0]  %s14, 16, %s561, [#allocation18]
        $region68: #{tpu_custom_call.1} parent=11 // pred_fallthru
          _
        // Predicated region
        $region69: #{tpu_custom_call.1} parent=11 // pred_check
          %p564 = pneg %p376
        $region70: #{tpu_custom_call.1} parent=11 // pred_check_branch
          %566 = sbr.rel (%p564) target = $region72
        $region71: #{tpu_custom_call.1} parent=11 // pred_region
          _
        $region72: #{tpu_custom_call.1} parent=11 // pred_fallthru
          _
        // Predicated region
        $region73: #{tpu_custom_call.1} parent=11 // pred_check
          %p567 = pneg %p397
        $region74: #{tpu_custom_call.1} parent=11 // pred_check_branch
          %569 = sbr.rel (%p567) target = $region76
        $region75: #{tpu_custom_call.1} parent=11 // pred_region
          %s571 = ssub.s32 112, 112
          %572 = vsyncadd [#allocation21], %s571
          %s574 = sshll.u32 [#allocation20], 4
          %s575 = int_to_ptr.vmem [resolvable:$true] %s574
          %577 = dma.hbm_to_vmem [thread:$0]  %s16, 112, %s575, [#allocation21]
        $region76: #{tpu_custom_call.1} parent=11 // pred_fallthru
          _
      $region12: #{tpu_custom_call.1} parent=5 // pred_fallthru
        _
      %p578 = scmp.lt.s32.totalorder %s35, 2
      // Predicated region
      $region77: #{tpu_custom_call.1} parent=5 // pred_check
        %p579 = pneg %p578
      $region78: #{tpu_custom_call.1} parent=5 // pred_check_branch
        %581 = sbr.rel (%p579) target = $region80
      $region79: #{tpu_custom_call.1} parent=5 // pred_region
        // Predicated region
        $region81: #{tpu_custom_call.1} parent=79 // pred_check
          %p582 = pneg %p55
        $region82: #{tpu_custom_call.1} parent=79 // pred_check_branch
          %584 = sbr.rel (%p582) target = $region84
        $region83: #{tpu_custom_call.1} parent=79 // pred_region
          %s585 = sand.u32 %s45, 1
          %s586 = scalar_lea.sflag [#allocation3], %s585
          %s587 = sand.u32 %s45, 1
          %s588 = smul.addr %s587, 1064
          %s589 = scalar_lea.vmem [#allocation2], %s588
          %s590 = smul.u32 19, %s35
          %s592 = ssub.s32 17024, 17024
          %593 = vsyncadd %s586, %s592
          %s594 = smul.addr %s590, 7
          %s595 = smul.addr %s594, 128
          %s596 = scalar_lea.hbm %s0, %s595
          %s597 = sshll.u32 %s589, 4
          %s598 = int_to_ptr.vmem [resolvable:$true] %s597
          %603 = dma.hbm_to_vmem [thread:$0]  %s596, 17024, %s598, %s586, 896, 896, 56
        $region84: #{tpu_custom_call.1} parent=79 // pred_fallthru
          _
      $region80: #{tpu_custom_call.1} parent=5 // pred_fallthru
        _
      %p604 = scmp.le.s32.totalorder 1, %s35
      %p605 = scmp.lt.s32.totalorder %s35, 3
      %p606 = pnand %p604, %p605
      %p607 = pneg %p606
      // Predicated region
      $region85: #{tpu_custom_call.1} parent=5 // pred_check
        _
      $region86: #{tpu_custom_call.1} parent=5 // pred_check_branch
        %609 = sbr.rel (%p606) target = $region88
      $region87: #{tpu_custom_call.1} parent=5 // pred_region
        %s610 = ssub.s32 %s35, 1
        %s611 = sand.u32 %s48, 1
        %s612 = scalar_lea.sflag [#allocation3], %s611
        %s613 = sand.u32 %s48, 1
        %s614 = smul.addr %s613, 1064
        %s615 = scalar_lea.vmem [#allocation2], %s614
        // Predicated region
        $region89: #{tpu_custom_call.1} parent=87 // pred_check
          %p616 = pneg %p61
        $region90: #{tpu_custom_call.1} parent=87 // pred_check_branch
          %618 = sbr.rel (%p616) target = $region92
        $region91: #{tpu_custom_call.1} parent=87 // pred_region
          %619 = dma.done %s612, 17024
        $region92: #{tpu_custom_call.1} parent=87 // pred_fallthru
          _
        // Predicated region
        $region93: #{tpu_custom_call.1} parent=87 // pred_check
          %p620 = pneg %p103
        $region94: #{tpu_custom_call.1} parent=87 // pred_check_branch
          %622 = sbr.rel (%p620) target = $region96
        $region95: #{tpu_custom_call.1} parent=87 // pred_region
          %623 = dma.done [#allocation6], 16
        $region96: #{tpu_custom_call.1} parent=87 // pred_fallthru
          _
        // Predicated region
        $region97: #{tpu_custom_call.1} parent=87 // pred_check
          %p624 = pneg %p145
        $region98: #{tpu_custom_call.1} parent=87 // pred_check_branch
          %626 = sbr.rel (%p624) target = $region100
        $region99: #{tpu_custom_call.1} parent=87 // pred_region
          %627 = dma.done [#allocation6], 16
        $region100: #{tpu_custom_call.1} parent=87 // pred_fallthru
          _
        // Predicated region
        $region101: #{tpu_custom_call.1} parent=87 // pred_check
          %p628 = pneg %p187
        $region102: #{tpu_custom_call.1} parent=87 // pred_check_branch
          %630 = sbr.rel (%p628) target = $region104
        $region103: #{tpu_custom_call.1} parent=87 // pred_region
          %631 = dma.done [#allocation9], 16
        $region104: #{tpu_custom_call.1} parent=87 // pred_fallthru
          _
        // Predicated region
        $region105: #{tpu_custom_call.1} parent=87 // pred_check
          %p632 = pneg %p229
        $region106: #{tpu_custom_call.1} parent=87 // pred_check_branch
          %634 = sbr.rel (%p632) target = $region108
        $region107: #{tpu_custom_call.1} parent=87 // pred_region
          %635 = dma.done [#allocation9], 16
        $region108: #{tpu_custom_call.1} parent=87 // pred_fallthru
          _
        // Predicated region
        $region109: #{tpu_custom_call.1} parent=87 // pred_check
          %p636 = pneg %p250
        $region110: #{tpu_custom_call.1} parent=87 // pred_check_branch
          %638 = sbr.rel (%p636) target = $region112
        $region111: #{tpu_custom_call.1} parent=87 // pred_region
          %639 = dma.done [#allocation12], 64
        $region112: #{tpu_custom_call.1} parent=87 // pred_fallthru
          _
        // Predicated region
        $region113: #{tpu_custom_call.1} parent=87 // pred_check
          %p640 = pneg %p271
        $region114: #{tpu_custom_call.1} parent=87 // pred_check_branch
          %642 = sbr.rel (%p640) target = $region116
        $region115: #{tpu_custom_call.1} parent=87 // pred_region
          %643 = dma.done [#allocation12], 16
        $region116: #{tpu_custom_call.1} parent=87 // pred_fallthru
          _
        // Predicated region
        $region117: #{tpu_custom_call.1} parent=87 // pred_check
          %p644 = pneg %p292
        $region118: #{tpu_custom_call.1} parent=87 // pred_check_branch
          %646 = sbr.rel (%p644) target = $region120
        $region119: #{tpu_custom_call.1} parent=87 // pred_region
          %647 = dma.done [#allocation15], 256
        $region120: #{tpu_custom_call.1} parent=87 // pred_fallthru
          _
        // Predicated region
        $region121: #{tpu_custom_call.1} parent=87 // pred_check
          %p648 = pneg %p313
        $region122: #{tpu_custom_call.1} parent=87 // pred_check_branch
          %650 = sbr.rel (%p648) target = $region124
        $region123: #{tpu_custom_call.1} parent=87 // pred_region
          %651 = dma.done [#allocation15], 16
        $region124: #{tpu_custom_call.1} parent=87 // pred_fallthru
          _
        // Predicated region
        $region125: #{tpu_custom_call.1} parent=87 // pred_check
          %p652 = pneg %p334
        $region126: #{tpu_custom_call.1} parent=87 // pred_check_branch
          %654 = sbr.rel (%p652) target = $region128
        $region127: #{tpu_custom_call.1} parent=87 // pred_region
          %655 = dma.done [#allocation18], 1024
        $region128: #{tpu_custom_call.1} parent=87 // pred_fallthru
          _
        // Predicated region
        $region129: #{tpu_custom_call.1} parent=87 // pred_check
          %p656 = pneg %p355
        $region130: #{tpu_custom_call.1} parent=87 // pred_check_branch
          %658 = sbr.rel (%p656) target = $region132
        $region131: #{tpu_custom_call.1} parent=87 // pred_region
          %659 = dma.done [#allocation18], 16
        $region132: #{tpu_custom_call.1} parent=87 // pred_fallthru
          _
        // Predicated region
        $region133: #{tpu_custom_call.1} parent=87 // pred_check
          %p660 = pneg %p397
        $region134: #{tpu_custom_call.1} parent=87 // pred_check_branch
          %662 = sbr.rel (%p660) target = $region136
        $region135: #{tpu_custom_call.1} parent=87 // pred_region
          %663 = dma.done [#allocation21], 112
        $region136: #{tpu_custom_call.1} parent=87 // pred_fallthru
          _
        %s664 = sand.u32 %s48, 1
        %s665 = scalar_lea.sflag [#allocation3], %s664
        %s666 = sand.u32 %s48, 1
        %s667 = smul.addr %s666, 1064
        %s668 = scalar_lea.vmem [#allocation2], %s667
        %p669 = pneg %p61
        %p670 = pneg %p58
        %p671 = pneg %p82
        %p672 = pneg %p79
        %p673 = pneg %p103
        %p674 = pneg %p100
        %p675 = pneg %p124
        %p676 = pneg %p121
        %p677 = pneg %p145
        %p678 = pneg %p142
        %p679 = pneg %p166
        %p680 = pneg %p163
        %p681 = pneg %p187
        %p682 = pneg %p184
        %p683 = pneg %p208
        %p684 = pneg %p205
        %p685 = pneg %p229
        %p686 = pneg %p226
        %p687 = pneg %p250
        %p688 = pneg %p247
        %p689 = pneg %p271
        %p690 = pneg %p268
        %p691 = pneg %p292
        %p692 = pneg %p289
        %p693 = pneg %p313
        %p694 = pneg %p310
        %p695 = pneg %p334
        %p696 = pneg %p331
        %p697 = pneg %p355
        %p698 = pneg %p352
        %p699 = pneg %p376
        %p700 = pneg %p373
        %p701 = pneg %p397
        %p702 = pneg %p394
        %p703 = pneg %p423
        %p704 = pneg %p420
        %s705 = sand.u32 %s410, 1
        %s706 = scalar_lea.sflag [#allocation4], %s705
        %s707 = sand.u32 %s410, 1
        %s708 = smul.addr %s707, 1064
        %s709 = scalar_lea.vmem [#allocation22], %s708
        %s710 = smul.u32 19, %s40
        %s711 = smul.u32 19, %s40
        %v712 = vld [vmem:[%s615] sm:$0xff]
        %v713 = vld [vmem:[%s615 + $0x8] sm:$0xff]
        %v714 = vld [vmem:[%s615 + $0x10] sm:$0xff]
        %v715 = vld [vmem:[%s615 + $0x18] sm:$0xff]
        %v716 = vld [vmem:[%s615 + $0x20] sm:$0xff]
        %v717 = vld [vmem:[%s615 + $0x28] sm:$0xff]
        %v718 = vld [vmem:[%s615 + $0x30] sm:$0xff]
        %v719 = vld [vmem:[%s615 + $0x38] sm:$0xff]
        %v720 = vld [vmem:[%s615 + $0x40] sm:$0xff]
        %v721 = vld [vmem:[%s615 + $0x48] sm:$0xff]
        %v722 = vld [vmem:[%s615 + $0x50] sm:$0xff]
        %v723 = vld [vmem:[%s615 + $0x58] sm:$0xff]
        %v724 = vld [vmem:[%s615 + $0x60] sm:$0xff]
        %v725 = vld [vmem:[%s615 + $0x68] sm:$0xff]
        %v726 = vld [vmem:[%s615 + $0x70] sm:$0xff]
        %v727 = vld [vmem:[%s615 + $0x78] sm:$0xff]
        %v728 = vld [vmem:[%s615 + $0x80] sm:$0xff]
        %v729 = vld [vmem:[%s615 + $0x88] sm:$0xff]
        %v730 = vld [vmem:[%s615 + $0x90] sm:$0xff]
        %v731 = vld [vmem:[%s615 + $0x98] sm:$0xff]
        %v732 = vld [vmem:[%s615 + $0xa0] sm:$0xff]
        %v733 = vld [vmem:[%s615 + $0xa8] sm:$0xff]
        %v734 = vld [vmem:[%s615 + $0xb0] sm:$0xff]
        %v735 = vld [vmem:[%s615 + $0xb8] sm:$0xff]
        %v736 = vld [vmem:[%s615 + $0xc0] sm:$0xff]
        %v737 = vld [vmem:[%s615 + $0xc8] sm:$0xff]
        %v738 = vld [vmem:[%s615 + $0xd0] sm:$0xff]
        %v739 = vld [vmem:[%s615 + $0xd8] sm:$0xff]
        %v740 = vld [vmem:[%s615 + $0xe0] sm:$0xff]
        %v741 = vld [vmem:[%s615 + $0xe8] sm:$0xff]
        %v742 = vld [vmem:[%s615 + $0xf0] sm:$0xff]
        %v743 = vld [vmem:[%s615 + $0xf8] sm:$0xff]
        %v744 = vld [vmem:[%s615 + $0x100] sm:$0xff]
        %v745 = vld [vmem:[%s615 + $0x108] sm:$0xff]
        %v746 = vld [vmem:[%s615 + $0x110] sm:$0xff]
        %v747 = vld [vmem:[%s615 + $0x118] sm:$0xff]
        %v748 = vld [vmem:[%s615 + $0x120] sm:$0xff]
        %v749 = vld [vmem:[%s615 + $0x128] sm:$0xff]
        %v750 = vld [vmem:[%s615 + $0x130] sm:$0xff]
        %v751 = vld [vmem:[%s615 + $0x138] sm:$0xff]
        %v752 = vld [vmem:[%s615 + $0x140] sm:$0xff]
        %v753 = vld [vmem:[%s615 + $0x148] sm:$0xff]
        %v754 = vld [vmem:[%s615 + $0x150] sm:$0xff]
        %v755 = vld [vmem:[%s615 + $0x158] sm:$0xff]
        %v756 = vld [vmem:[%s615 + $0x160] sm:$0xff]
        %v757 = vld [vmem:[%s615 + $0x168] sm:$0xff]
        %v758 = vld [vmem:[%s615 + $0x170] sm:$0xff]
        %v759 = vld [vmem:[%s615 + $0x178] sm:$0xff]
        %v760 = vld [vmem:[%s615 + $0x180] sm:$0xff]
        %v761 = vld [vmem:[%s615 + $0x188] sm:$0xff]
        %v762 = vld [vmem:[%s615 + $0x190] sm:$0xff]
        %v763 = vld [vmem:[%s615 + $0x198] sm:$0xff]
        %v764 = vld [vmem:[%s615 + $0x1a0] sm:$0xff]
        %v765 = vld [vmem:[%s615 + $0x1a8] sm:$0xff]
        %v766 = vld [vmem:[%s615 + $0x1b0] sm:$0xff]
        %v767 = vld [vmem:[%s615 + $0x1b8] sm:$0xff]
        %v768 = vld [vmem:[%s615 + $0x1c0] sm:$0xff]
        %v769 = vld [vmem:[%s615 + $0x1c8] sm:$0xff]
        %v770 = vld [vmem:[%s615 + $0x1d0] sm:$0xff]
        %v771 = vld [vmem:[%s615 + $0x1d8] sm:$0xff]
        %v772 = vld [vmem:[%s615 + $0x1e0] sm:$0xff]
        %v773 = vld [vmem:[%s615 + $0x1e8] sm:$0xff]
        %v774 = vld [vmem:[%s615 + $0x1f0] sm:$0xff]
        %v775 = vld [vmem:[%s615 + $0x1f8] sm:$0xff]
        %v776 = vld [vmem:[%s615 + $0x200] sm:$0xff]
        %v777 = vld [vmem:[%s615 + $0x208] sm:$0xff]
        %v778 = vld [vmem:[%s615 + $0x210] sm:$0xff]
        %v779 = vld [vmem:[%s615 + $0x218] sm:$0xff]
        %v780 = vld [vmem:[%s615 + $0x220] sm:$0xff]
        %v781 = vld [vmem:[%s615 + $0x228] sm:$0xff]
        %v782 = vld [vmem:[%s615 + $0x230] sm:$0xff]
        %v783 = vld [vmem:[%s615 + $0x238] sm:$0xff]
        %v784 = vld [vmem:[%s615 + $0x240] sm:$0xff]
        %v785 = vld [vmem:[%s615 + $0x248] sm:$0xff]
        %v786 = vld [vmem:[%s615 + $0x250] sm:$0xff]
        %v787 = vld [vmem:[%s615 + $0x258] sm:$0xff]
        %v788 = vld [vmem:[%s615 + $0x260] sm:$0xff]
        %v789 = vld [vmem:[%s615 + $0x268] sm:$0xff]
        %v790 = vld [vmem:[%s615 + $0x270] sm:$0xff]
        %v791 = vld [vmem:[%s615 + $0x278] sm:$0xff]
        %v792 = vld [vmem:[%s615 + $0x280] sm:$0xff]
        %v793 = vld [vmem:[%s615 + $0x288] sm:$0xff]
        %v794 = vld [vmem:[%s615 + $0x290] sm:$0xff]
        %v795 = vld [vmem:[%s615 + $0x298] sm:$0xff]
        %v796 = vld [vmem:[%s615 + $0x2a0] sm:$0xff]
        %v797 = vld [vmem:[%s615 + $0x2a8] sm:$0xff]
        %v798 = vld [vmem:[%s615 + $0x2b0] sm:$0xff]
        %v799 = vld [vmem:[%s615 + $0x2b8] sm:$0xff]
        %v800 = vld [vmem:[%s615 + $0x2c0] sm:$0xff]
        %v801 = vld [vmem:[%s615 + $0x2c8] sm:$0xff]
        %v802 = vld [vmem:[%s615 + $0x2d0] sm:$0xff]
        %v803 = vld [vmem:[%s615 + $0x2d8] sm:$0xff]
        %v804 = vld [vmem:[%s615 + $0x2e0] sm:$0xff]
        %v805 = vld [vmem:[%s615 + $0x2e8] sm:$0xff]
        %v806 = vld [vmem:[%s615 + $0x2f0] sm:$0xff]
        %v807 = vld [vmem:[%s615 + $0x2f8] sm:$0xff]
        %v808 = vld [vmem:[%s615 + $0x300] sm:$0xff]
        %v809 = vld [vmem:[%s615 + $0x308] sm:$0xff]
        %v810 = vld [vmem:[%s615 + $0x310] sm:$0xff]
        %v811 = vld [vmem:[%s615 + $0x318] sm:$0xff]
        %v812 = vld [vmem:[%s615 + $0x320] sm:$0xff]
        %v813 = vld [vmem:[%s615 + $0x328] sm:$0xff]
        %v814 = vld [vmem:[%s615 + $0x330] sm:$0xff]
        %v815 = vld [vmem:[%s615 + $0x338] sm:$0xff]
        %v816 = vld [vmem:[%s615 + $0x340] sm:$0xff]
        %v817 = vld [vmem:[%s615 + $0x348] sm:$0xff]
        %v818 = vld [vmem:[%s615 + $0x350] sm:$0xff]
        %v819 = vld [vmem:[%s615 + $0x358] sm:$0xff]
        %v820 = vld [vmem:[%s615 + $0x360] sm:$0xff]
        %v821 = vld [vmem:[%s615 + $0x368] sm:$0xff]
        %v822 = vld [vmem:[%s615 + $0x370] sm:$0xff]
        %v823 = vld [vmem:[%s615 + $0x378] sm:$0xff]
        %v824 = vld [vmem:[%s615 + $0x380] sm:$0xff]
        %v825 = vld [vmem:[%s615 + $0x388] sm:$0xff]
        %v826 = vld [vmem:[%s615 + $0x390] sm:$0xff]
        %v827 = vld [vmem:[%s615 + $0x398] sm:$0xff]
        %v828 = vld [vmem:[%s615 + $0x3a0] sm:$0xff]
        %v829 = vld [vmem:[%s615 + $0x3a8] sm:$0xff]
        %v830 = vld [vmem:[%s615 + $0x3b0] sm:$0xff]
        %v831 = vld [vmem:[%s615 + $0x3b8] sm:$0xff]
        %v832 = vld [vmem:[%s615 + $0x3c0] sm:$0xff]
        %v833 = vld [vmem:[%s615 + $0x3c8] sm:$0xff]
        %v834 = vld [vmem:[%s615 + $0x3d0] sm:$0xff]
        %v835 = vld [vmem:[%s615 + $0x3d8] sm:$0xff]
        %v836 = vld [vmem:[%s615 + $0x3e0] sm:$0xff]
        %v837 = vld [vmem:[%s615 + $0x3e8] sm:$0xff]
        %v838 = vld [vmem:[%s615 + $0x3f0] sm:$0xff]
        %v839 = vld [vmem:[%s615 + $0x3f8] sm:$0xff]
        %v840 = vld [vmem:[%s615 + $0x400] sm:$0xff]
        %v841 = vld [vmem:[%s615 + $0x408] sm:$0xff]
        %v842 = vld [vmem:[%s615 + $0x410] sm:$0xff]
        %v843 = vld [vmem:[%s615 + $0x418] sm:$0xff]
        %v844 = vld [vmem:[%s615 + $0x420] sm:$0xff]
        %v845 = vld [vmem:[%s1] sm:$0xff]
        %v846 = vld [vmem:[%s1 + $0x8] sm:$0xff]
        %v847 = vld [vmem:[%s1 + $0x10] sm:$0xff]
        %v848 = vld [vmem:[%s1 + $0x18] sm:$0xff]
        %v849 = vld [vmem:[%s1 + $0x20] sm:$0xff]
        %v850 = vld [vmem:[%s1 + $0x28] sm:$0xff]
        %v851 = vld [vmem:[%s1 + $0x30] sm:$0xff]
        %v852 = vld [vmem:[%s1 + $0x38] sm:$0xff]
        %v853 = vld [vmem:[%s1 + $0x40] sm:$0xff]
        %v854 = vld [vmem:[%s1 + $0x48] sm:$0xff]
        %v855 = vld [vmem:[%s1 + $0x50] sm:$0xff]
        %v856 = vld [vmem:[%s1 + $0x58] sm:$0xff]
        %v857 = vld [vmem:[%s1 + $0x60] sm:$0xff]
        %v858 = vld [vmem:[%s1 + $0x68] sm:$0xff]
        %v859 = vld [vmem:[%s1 + $0x70] sm:$0xff]
        %v860 = vld [vmem:[%s1 + $0x78] sm:$0xff]
        %v861 = vld [vmem:[%s1 + $0x80] sm:$0xff]
        %v862 = vld [vmem:[%s1 + $0x88] sm:$0xff]
        %v863 = vld [vmem:[%s1 + $0x90] sm:$0xff]
        %v864 = vld [vmem:[%s1 + $0x98] sm:$0xff]
        %v865 = vld [vmem:[%s1 + $0xa0] sm:$0xff]
        %v866 = vld [vmem:[%s1 + $0xa8] sm:$0xff]
        %v867 = vld [vmem:[%s1 + $0xb0] sm:$0xff]
        %v868 = vld [vmem:[%s1 + $0xb8] sm:$0xff]
        %v869 = vld [vmem:[%s1 + $0xc0] sm:$0xff]
        %v870 = vld [vmem:[%s1 + $0xc8] sm:$0xff]
        %v871 = vld [vmem:[%s1 + $0xd0] sm:$0xff]
        %v872 = vld [vmem:[%s1 + $0xd8] sm:$0xff]
        %v873 = vld [vmem:[%s1 + $0xe0] sm:$0xff]
        %v874 = vld [vmem:[%s1 + $0xe8] sm:$0xff]
        %v875 = vld [vmem:[%s1 + $0xf0] sm:$0xff]
        %v876 = vld [vmem:[%s1 + $0xf8] sm:$0xff]
        %v877 = vld [vmem:[%s1 + $0x100] sm:$0xff]
        %v878 = vld [vmem:[%s1 + $0x108] sm:$0xff]
        %v879 = vld [vmem:[%s1 + $0x110] sm:$0xff]
        %v880 = vld [vmem:[%s1 + $0x118] sm:$0xff]
        %v881 = vld [vmem:[%s1 + $0x120] sm:$0xff]
        %v882 = vld [vmem:[%s1 + $0x128] sm:$0xff]
        %v883 = vld [vmem:[%s1 + $0x130] sm:$0xff]
        %v884 = vld [vmem:[%s1 + $0x138] sm:$0xff]
        %v885 = vld [vmem:[%s1 + $0x140] sm:$0xff]
        %v886 = vld [vmem:[%s1 + $0x148] sm:$0xff]
        %v887 = vld [vmem:[%s1 + $0x150] sm:$0xff]
        %v888 = vld [vmem:[%s1 + $0x158] sm:$0xff]
        %v889 = vld [vmem:[%s1 + $0x160] sm:$0xff]
        %v890 = vld [vmem:[%s1 + $0x168] sm:$0xff]
        %v891 = vld [vmem:[%s1 + $0x170] sm:$0xff]
        %v892 = vld [vmem:[%s1 + $0x178] sm:$0xff]
        %v893 = vld [vmem:[%s1 + $0x180] sm:$0xff]
        %v894 = vld [vmem:[%s1 + $0x188] sm:$0xff]
        %v895 = vld [vmem:[%s1 + $0x190] sm:$0xff]
        %v896 = vld [vmem:[%s1 + $0x198] sm:$0xff]
        %v897 = vld [vmem:[%s1 + $0x1a0] sm:$0xff]
        %v898 = vld [vmem:[%s1 + $0x1a8] sm:$0xff]
        %v899 = vld [vmem:[%s1 + $0x1b0] sm:$0xff]
        %v900 = vld [vmem:[%s1 + $0x1b8] sm:$0xff]
        %v901 = vld [vmem:[%s1 + $0x1c0] sm:$0xff]
        %v902 = vld [vmem:[%s1 + $0x1c8] sm:$0xff]
        %v903 = vld [vmem:[%s1 + $0x1d0] sm:$0xff]
        %v904 = vld [vmem:[%s1 + $0x1d8] sm:$0xff]
        %v905 = vld [vmem:[%s1 + $0x1e0] sm:$0xff]
        %v906 = vld [vmem:[%s1 + $0x1e8] sm:$0xff]
        %v907 = vld [vmem:[%s1 + $0x1f0] sm:$0xff]
        %v908 = vld [vmem:[%s1 + $0x1f8] sm:$0xff]
        %v909 = vld [vmem:[%s1 + $0x200] sm:$0xff]
        %v910 = vld [vmem:[%s1 + $0x208] sm:$0xff]
        %v911 = vld [vmem:[%s1 + $0x210] sm:$0xff]
        %v912 = vld [vmem:[%s1 + $0x218] sm:$0xff]
        %v913 = vld [vmem:[%s1 + $0x220] sm:$0xff]
        %v914 = vld [vmem:[%s1 + $0x228] sm:$0xff]
        %v915 = vld [vmem:[%s1 + $0x230] sm:$0xff]
        %v916 = vld [vmem:[%s1 + $0x238] sm:$0xff]
        %v917 = vld [vmem:[%s1 + $0x240] sm:$0xff]
        %v918 = vld [vmem:[%s1 + $0x248] sm:$0xff]
        %v919 = vld [vmem:[%s1 + $0x250] sm:$0xff]
        %v920 = vld [vmem:[%s1 + $0x258] sm:$0xff]
        %v921 = vld [vmem:[%s1 + $0x260] sm:$0xff]
        %v922 = vld [vmem:[%s1 + $0x268] sm:$0xff]
        %v923 = vld [vmem:[%s1 + $0x270] sm:$0xff]
        %v924 = vld [vmem:[%s1 + $0x278] sm:$0xff]
        %v925 = vld [vmem:[%s1 + $0x280] sm:$0xff]
        %v926 = vld [vmem:[%s1 + $0x288] sm:$0xff]
        %v927 = vld [vmem:[%s1 + $0x290] sm:$0xff]
        %v928 = vld [vmem:[%s1 + $0x298] sm:$0xff]
        %v929 = vld [vmem:[%s1 + $0x2a0] sm:$0xff]
        %v930 = vld [vmem:[%s1 + $0x2a8] sm:$0xff]
        %v931 = vld [vmem:[%s1 + $0x2b0] sm:$0xff]
        %v932 = vld [vmem:[%s1 + $0x2b8] sm:$0xff]
        %v933 = vld [vmem:[%s1 + $0x2c0] sm:$0xff]
        %v934 = vld [vmem:[%s1 + $0x2c8] sm:$0xff]
        %v935 = vld [vmem:[%s1 + $0x2d0] sm:$0xff]
        %v936 = vld [vmem:[%s1 + $0x2d8] sm:$0xff]
        %v937 = vld [vmem:[%s1 + $0x2e0] sm:$0xff]
        %v938 = vld [vmem:[%s1 + $0x2e8] sm:$0xff]
        %v939 = vld [vmem:[%s1 + $0x2f0] sm:$0xff]
        %v940 = vld [vmem:[%s1 + $0x2f8] sm:$0xff]
        %v941 = vld [vmem:[%s1 + $0x300] sm:$0xff]
        %v942 = vld [vmem:[%s1 + $0x308] sm:$0xff]
        %v943 = vld [vmem:[#allocation5] sm:$0x1]
        %v945 = vlaneseq
        %v946 = vshrl.u32 %v945, 7
        %v947 = vsub.s32 0, %v946
        %v948 = vrot.slane %v943, %v947
        %vm950 = vcmask 130048
        %v952 = vsel %vm950, %v718, 0
        %v955 = vsel %vm950, %v725, 0
        %v958 = vsel %vm950, %v732, 0
        %v961 = vsel %vm950, %v739, 0
        %v964 = vsel %vm950, %v746, 0
        %v967 = vsel %vm950, %v753, 0
        %v970 = vsel %vm950, %v760, 0
        %v973 = vsel %vm950, %v767, 0
        %v976 = vsel %vm950, %v774, 0
        %v979 = vsel %vm950, %v781, 0
        %v982 = vsel %vm950, %v788, 0
        %v985 = vsel %vm950, %v795, 0
        %v988 = vsel %vm950, %v802, 0
        %v991 = vsel %vm950, %v809, 0
        %v994 = vsel %vm950, %v816, 0
        %v997 = vsel %vm950, %v823, 0
        %v1000 = vsel %vm950, %v830, 0
        %v1003 = vsel %vm950, %v837, 0
        %v1006 = vsel %vm950, %v844, 0
        %1008 = vmatprep.subr.mxu0 0.0
        %1009 = vmatpush1.msra.mxu0 %v845
        %1010 = vmatprep.subr.mxu0 0.0
        %1011 = vmatpush1.msra.mxu0 %v846
        %1012 = vmatprep.subr.mxu0 0.0
        %1013 = vmatpush1.msra.mxu0 %v847
        %1014 = vmatprep.subr.mxu0 0.0
        %1015 = vmatpush1.msra.mxu0 %v848
        %1016 = vmatprep.subr.mxu0 0.0
        %1017 = vmatpush1.msra.mxu0 %v849
        %1018 = vmatprep.subr.mxu0 0.0
        %1019 = vmatpush1.msra.mxu0 %v850
        %1020 = vmatprep.subr.mxu0 0.0
        %1021 = vmatpush1.msra.mxu0 %v851
        %1022 = vmatprep.subr.mxu0 0.0
        %1023 = vmatpush1.msra.mxu0 %v852
        %1024 = vmatprep.subr.mxu0 0.0
        %1025 = vmatpush1.msra.mxu0 %v853
        %1026 = vmatprep.subr.mxu0 0.0
        %1027 = vmatpush1.msra.mxu0 %v854
        %1028 = vmatprep.subr.mxu0 0.0
        %1029 = vmatpush1.msra.mxu0 %v855
        %1030 = vmatprep.subr.mxu0 0.0
        %1031 = vmatpush1.msra.mxu0 %v856
        %1032 = vmatprep.subr.mxu0 0.0
        %1033 = vmatpush1.msra.mxu0 %v857
        %1034 = vmatprep.subr.mxu0 0.0
        %1035 = vmatpush1.msra.mxu0 %v858
        %1036 = vmatprep.subr.mxu0 0.0
        %1037 = vmatpush1.msra.mxu0 %v859
        %1038 = vmatprep.subr.mxu0 0.0
        %1039 = vmatpush1.msra.mxu0 %v860
        %1040 = vmatprep.subr.mxu0 0.0
        %1041 = vmatpush1.msra.mxu0 %v861
        %1042 = vmatprep.subr.mxu0 0.0
        %1043 = vmatpush1.msra.mxu0 %v862
        %1044 = vmatprep.subr.mxu0 0.0
        %1045 = vmatpush1.msra.mxu0 %v863
        %1046 = vmatprep.subr.mxu0 0.0
        %1047 = vmatpush1.msra.mxu0 %v864
        %1048 = vmatprep.subr.mxu0 0.0
        %1049 = vmatpush1.msra.mxu0 %v865
        %1050 = vmatprep.subr.mxu0 0.0
        %1051 = vmatpush1.msra.mxu0 %v866
        %1052 = vmatprep.subr.mxu0 0.0
        %1053 = vmatpush1.msra.mxu0 %v867
        %1054 = vmatprep.subr.mxu0 0.0
        %1055 = vmatpush1.msra.mxu0 %v868
        %1056 = vmatprep.subr.mxu0 0.0
        %1057 = vmatpush1.msra.mxu0 %v869
        %1058 = vmatprep.subr.mxu0 0.0
        %1059 = vmatpush1.msra.mxu0 %v870
        %1060 = vmatprep.subr.mxu0 0.0
        %1061 = vmatpush1.msra.mxu0 %v871
        %1062 = vmatprep.subr.mxu0 0.0
        %1063 = vmatpush1.msra.mxu0 %v872
        %1064 = vmatprep.subr.mxu0 0.0
        %1065 = vmatpush1.msra.mxu0 %v873
        %1066 = vmatprep.subr.mxu0 0.0
        %1067 = vmatpush1.msra.mxu0 %v874
        %1068 = vmatprep.subr.mxu0 0.0
        %1069 = vmatpush1.msra.mxu0 %v875
        %1070 = vmatprep.subr.mxu0 0.0
        %1071 = vmatpush1.msra.mxu0 %v876
        %1072 = vmatprep.mubr.f32.mxu0 %v713
        %1073 = vmatmul.mubr.f32.gmra.mrb[0].mxu0 %v712
        %v1074 = vpop.f32.mrb[0].mxu0
        %v1075 = vadd.f32 %v948, %v1074
        %v1076 = vpop.f32.mrb[0].mxu0
        %1077 = vmatprep.mubr.f32.mxu0 %v720
        %1078 = vmatmul.mubr.f32.gmra.mrb[0].mxu0 %v719
        %v1079 = vpop.f32.mrb[0].mxu0
        %v1080 = vadd.f32 %v948, %v1079
        %v1081 = vpop.f32.mrb[0].mxu0
        %1082 = vmatprep.mubr.f32.mxu0 %v727
        %1083 = vmatmul.mubr.f32.gmra.mrb[0].mxu0 %v726
        %v1084 = vpop.f32.mrb[0].mxu0
        %v1085 = vadd.f32 %v948, %v1084
        %v1086 = vpop.f32.mrb[0].mxu0
        %1087 = vmatprep.mubr.f32.mxu0 %v734
        %1088 = vmatmul.mubr.f32.gmra.mrb[0].mxu0 %v733
        %v1089 = vpop.f32.mrb[0].mxu0
        %v1090 = vadd.f32 %v948, %v1089
        %v1091 = vpop.f32.mrb[0].mxu0
        %1092 = vmatprep.mubr.f32.mxu0 %v741
        %1093 = vmatmul.mubr.f32.gmra.mrb[0].mxu0 %v740
        %v1094 = vpop.f32.mrb[0].mxu0
        %v1095 = vadd.f32 %v948, %v1094
        %v1096 = vpop.f32.mrb[0].mxu0
        %1097 = vmatprep.mubr.f32.mxu0 %v748
        %1098 = vmatmul.mubr.f32.gmra.mrb[0].mxu0 %v747
        %v1099 = vpop.f32.mrb[0].mxu0
        %v1100 = vadd.f32 %v948, %v1099
        %v1101 = vpop.f32.mrb[0].mxu0
        %1102 = vmatprep.mubr.f32.mxu0 %v755
        %1103 = vmatmul.mubr.f32.gmra.mrb[0].mxu0 %v754
        %v1104 = vpop.f32.mrb[0].mxu0
        %v1105 = vadd.f32 %v948, %v1104
        %v1106 = vpop.f32.mrb[0].mxu0
        %1107 = vmatprep.mubr.f32.mxu0 %v762
        %1108 = vmatmul.mubr.f32.gmra.mrb[0].mxu0 %v761
        %v1109 = vpop.f32.mrb[0].mxu0
        %v1110 = vadd.f32 %v948, %v1109
        %v1111 = vpop.f32.mrb[0].mxu0
        %1112 = vmatprep.mubr.f32.mxu0 %v769
        %1113 = vmatmul.mubr.f32.gmra.mrb[0].mxu0 %v768
        %v1114 = vpop.f32.mrb[0].mxu0
        %v1115 = vadd.f32 %v948, %v1114
        %v1116 = vpop.f32.mrb[0].mxu0
        %1117 = vmatprep.mubr.f32.mxu0 %v776
        %1118 = vmatmul.mubr.f32.gmra.mrb[0].mxu0 %v775
        %v1119 = vpop.f32.mrb[0].mxu0
        %v1120 = vadd.f32 %v948, %v1119
        %v1121 = vpop.f32.mrb[0].mxu0
        %1122 = vmatprep.mubr.f32.mxu0 %v783
        %1123 = vmatmul.mubr.f32.gmra.mrb[0].mxu0 %v782
        %v1124 = vpop.f32.mrb[0].mxu0
        %v1125 = vadd.f32 %v948, %v1124
        %v1126 = vpop.f32.mrb[0].mxu0
        %1127 = vmatprep.mubr.f32.mxu0 %v790
        %1128 = vmatmul.mubr.f32.gmra.mrb[0].mxu0 %v789
        %v1129 = vpop.f32.mrb[0].mxu0
        %v1130 = vadd.f32 %v948, %v1129
        %v1131 = vpop.f32.mrb[0].mxu0
        %1132 = vmatprep.mubr.f32.mxu0 %v797
        %1133 = vmatmul.mubr.f32.gmra.mrb[0].mxu0 %v796
        %v1134 = vpop.f32.mrb[0].mxu0
        %v1135 = vadd.f32 %v948, %v1134
        %v1136 = vpop.f32.mrb[0].mxu0
        %1137 = vmatprep.mubr.f32.mxu0 %v804
        %1138 = vmatmul.mubr.f32.gmra.mrb[0].mxu0 %v803
        %v1139 = vpop.f32.mrb[0].mxu0
        %v1140 = vadd.f32 %v948, %v1139
        %v1141 = vpop.f32.mrb[0].mxu0
        %1142 = vmatprep.mubr.f32.mxu0 %v811
        %1143 = vmatmul.mubr.f32.gmra.mrb[0].mxu0 %v810
        %v1144 = vpop.f32.mrb[0].mxu0
        %v1145 = vadd.f32 %v948, %v1144
        %v1146 = vpop.f32.mrb[0].mxu0
        %1147 = vmatprep.mubr.f32.mxu0 %v818
        %1148 = vmatmul.mubr.f32.gmra.mrb[0].mxu0 %v817
        %v1149 = vpop.f32.mrb[0].mxu0
        %v1150 = vadd.f32 %v948, %v1149
        %v1151 = vpop.f32.mrb[0].mxu0
        %1152 = vmatprep.mubr.f32.mxu0 %v825
        %1153 = vmatmul.mubr.f32.gmra.mrb[0].mxu0 %v824
        %v1154 = vpop.f32.mrb[0].mxu0
        %v1155 = vadd.f32 %v948, %v1154
        %v1156 = vpop.f32.mrb[0].mxu0
        %1157 = vmatprep.mubr.f32.mxu0 %v832
        %1158 = vmatmul.mubr.f32.gmra.mrb[0].mxu0 %v831
        %v1159 = vpop.f32.mrb[0].mxu0
        %v1160 = vadd.f32 %v948, %v1159
        %v1161 = vpop.f32.mrb[0].mxu0
        %1162 = vmatprep.mubr.f32.mxu0 %v839
        %1163 = vmatmul.mubr.f32.gmra.mrb[0].mxu0 %v838
        %v1164 = vpop.f32.mrb[0].mxu0
        %v1165 = vadd.f32 %v948, %v1164
        %v1166 = vpop.f32.mrb[0].mxu0
        %1167 = vdwg.mxu0
        %1168 = vmatprep.subr.mxu0 0.0
        %1169 = vmatpush1.msra.mxu0 %v877
        %1170 = vmatprep.subr.mxu0 0.0
        %1171 = vmatpush1.msra.mxu0 %v878
        %1172 = vmatprep.subr.mxu0 0.0
        %1173 = vmatpush1.msra.mxu0 %v879
        %1174 = vmatprep.subr.mxu0 0.0
        %1175 = vmatpush1.msra.mxu0 %v880
        %1176 = vmatprep.subr.mxu0 0.0
        %1177 = vmatpush1.msra.mxu0 %v881
        %1178 = vmatprep.subr.mxu0 0.0
        %1179 = vmatpush1.msra.mxu0 %v882
        %1180 = vmatprep.subr.mxu0 0.0
        %1181 = vmatpush1.msra.mxu0 %v883
        %1182 = vmatprep.subr.mxu0 0.0
        %1183 = vmatpush1.msra.mxu0 %v884
        %1184 = vmatprep.subr.mxu0 0.0
        %1185 = vmatpush1.msra.mxu0 %v885
        %1186 = vmatprep.subr.mxu0 0.0
        %1187 = vmatpush1.msra.mxu0 %v886
        %1188 = vmatprep.subr.mxu0 0.0
        %1189 = vmatpush1.msra.mxu0 %v887
        %1190 = vmatprep.subr.mxu0 0.0
        %1191 = vmatpush1.msra.mxu0 %v888
        %1192 = vmatprep.subr.mxu0 0.0
        %1193 = vmatpush1.msra.mxu0 %v889
        %1194 = vmatprep.subr.mxu0 0.0
        %1195 = vmatpush1.msra.mxu0 %v890
        %1196 = vmatprep.subr.mxu0 0.0
        %1197 = vmatpush1.msra.mxu0 %v891
        %1198 = vmatprep.subr.mxu0 0.0
        %1199 = vmatpush1.msra.mxu0 %v892
        %1200 = vmatprep.subr.mxu0 0.0
        %1201 = vmatpush1.msra.mxu0 %v893
        %1202 = vmatprep.subr.mxu0 0.0
        %1203 = vmatpush1.msra.mxu0 %v894
        %1204 = vmatprep.subr.mxu0 0.0
        %1205 = vmatpush1.msra.mxu0 %v895
        %1206 = vmatprep.subr.mxu0 0.0
        %1207 = vmatpush1.msra.mxu0 %v896
        %1208 = vmatprep.subr.mxu0 0.0
        %1209 = vmatpush1.msra.mxu0 %v897
        %1210 = vmatprep.subr.mxu0 0.0
        %1211 = vmatpush1.msra.mxu0 %v898
        %1212 = vmatprep.subr.mxu0 0.0
        %1213 = vmatpush1.msra.mxu0 %v899
        %1214 = vmatprep.subr.mxu0 0.0
        %1215 = vmatpush1.msra.mxu0 %v900
        %1216 = vmatprep.subr.mxu0 0.0
        %1217 = vmatpush1.msra.mxu0 %v901
        %1218 = vmatprep.subr.mxu0 0.0
        %1219 = vmatpush1.msra.mxu0 %v902
        %1220 = vmatprep.subr.mxu0 0.0
        %1221 = vmatpush1.msra.mxu0 %v903
        %1222 = vmatprep.subr.mxu0 0.0
        %1223 = vmatpush1.msra.mxu0 %v904
        %1224 = vmatprep.subr.mxu0 0.0
        %1225 = vmatpush1.msra.mxu0 %v905
        %1226 = vmatprep.subr.mxu0 0.0
        %1227 = vmatpush1.msra.mxu0 %v906
        %1228 = vmatprep.subr.mxu0 0.0
        %1229 = vmatpush1.msra.mxu0 %v907
        %1230 = vmatprep.subr.mxu0 0.0
        %1231 = vmatpush1.msra.mxu0 %v908
        %1232 = vmatprep.mubr.f32.mxu0 %v715
        %1233 = vmatmul.mubr.f32.gmra.mrb[0].mxu0 %v714
        %v1234 = vpop.f32.mrb[0].mxu0
        %v1235 = vadd.f32 %v1075, %v1234
        %v1236 = vpop.f32.mrb[0].mxu0
        %1237 = vmatprep.mubr.f32.mxu0 %v722
        %1238 = vmatmul.mubr.f32.gmra.mrb[0].mxu0 %v721
        %v1239 = vpop.f32.mrb[0].mxu0
        %v1240 = vadd.f32 %v1080, %v1239
        %v1241 = vpop.f32.mrb[0].mxu0
        %1242 = vmatprep.mubr.f32.mxu0 %v729
        %1243 = vmatmul.mubr.f32.gmra.mrb[0].mxu0 %v728
        %v1244 = vpop.f32.mrb[0].mxu0
        %v1245 = vadd.f32 %v1085, %v1244
        %v1246 = vpop.f32.mrb[0].mxu0
        %1247 = vmatprep.mubr.f32.mxu0 %v736
        %1248 = vmatmul.mubr.f32.gmra.mrb[0].mxu0 %v735
        %v1249 = vpop.f32.mrb[0].mxu0
        %v1250 = vadd.f32 %v1090, %v1249
        %v1251 = vpop.f32.mrb[0].mxu0
        %1252 = vmatprep.mubr.f32.mxu0 %v743
        %1253 = vmatmul.mubr.f32.gmra.mrb[0].mxu0 %v742
        %v1254 = vpop.f32.mrb[0].mxu0
        %v1255 = vadd.f32 %v1095, %v1254
        %v1256 = vpop.f32.mrb[0].mxu0
        %1257 = vmatprep.mubr.f32.mxu0 %v750
        %1258 = vmatmul.mubr.f32.gmra.mrb[0].mxu0 %v749
        %v1259 = vpop.f32.mrb[0].mxu0
        %v1260 = vadd.f32 %v1100, %v1259
        %v1261 = vpop.f32.mrb[0].mxu0
        %1262 = vmatprep.mubr.f32.mxu0 %v757
        %1263 = vmatmul.mubr.f32.gmra.mrb[0].mxu0 %v756
        %v1264 = vpop.f32.mrb[0].mxu0
        %v1265 = vadd.f32 %v1105, %v1264
        %v1266 = vpop.f32.mrb[0].mxu0
        %1267 = vmatprep.mubr.f32.mxu0 %v764
        %1268 = vmatmul.mubr.f32.gmra.mrb[0].mxu0 %v763
        %v1269 = vpop.f32.mrb[0].mxu0
        %v1270 = vadd.f32 %v1110, %v1269
        %v1271 = vpop.f32.mrb[0].mxu0
        %1272 = vmatprep.mubr.f32.mxu0 %v771
        %1273 = vmatmul.mubr.f32.gmra.mrb[0].mxu0 %v770
        %v1274 = vpop.f32.mrb[0].mxu0
        %v1275 = vadd.f32 %v1115, %v1274
        %v1276 = vpop.f32.mrb[0].mxu0
        %1277 = vmatprep.mubr.f32.mxu0 %v778
        %1278 = vmatmul.mubr.f32.gmra.mrb[0].mxu0 %v777
        %v1279 = vpop.f32.mrb[0].mxu0
        %v1280 = vadd.f32 %v1120, %v1279
        %v1281 = vpop.f32.mrb[0].mxu0
        %1282 = vmatprep.mubr.f32.mxu0 %v785
        %1283 = vmatmul.mubr.f32.gmra.mrb[0].mxu0 %v784
        %v1284 = vpop.f32.mrb[0].mxu0
        %v1285 = vadd.f32 %v1125, %v1284
        %v1286 = vpop.f32.mrb[0].mxu0
        %1287 = vmatprep.mubr.f32.mxu0 %v792
        %1288 = vmatmul.mubr.f32.gmra.mrb[0].mxu0 %v791
        %v1289 = vpop.f32.mrb[0].mxu0
        %v1290 = vadd.f32 %v1130, %v1289
        %v1291 = vpop.f32.mrb[0].mxu0
        %1292 = vmatprep.mubr.f32.mxu0 %v799
        %1293 = vmatmul.mubr.f32.gmra.mrb[0].mxu0 %v798
        %v1294 = vpop.f32.mrb[0].mxu0
        %v1295 = vadd.f32 %v1135, %v1294
        %v1296 = vpop.f32.mrb[0].mxu0
        %1297 = vmatprep.mubr.f32.mxu0 %v806
        %1298 = vmatmul.mubr.f32.gmra.mrb[0].mxu0 %v805
        %v1299 = vpop.f32.mrb[0].mxu0
        %v1300 = vadd.f32 %v1140, %v1299
        %v1301 = vpop.f32.mrb[0].mxu0
        %1302 = vmatprep.mubr.f32.mxu0 %v813
        %1303 = vmatmul.mubr.f32.gmra.mrb[0].mxu0 %v812
        %v1304 = vpop.f32.mrb[0].mxu0
        %v1305 = vadd.f32 %v1145, %v1304
        %v1306 = vpop.f32.mrb[0].mxu0
        %1307 = vmatprep.mubr.f32.mxu0 %v820
        %1308 = vmatmul.mubr.f32.gmra.mrb[0].mxu0 %v819
        %v1309 = vpop.f32.mrb[0].mxu0
        %v1310 = vadd.f32 %v1150, %v1309
        %v1311 = vpop.f32.mrb[0].mxu0
        %1312 = vmatprep.mubr.f32.mxu0 %v827
        %1313 = vmatmul.mubr.f32.gmra.mrb[0].mxu0 %v826
        %v1314 = vpop.f32.mrb[0].mxu0
        %v1315 = vadd.f32 %v1155, %v1314
        %v1316 = vpop.f32.mrb[0].mxu0
        %1317 = vmatprep.mubr.f32.mxu0 %v834
        %1318 = vmatmul.mubr.f32.gmra.mrb[0].mxu0 %v833
        %v1319 = vpop.f32.mrb[0].mxu0
        %v1320 = vadd.f32 %v1160, %v1319
        %v1321 = vpop.f32.mrb[0].mxu0
        %1322 = vmatprep.mubr.f32.mxu0 %v841
        %1323 = vmatmul.mubr.f32.gmra.mrb[0].mxu0 %v840
        %v1324 = vpop.f32.mrb[0].mxu0
        %v1325 = vadd.f32 %v1165, %v1324
        %v1326 = vpop.f32.mrb[0].mxu0
        %1327 = vdwg.mxu0
        %1328 = vmatprep.subr.mxu0 0.0
        %1329 = vmatpush1.msra.mxu0 %v909
        %1330 = vmatprep.subr.mxu0 0.0
        %1331 = vmatpush1.msra.mxu0 %v910
        %1332 = vmatprep.subr.mxu0 0.0
        %1333 = vmatpush1.msra.mxu0 %v911
        %1334 = vmatprep.subr.mxu0 0.0
        %1335 = vmatpush1.msra.mxu0 %v912
        %1336 = vmatprep.subr.mxu0 0.0
        %1337 = vmatpush1.msra.mxu0 %v913
        %1338 = vmatprep.subr.mxu0 0.0
        %1339 = vmatpush1.msra.mxu0 %v914
        %1340 = vmatprep.subr.mxu0 0.0
        %1341 = vmatpush1.msra.mxu0 %v915
        %1342 = vmatprep.subr.mxu0 0.0
        %1343 = vmatpush1.msra.mxu0 %v916
        %1344 = vmatprep.subr.mxu0 0.0
        %1345 = vmatpush1.msra.mxu0 %v917
        %1346 = vmatprep.subr.mxu0 0.0
        %1347 = vmatpush1.msra.mxu0 %v918
        %1348 = vmatprep.subr.mxu0 0.0
        %1349 = vmatpush1.msra.mxu0 %v919
        %1350 = vmatprep.subr.mxu0 0.0
        %1351 = vmatpush1.msra.mxu0 %v920
        %1352 = vmatprep.subr.mxu0 0.0
        %1353 = vmatpush1.msra.mxu0 %v921
        %1354 = vmatprep.subr.mxu0 0.0
        %1355 = vmatpush1.msra.mxu0 %v922
        %1356 = vmatprep.subr.mxu0 0.0
        %1357 = vmatpush1.msra.mxu0 %v923
        %1358 = vmatprep.subr.mxu0 0.0
        %1359 = vmatpush1.msra.mxu0 %v924
        %1360 = vmatprep.subr.mxu0 0.0
        %1361 = vmatpush1.msra.mxu0 %v925
        %1362 = vmatprep.subr.mxu0 0.0
        %1363 = vmatpush1.msra.mxu0 %v926
        %1364 = vmatprep.subr.mxu0 0.0
        %1365 = vmatpush1.msra.mxu0 %v927
        %1366 = vmatprep.subr.mxu0 0.0
        %1367 = vmatpush1.msra.mxu0 %v928
        %1368 = vmatprep.subr.mxu0 0.0
        %1369 = vmatpush1.msra.mxu0 %v929
        %1370 = vmatprep.subr.mxu0 0.0
        %1371 = vmatpush1.msra.mxu0 %v930
        %1372 = vmatprep.subr.mxu0 0.0
        %1373 = vmatpush1.msra.mxu0 %v931
        %1374 = vmatprep.subr.mxu0 0.0
        %1375 = vmatpush1.msra.mxu0 %v932
        %1376 = vmatprep.subr.mxu0 0.0
        %1377 = vmatpush1.msra.mxu0 %v933
        %1378 = vmatprep.subr.mxu0 0.0
        %1379 = vmatpush1.msra.mxu0 %v934
        %1380 = vmatprep.subr.mxu0 0.0
        %1381 = vmatpush1.msra.mxu0 %v935
        %1382 = vmatprep.subr.mxu0 0.0
        %1383 = vmatpush1.msra.mxu0 %v936
        %1384 = vmatprep.subr.mxu0 0.0
        %1385 = vmatpush1.msra.mxu0 %v937
        %1386 = vmatprep.subr.mxu0 0.0
        %1387 = vmatpush1.msra.mxu0 %v938
        %1388 = vmatprep.subr.mxu0 0.0
        %1389 = vmatpush1.msra.mxu0 %v939
        %1390 = vmatprep.subr.mxu0 0.0
        %1391 = vmatpush1.msra.mxu0 %v940
        %1392 = vmatprep.mubr.f32.mxu0 %v717
        %1393 = vmatmul.mubr.f32.gmra.mrb[0].mxu0 %v716
        %v1394 = vpop.f32.mrb[0].mxu0
        %v1395 = vadd.f32 %v1235, %v1394
        %v1396 = vpop.f32.mrb[0].mxu0
        %1397 = vmatprep.mubr.f32.mxu0 %v724
        %1398 = vmatmul.mubr.f32.gmra.mrb[0].mxu0 %v723
        %v1399 = vpop.f32.mrb[0].mxu0
        %v1400 = vadd.f32 %v1240, %v1399
        %v1401 = vpop.f32.mrb[0].mxu0
        %1402 = vmatprep.mubr.f32.mxu0 %v731
        %1403 = vmatmul.mubr.f32.gmra.mrb[0].mxu0 %v730
        %v1404 = vpop.f32.mrb[0].mxu0
        %v1405 = vadd.f32 %v1245, %v1404
        %v1406 = vpop.f32.mrb[0].mxu0
        %1407 = vmatprep.mubr.f32.mxu0 %v738
        %1408 = vmatmul.mubr.f32.gmra.mrb[0].mxu0 %v737
        %v1409 = vpop.f32.mrb[0].mxu0
        %v1410 = vadd.f32 %v1250, %v1409
        %v1411 = vpop.f32.mrb[0].mxu0
        %1412 = vmatprep.mubr.f32.mxu0 %v745
        %1413 = vmatmul.mubr.f32.gmra.mrb[0].mxu0 %v744
        %v1414 = vpop.f32.mrb[0].mxu0
        %v1415 = vadd.f32 %v1255, %v1414
        %v1416 = vpop.f32.mrb[0].mxu0
        %1417 = vmatprep.mubr.f32.mxu0 %v752
        %1418 = vmatmul.mubr.f32.gmra.mrb[0].mxu0 %v751
        %v1419 = vpop.f32.mrb[0].mxu0
        %v1420 = vadd.f32 %v1260, %v1419
        %v1421 = vpop.f32.mrb[0].mxu0
        %1422 = vmatprep.mubr.f32.mxu0 %v759
        %1423 = vmatmul.mubr.f32.gmra.mrb[0].mxu0 %v758
        %v1424 = vpop.f32.mrb[0].mxu0
        %v1425 = vadd.f32 %v1265, %v1424
        %v1426 = vpop.f32.mrb[0].mxu0
        %1427 = vmatprep.mubr.f32.mxu0 %v766
        %1428 = vmatmul.mubr.f32.gmra.mrb[0].mxu0 %v765
        %v1429 = vpop.f32.mrb[0].mxu0
        %v1430 = vadd.f32 %v1270, %v1429
        %v1431 = vpop.f32.mrb[0].mxu0
        %1432 = vmatprep.mubr.f32.mxu0 %v773
        %1433 = vmatmul.mubr.f32.gmra.mrb[0].mxu0 %v772
        %v1434 = vpop.f32.mrb[0].mxu0
        %v1435 = vadd.f32 %v1275, %v1434
        %v1436 = vpop.f32.mrb[0].mxu0
        %1437 = vmatprep.mubr.f32.mxu0 %v780
        %1438 = vmatmul.mubr.f32.gmra.mrb[0].mxu0 %v779
        %v1439 = vpop.f32.mrb[0].mxu0
        %v1440 = vadd.f32 %v1280, %v1439
        %v1441 = vpop.f32.mrb[0].mxu0
        %1442 = vmatprep.mubr.f32.mxu0 %v787
        %1443 = vmatmul.mubr.f32.gmra.mrb[0].mxu0 %v786
        %v1444 = vpop.f32.mrb[0].mxu0
        %v1445 = vadd.f32 %v1285, %v1444
        %v1446 = vpop.f32.mrb[0].mxu0
        %1447 = vmatprep.mubr.f32.mxu0 %v794
        %1448 = vmatmul.mubr.f32.gmra.mrb[0].mxu0 %v793
        %v1449 = vpop.f32.mrb[0].mxu0
        %v1450 = vadd.f32 %v1290, %v1449
        %v1451 = vpop.f32.mrb[0].mxu0
        %1452 = vmatprep.mubr.f32.mxu0 %v801
        %1453 = vmatmul.mubr.f32.gmra.mrb[0].mxu0 %v800
        %v1454 = vpop.f32.mrb[0].mxu0
        %v1455 = vadd.f32 %v1295, %v1454
        %v1456 = vpop.f32.mrb[0].mxu0
        %1457 = vmatprep.mubr.f32.mxu0 %v808
        %1458 = vmatmul.mubr.f32.gmra.mrb[0].mxu0 %v807
        %v1459 = vpop.f32.mrb[0].mxu0
        %v1460 = vadd.f32 %v1300, %v1459
        %v1461 = vpop.f32.mrb[0].mxu0
        %1462 = vmatprep.mubr.f32.mxu0 %v815
        %1463 = vmatmul.mubr.f32.gmra.mrb[0].mxu0 %v814
        %v1464 = vpop.f32.mrb[0].mxu0
        %v1465 = vadd.f32 %v1305, %v1464
        %v1466 = vpop.f32.mrb[0].mxu0
        %1467 = vmatprep.mubr.f32.mxu0 %v822
        %1468 = vmatmul.mubr.f32.gmra.mrb[0].mxu0 %v821
        %v1469 = vpop.f32.mrb[0].mxu0
        %v1470 = vadd.f32 %v1310, %v1469
        %v1471 = vpop.f32.mrb[0].mxu0
        %1472 = vmatprep.mubr.f32.mxu0 %v829
        %1473 = vmatmul.mubr.f32.gmra.mrb[0].mxu0 %v828
        %v1474 = vpop.f32.mrb[0].mxu0
        %v1475 = vadd.f32 %v1315, %v1474
        %v1476 = vpop.f32.mrb[0].mxu0
        %1477 = vmatprep.mubr.f32.mxu0 %v836
        %1478 = vmatmul.mubr.f32.gmra.mrb[0].mxu0 %v835
        %v1479 = vpop.f32.mrb[0].mxu0
        %v1480 = vadd.f32 %v1320, %v1479
        %v1481 = vpop.f32.mrb[0].mxu0
        %1482 = vmatprep.mubr.f32.mxu0 %v843
        %1483 = vmatmul.mubr.f32.gmra.mrb[0].mxu0 %v842
        %v1484 = vpop.f32.mrb[0].mxu0
        %v1485 = vadd.f32 %v1325, %v1484
        %v1486 = vpop.f32.mrb[0].mxu0
        %1487 = vdwg.mxu0
        %1488 = vmatprep.subr.mxu0 0.0
        %1489 = vmatpush1.msra.mxu0 %v941
        %1490 = vmatprep.subr.mxu0 0.0
        %1491 = vmatpush1.msra.mxu0 %v942
        %1492 = vmatprep.subr.mxu0 0.0
        %1493 = vmatpush1.msra.mxu0 0.0
        %1494 = vmatprep.subr.mxu0 0.0
        %1495 = vmatpush1.msra.mxu0 0.0
        %1496 = vmatprep.subr.mxu0 0.0
        %1497 = vmatpush1.msra.mxu0 0.0
        %1498 = vmatprep.subr.mxu0 0.0
        %1499 = vmatpush1.msra.mxu0 0.0
        %1500 = vmatprep.subr.mxu0 0.0
        %1501 = vmatpush1.msra.mxu0 0.0
        %1502 = vmatprep.subr.mxu0 0.0
        %1503 = vmatpush1.msra.mxu0 0.0
        %1504 = vmatprep.subr.mxu0 0.0
        %1505 = vmatpush1.msra.mxu0 0.0
        %1506 = vmatprep.subr.mxu0 0.0
        %1507 = vmatpush1.msra.mxu0 0.0
        %1508 = vmatprep.subr.mxu0 0.0
        %1509 = vmatpush1.msra.mxu0 0.0
        %1510 = vmatprep.subr.mxu0 0.0
        %1511 = vmatpush1.msra.mxu0 0.0
        %1512 = vmatprep.subr.mxu0 0.0
        %1513 = vmatpush1.msra.mxu0 0.0
        %1514 = vmatprep.subr.mxu0 0.0
        %1515 = vmatpush1.msra.mxu0 0.0
        %1516 = vmatprep.subr.mxu0 0.0
        %1517 = vmatpush1.msra.mxu0 0.0
        %1518 = vmatprep.subr.mxu0 0.0
        %1519 = vmatpush1.msra.mxu0 0.0
        %1520 = vmatprep.subr.mxu0 0.0
        %1521 = vmatpush1.msra.mxu0 0.0
        %1522 = vmatprep.subr.mxu0 0.0
        %1523 = vmatpush1.msra.mxu0 0.0
        %1524 = vmatprep.subr.mxu0 0.0
        %1525 = vmatpush1.msra.mxu0 0.0
        %1526 = vmatprep.subr.mxu0 0.0
        %1527 = vmatpush1.msra.mxu0 0.0
        %1528 = vmatprep.subr.mxu0 0.0
        %1529 = vmatpush1.msra.mxu0 0.0
        %1530 = vmatprep.subr.mxu0 0.0
        %1531 = vmatpush1.msra.mxu0 0.0
        %1532 = vmatprep.subr.mxu0 0.0
        %1533 = vmatpush1.msra.mxu0 0.0
        %1534 = vmatprep.subr.mxu0 0.0
        %1535 = vmatpush1.msra.mxu0 0.0
        %1536 = vmatprep.subr.mxu0 0.0
        %1537 = vmatpush1.msra.mxu0 0.0
        %1538 = vmatprep.subr.mxu0 0.0
        %1539 = vmatpush1.msra.mxu0 0.0
        %1540 = vmatprep.subr.mxu0 0.0
        %1541 = vmatpush1.msra.mxu0 0.0
        %1542 = vmatprep.subr.mxu0 0.0
        %1543 = vmatpush1.msra.mxu0 0.0
        %1544 = vmatprep.subr.mxu0 0.0
        %1545 = vmatpush1.msra.mxu0 0.0
        %1546 = vmatprep.subr.mxu0 0.0
        %1547 = vmatpush1.msra.mxu0 0.0
        %1548 = vmatprep.subr.mxu0 0.0
        %1549 = vmatpush1.msra.mxu0 0.0
        %1550 = vmatprep.subr.mxu0 0.0
        %1551 = vmatpush1.msra.mxu0 0.0
        %1552 = vmatprep.mubr.f32.mxu0 0.0
        %1553 = vmatmul.mubr.f32.gmra.mrb[0].mxu0 %v952
        %v1554 = vpop.f32.mrb[0].mxu0
        %v1555 = vadd.f32 %v1395, %v1554
        %v1556 = vpop.f32.mrb[0].mxu0
        %1557 = vmatprep.mubr.f32.mxu0 0.0
        %1558 = vmatmul.mubr.f32.gmra.mrb[0].mxu0 %v955
        %v1559 = vpop.f32.mrb[0].mxu0
        %v1560 = vadd.f32 %v1400, %v1559
        %v1561 = vpop.f32.mrb[0].mxu0
        %1562 = vmatprep.mubr.f32.mxu0 0.0
        %1563 = vmatmul.mubr.f32.gmra.mrb[0].mxu0 %v958
        %v1564 = vpop.f32.mrb[0].mxu0
        %v1565 = vadd.f32 %v1405, %v1564
        %v1566 = vpop.f32.mrb[0].mxu0
        %1567 = vmatprep.mubr.f32.mxu0 0.0
        %1568 = vmatmul.mubr.f32.gmra.mrb[0].mxu0 %v961
        %v1569 = vpop.f32.mrb[0].mxu0
        %v1570 = vadd.f32 %v1410, %v1569
        %v1571 = vpop.f32.mrb[0].mxu0
        %1572 = vmatprep.mubr.f32.mxu0 0.0
        %1573 = vmatmul.mubr.f32.gmra.mrb[0].mxu0 %v964
        %v1574 = vpop.f32.mrb[0].mxu0
        %v1575 = vadd.f32 %v1415, %v1574
        %v1576 = vpop.f32.mrb[0].mxu0
        %1577 = vmatprep.mubr.f32.mxu0 0.0
        %1578 = vmatmul.mubr.f32.gmra.mrb[0].mxu0 %v967
        %v1579 = vpop.f32.mrb[0].mxu0
        %v1580 = vadd.f32 %v1420, %v1579
        %v1581 = vpop.f32.mrb[0].mxu0
        %1582 = vmatprep.mubr.f32.mxu0 0.0
        %1583 = vmatmul.mubr.f32.gmra.mrb[0].mxu0 %v970
        %v1584 = vpop.f32.mrb[0].mxu0
        %v1585 = vadd.f32 %v1425, %v1584
        %v1586 = vpop.f32.mrb[0].mxu0
        %1587 = vmatprep.mubr.f32.mxu0 0.0
        %1588 = vmatmul.mubr.f32.gmra.mrb[0].mxu0 %v973
        %v1589 = vpop.f32.mrb[0].mxu0
        %v1590 = vadd.f32 %v1430, %v1589
        %v1591 = vpop.f32.mrb[0].mxu0
        %1592 = vmatprep.mubr.f32.mxu0 0.0
        %1593 = vmatmul.mubr.f32.gmra.mrb[0].mxu0 %v976
        %v1594 = vpop.f32.mrb[0].mxu0
        %v1595 = vadd.f32 %v1435, %v1594
        %v1596 = vpop.f32.mrb[0].mxu0
        %1597 = vmatprep.mubr.f32.mxu0 0.0
        %1598 = vmatmul.mubr.f32.gmra.mrb[0].mxu0 %v979
        %v1599 = vpop.f32.mrb[0].mxu0
        %v1600 = vadd.f32 %v1440, %v1599
        %v1601 = vpop.f32.mrb[0].mxu0
        %1602 = vmatprep.mubr.f32.mxu0 0.0
        %1603 = vmatmul.mubr.f32.gmra.mrb[0].mxu0 %v982
        %v1604 = vpop.f32.mrb[0].mxu0
        %v1605 = vadd.f32 %v1445, %v1604
        %v1606 = vpop.f32.mrb[0].mxu0
        %1607 = vmatprep.mubr.f32.mxu0 0.0
        %1608 = vmatmul.mubr.f32.gmra.mrb[0].mxu0 %v985
        %v1609 = vpop.f32.mrb[0].mxu0
        %v1610 = vadd.f32 %v1450, %v1609
        %v1611 = vpop.f32.mrb[0].mxu0
        %1612 = vmatprep.mubr.f32.mxu0 0.0
        %1613 = vmatmul.mubr.f32.gmra.mrb[0].mxu0 %v988
        %v1614 = vpop.f32.mrb[0].mxu0
        %v1615 = vadd.f32 %v1455, %v1614
        %v1616 = vpop.f32.mrb[0].mxu0
        %1617 = vmatprep.mubr.f32.mxu0 0.0
        %1618 = vmatmul.mubr.f32.gmra.mrb[0].mxu0 %v991
        %v1619 = vpop.f32.mrb[0].mxu0
        %v1620 = vadd.f32 %v1460, %v1619
        %v1621 = vpop.f32.mrb[0].mxu0
        %1622 = vmatprep.mubr.f32.mxu0 0.0
        %1623 = vmatmul.mubr.f32.gmra.mrb[0].mxu0 %v994
        %v1624 = vpop.f32.mrb[0].mxu0
        %v1625 = vadd.f32 %v1465, %v1624
        %v1626 = vpop.f32.mrb[0].mxu0
        %1627 = vmatprep.mubr.f32.mxu0 0.0
        %1628 = vmatmul.mubr.f32.gmra.mrb[0].mxu0 %v997
        %v1629 = vpop.f32.mrb[0].mxu0
        %v1630 = vadd.f32 %v1470, %v1629
        %v1631 = vpop.f32.mrb[0].mxu0
        %1632 = vmatprep.mubr.f32.mxu0 0.0
        %1633 = vmatmul.mubr.f32.gmra.mrb[0].mxu0 %v1000
        %v1634 = vpop.f32.mrb[0].mxu0
        %v1635 = vadd.f32 %v1475, %v1634
        %v1636 = vpop.f32.mrb[0].mxu0
        %1637 = vmatprep.mubr.f32.mxu0 0.0
        %1638 = vmatmul.mubr.f32.gmra.mrb[0].mxu0 %v1003
        %v1639 = vpop.f32.mrb[0].mxu0
        %v1640 = vadd.f32 %v1480, %v1639
        %v1641 = vpop.f32.mrb[0].mxu0
        %1642 = vmatprep.mubr.f32.mxu0 0.0
        %1643 = vmatmul.mubr.f32.gmra.mrb[0].mxu0 %v1006
        %v1644 = vpop.f32.mrb[0].mxu0
        %v1645 = vadd.f32 %v1485, %v1644
        %v1646 = vpop.f32.mrb[0].mxu0
        %1647 = vdwg.mxu0
        %v1648 = vmax.f32 %v1555, 0.0
        %v1649 = vmax.f32 %v1560, 0.0
        %v1650 = vmax.f32 %v1565, 0.0
        %v1651 = vmax.f32 %v1570, 0.0
        %v1652 = vmax.f32 %v1575, 0.0
        %v1653 = vmax.f32 %v1580, 0.0
        %v1654 = vmax.f32 %v1585, 0.0
        %v1655 = vmax.f32 %v1590, 0.0
        %v1656 = vmax.f32 %v1595, 0.0
        %v1657 = vmax.f32 %v1600, 0.0
        %v1658 = vmax.f32 %v1605, 0.0
        %v1659 = vmax.f32 %v1610, 0.0
        %v1660 = vmax.f32 %v1615, 0.0
        %v1661 = vmax.f32 %v1620, 0.0
        %v1662 = vmax.f32 %v1625, 0.0
        %v1663 = vmax.f32 %v1630, 0.0
        %v1664 = vmax.f32 %v1635, 0.0
        %v1665 = vmax.f32 %v1640, 0.0
        %v1666 = vmax.f32 %v1645, 0.0
        %v1667 = vld [vmem:[%s3] sm:$0xff]
        %v1668 = vld [vmem:[%s3 + $0x8] sm:$0xff]
        %v1669 = vld [vmem:[%s3 + $0x10] sm:$0xff]
        %v1670 = vld [vmem:[%s3 + $0x18] sm:$0xff]
        %v1671 = vld [vmem:[%s3 + $0x20] sm:$0xff]
        %v1672 = vld [vmem:[%s3 + $0x28] sm:$0xff]
        %v1673 = vld [vmem:[%s3 + $0x30] sm:$0xff]
        %v1674 = vld [vmem:[%s3 + $0x38] sm:$0xff]
        %v1675 = vld [vmem:[%s3 + $0x40] sm:$0xff]
        %v1676 = vld [vmem:[%s3 + $0x48] sm:$0xff]
        %v1677 = vld [vmem:[%s3 + $0x50] sm:$0xff]
        %v1678 = vld [vmem:[%s3 + $0x58] sm:$0xff]
        %v1679 = vld [vmem:[%s3 + $0x60] sm:$0xff]
        %v1680 = vld [vmem:[%s3 + $0x68] sm:$0xff]
        %v1681 = vld [vmem:[%s3 + $0x70] sm:$0xff]
        %v1682 = vld [vmem:[%s3 + $0x78] sm:$0xff]
        %v1683 = vld [vmem:[#allocation7] sm:$0x1]
        %v1685 = vlaneseq
        %v1686 = vshrl.u32 %v1685, 7
        %v1687 = vsub.s32 0, %v1686
        %v1688 = vrot.slane %v1683, %v1687
        %1690 = vmatprep.subr.mxu0 0.0
        %1691 = vmatpush1.msra.mxu0 %v1667
        %1692 = vmatprep.subr.mxu0 0.0
        %1693 = vmatpush1.msra.mxu0 %v1668
        %1694 = vmatprep.subr.mxu0 0.0
        %1695 = vmatpush1.msra.mxu0 %v1669
        %1696 = vmatprep.subr.mxu0 0.0
        %1697 = vmatpush1.msra.mxu0 %v1670
        %1698 = vmatprep.subr.mxu0 0.0
        %1699 = vmatpush1.msra.mxu0 %v1671
        %1700 = vmatprep.subr.mxu0 0.0
        %1701 = vmatpush1.msra.mxu0 %v1672
        %1702 = vmatprep.subr.mxu0 0.0
        %1703 = vmatpush1.msra.mxu0 %v1673
        %1704 = vmatprep.subr.mxu0 0.0
        %1705 = vmatpush1.msra.mxu0 %v1674
        %1706 = vmatprep.subr.mxu0 0.0
        %1707 = vmatpush1.msra.mxu0 %v1675
        %1708 = vmatprep.subr.mxu0 0.0
        %1709 = vmatpush1.msra.mxu0 %v1676
        %1710 = vmatprep.subr.mxu0 0.0
        %1711 = vmatpush1.msra.mxu0 %v1677
        %1712 = vmatprep.subr.mxu0 0.0
        %1713 = vmatpush1.msra.mxu0 %v1678
        %1714 = vmatprep.subr.mxu0 0.0
        %1715 = vmatpush1.msra.mxu0 %v1679
        %1716 = vmatprep.subr.mxu0 0.0
        %1717 = vmatpush1.msra.mxu0 %v1680
        %1718 = vmatprep.subr.mxu0 0.0
        %1719 = vmatpush1.msra.mxu0 %v1681
        %1720 = vmatprep.subr.mxu0 0.0
        %1721 = vmatpush1.msra.mxu0 %v1682
        %1722 = vmatprep.subr.mxu0 0.0
        %1723 = vmatpush1.msra.mxu0 0.0
        %1724 = vmatprep.subr.mxu0 0.0
        %1725 = vmatpush1.msra.mxu0 0.0
        %1726 = vmatprep.subr.mxu0 0.0
        %1727 = vmatpush1.msra.mxu0 0.0
        %1728 = vmatprep.subr.mxu0 0.0
        %1729 = vmatpush1.msra.mxu0 0.0
        %1730 = vmatprep.subr.mxu0 0.0
        %1731 = vmatpush1.msra.mxu0 0.0
        %1732 = vmatprep.subr.mxu0 0.0
        %1733 = vmatpush1.msra.mxu0 0.0
        %1734 = vmatprep.subr.mxu0 0.0
        %1735 = vmatpush1.msra.mxu0 0.0
        %1736 = vmatprep.subr.mxu0 0.0
        %1737 = vmatpush1.msra.mxu0 0.0
        %1738 = vmatprep.subr.mxu0 0.0
        %1739 = vmatpush1.msra.mxu0 0.0
        %1740 = vmatprep.subr.mxu0 0.0
        %1741 = vmatpush1.msra.mxu0 0.0
        %1742 = vmatprep.subr.mxu0 0.0
        %1743 = vmatpush1.msra.mxu0 0.0
        %1744 = vmatprep.subr.mxu0 0.0
        %1745 = vmatpush1.msra.mxu0 0.0
        %1746 = vmatprep.subr.mxu0 0.0
        %1747 = vmatpush1.msra.mxu0 0.0
        %1748 = vmatprep.subr.mxu0 0.0
        %1749 = vmatpush1.msra.mxu0 0.0
        %1750 = vmatprep.subr.mxu0 0.0
        %1751 = vmatpush1.msra.mxu0 0.0
        %1752 = vmatprep.subr.mxu0 0.0
        %1753 = vmatpush1.msra.mxu0 0.0
        %1754 = vmatprep.mubr.f32.mxu0 0.0
        %1755 = vmatmul.mubr.f32.gmra.mrb[0].mxu0 %v1648
        %v1756 = vpop.f32.mrb[0].mxu0
        %v1757 = vadd.f32 %v1688, %v1756
        %v1758 = vpop.f32.mrb[0].mxu0
        %1759 = vmatprep.mubr.f32.mxu0 0.0
        %1760 = vmatmul.mubr.f32.gmra.mrb[0].mxu0 %v1649
        %v1761 = vpop.f32.mrb[0].mxu0
        %v1762 = vadd.f32 %v1688, %v1761
        %v1763 = vpop.f32.mrb[0].mxu0
        %1764 = vmatprep.mubr.f32.mxu0 0.0
        %1765 = vmatmul.mubr.f32.gmra.mrb[0].mxu0 %v1650
        %v1766 = vpop.f32.mrb[0].mxu0
        %v1767 = vadd.f32 %v1688, %v1766
        %v1768 = vpop.f32.mrb[0].mxu0
        %1769 = vmatprep.mubr.f32.mxu0 0.0
        %1770 = vmatmul.mubr.f32.gmra.mrb[0].mxu0 %v1651
        %v1771 = vpop.f32.mrb[0].mxu0
        %v1772 = vadd.f32 %v1688, %v1771
        %v1773 = vpop.f32.mrb[0].mxu0
        %1774 = vmatprep.mubr.f32.mxu0 0.0
        %1775 = vmatmul.mubr.f32.gmra.mrb[0].mxu0 %v1652
        %v1776 = vpop.f32.mrb[0].mxu0
        %v1777 = vadd.f32 %v1688, %v1776
        %v1778 = vpop.f32.mrb[0].mxu0
        %1779 = vmatprep.mubr.f32.mxu0 0.0
        %1780 = vmatmul.mubr.f32.gmra.mrb[0].mxu0 %v1653
        %v1781 = vpop.f32.mrb[0].mxu0
        %v1782 = vadd.f32 %v1688, %v1781
        %v1783 = vpop.f32.mrb[0].mxu0
        %1784 = vmatprep.mubr.f32.mxu0 0.0
        %1785 = vmatmul.mubr.f32.gmra.mrb[0].mxu0 %v1654
        %v1786 = vpop.f32.mrb[0].mxu0
        %v1787 = vadd.f32 %v1688, %v1786
        %v1788 = vpop.f32.mrb[0].mxu0
        %1789 = vmatprep.mubr.f32.mxu0 0.0
        %1790 = vmatmul.mubr.f32.gmra.mrb[0].mxu0 %v1655
        %v1791 = vpop.f32.mrb[0].mxu0
        %v1792 = vadd.f32 %v1688, %v1791
        %v1793 = vpop.f32.mrb[0].mxu0
        %1794 = vmatprep.mubr.f32.mxu0 0.0
        %1795 = vmatmul.mubr.f32.gmra.mrb[0].mxu0 %v1656
        %v1796 = vpop.f32.mrb[0].mxu0
        %v1797 = vadd.f32 %v1688, %v1796
        %v1798 = vpop.f32.mrb[0].mxu0
        %1799 = vmatprep.mubr.f32.mxu0 0.0
        %1800 = vmatmul.mubr.f32.gmra.mrb[0].mxu0 %v1657
        %v1801 = vpop.f32.mrb[0].mxu0
        %v1802 = vadd.f32 %v1688, %v1801
        %v1803 = vpop.f32.mrb[0].mxu0
        %1804 = vmatprep.mubr.f32.mxu0 0.0
        %1805 = vmatmul.mubr.f32.gmra.mrb[0].mxu0 %v1658
        %v1806 = vpop.f32.mrb[0].mxu0
        %v1807 = vadd.f32 %v1688, %v1806
        %v1808 = vpop.f32.mrb[0].mxu0
        %1809 = vmatprep.mubr.f32.mxu0 0.0
        %1810 = vmatmul.mubr.f32.gmra.mrb[0].mxu0 %v1659
        %v1811 = vpop.f32.mrb[0].mxu0
        %v1812 = vadd.f32 %v1688, %v1811
        %v1813 = vpop.f32.mrb[0].mxu0
        %1814 = vmatprep.mubr.f32.mxu0 0.0
        %1815 = vmatmul.mubr.f32.gmra.mrb[0].mxu0 %v1660
        %v1816 = vpop.f32.mrb[0].mxu0
        %v1817 = vadd.f32 %v1688, %v1816
        %v1818 = vpop.f32.mrb[0].mxu0
        %1819 = vmatprep.mubr.f32.mxu0 0.0
        %1820 = vmatmul.mubr.f32.gmra.mrb[0].mxu0 %v1661
        %v1821 = vpop.f32.mrb[0].mxu0
        %v1822 = vadd.f32 %v1688, %v1821
        %v1823 = vpop.f32.mrb[0].mxu0
        %1824 = vmatprep.mubr.f32.mxu0 0.0
        %1825 = vmatmul.mubr.f32.gmra.mrb[0].mxu0 %v1662
        %v1826 = vpop.f32.mrb[0].mxu0
        %v1827 = vadd.f32 %v1688, %v1826
        %v1828 = vpop.f32.mrb[0].mxu0
        %1829 = vmatprep.mubr.f32.mxu0 0.0
        %1830 = vmatmul.mubr.f32.gmra.mrb[0].mxu0 %v1663
        %v1831 = vpop.f32.mrb[0].mxu0
        %v1832 = vadd.f32 %v1688, %v1831
        %v1833 = vpop.f32.mrb[0].mxu0
        %1834 = vmatprep.mubr.f32.mxu0 0.0
        %1835 = vmatmul.mubr.f32.gmra.mrb[0].mxu0 %v1664
        %v1836 = vpop.f32.mrb[0].mxu0
        %v1837 = vadd.f32 %v1688, %v1836
        %v1838 = vpop.f32.mrb[0].mxu0
        %1839 = vmatprep.mubr.f32.mxu0 0.0
        %1840 = vmatmul.mubr.f32.gmra.mrb[0].mxu0 %v1665
        %v1841 = vpop.f32.mrb[0].mxu0
        %v1842 = vadd.f32 %v1688, %v1841
        %v1843 = vpop.f32.mrb[0].mxu0
        %1844 = vmatprep.mubr.f32.mxu0 0.0
        %1845 = vmatmul.mubr.f32.gmra.mrb[0].mxu0 %v1666
        %v1846 = vpop.f32.mrb[0].mxu0
        %v1847 = vadd.f32 %v1688, %v1846
        %v1848 = vpop.f32.mrb[0].mxu0
        %1849 = vdwg.mxu0
        %v1850 = vmax.f32 %v1757, 0.0
        %v1851 = vmax.f32 %v1762, 0.0
        %v1852 = vmax.f32 %v1767, 0.0
        %v1853 = vmax.f32 %v1772, 0.0
        %v1854 = vmax.f32 %v1777, 0.0
        %v1855 = vmax.f32 %v1782, 0.0
        %v1856 = vmax.f32 %v1787, 0.0
        %v1857 = vmax.f32 %v1792, 0.0
        %v1858 = vmax.f32 %v1797, 0.0
        %v1859 = vmax.f32 %v1802, 0.0
        %v1860 = vmax.f32 %v1807, 0.0
        %v1861 = vmax.f32 %v1812, 0.0
        %v1862 = vmax.f32 %v1817, 0.0
        %v1863 = vmax.f32 %v1822, 0.0
        %v1864 = vmax.f32 %v1827, 0.0
        %v1865 = vmax.f32 %v1832, 0.0
        %v1866 = vmax.f32 %v1837, 0.0
        %v1867 = vmax.f32 %v1842, 0.0
        %v1868 = vmax.f32 %v1847, 0.0
        %v1869 = vld [vmem:[%s5] sm:$0xff]
        %v1870 = vld [vmem:[%s5 + $0x8] sm:$0xff]
        %v1871 = vld [vmem:[%s5 + $0x10] sm:$0xff]
        %v1872 = vld [vmem:[%s5 + $0x18] sm:$0xff]
        %v1873 = vld [vmem:[%s5 + $0x20] sm:$0xff]
        %v1874 = vld [vmem:[%s5 + $0x28] sm:$0xff]
        %v1875 = vld [vmem:[%s5 + $0x30] sm:$0xff]
        %v1876 = vld [vmem:[%s5 + $0x38] sm:$0xff]
        %v1877 = vld [vmem:[#allocation8] sm:$0x1]
        %v1879 = vlaneseq
        %v1880 = vshrl.u32 %v1879, 7
        %v1881 = vsub.s32 0, %v1880
        %v1882 = vrot.slane %v1877, %v1881
        %vm1884 = vcmask 523264
        %v1886 = vsel %vm1884, %v1850, 0
        %v1889 = vsel %vm1884, %v1851, 0
        %v1892 = vsel %vm1884, %v1852, 0
        %v1895 = vsel %vm1884, %v1853, 0
        %v1898 = vsel %vm1884, %v1854, 0
        %v1901 = vsel %vm1884, %v1855, 0
        %v1904 = vsel %vm1884, %v1856, 0
        %v1907 = vsel %vm1884, %v1857, 0
        %v1910 = vsel %vm1884, %v1858, 0
        %v1913 = vsel %vm1884, %v1859, 0
        %v1916 = vsel %vm1884, %v1860, 0
        %v1919 = vsel %vm1884, %v1861, 0
        %v1922 = vsel %vm1884, %v1862, 0
        %v1925 = vsel %vm1884, %v1863, 0
        %v1928 = vsel %vm1884, %v1864, 0
        %v1931 = vsel %vm1884, %v1865, 0
        %v1934 = vsel %vm1884, %v1866, 0
        %v1937 = vsel %vm1884, %v1867, 0
        %v1940 = vsel %vm1884, %v1868, 0
        %1942 = vmatprep.subr.mxu0 0.0
        %1943 = vmatpush1.msra.mxu0 %v1869
        %1944 = vmatprep.subr.mxu0 0.0
        %1945 = vmatpush1.msra.mxu0 %v1870
        %1946 = vmatprep.subr.mxu0 0.0
        %1947 = vmatpush1.msra.mxu0 %v1871
        %1948 = vmatprep.subr.mxu0 0.0
        %1949 = vmatpush1.msra.mxu0 %v1872
        %1950 = vmatprep.subr.mxu0 0.0
        %1951 = vmatpush1.msra.mxu0 %v1873
        %1952 = vmatprep.subr.mxu0 0.0
        %1953 = vmatpush1.msra.mxu0 %v1874
        %1954 = vmatprep.subr.mxu0 0.0
        %1955 = vmatpush1.msra.mxu0 %v1875
        %1956 = vmatprep.subr.mxu0 0.0
        %1957 = vmatpush1.msra.mxu0 %v1876
        %1958 = vmatprep.subr.mxu0 0.0
        %1959 = vmatpush1.msra.mxu0 0.0
        %1960 = vmatprep.subr.mxu0 0.0
        %1961 = vmatpush1.msra.mxu0 0.0
        %1962 = vmatprep.subr.mxu0 0.0
        %1963 = vmatpush1.msra.mxu0 0.0
        %1964 = vmatprep.subr.mxu0 0.0
        %1965 = vmatpush1.msra.mxu0 0.0
        %1966 = vmatprep.subr.mxu0 0.0
        %1967 = vmatpush1.msra.mxu0 0.0
        %1968 = vmatprep.subr.mxu0 0.0
        %1969 = vmatpush1.msra.mxu0 0.0
        %1970 = vmatprep.subr.mxu0 0.0
        %1971 = vmatpush1.msra.mxu0 0.0
        %1972 = vmatprep.subr.mxu0 0.0
        %1973 = vmatpush1.msra.mxu0 0.0
        %1974 = vmatprep.subr.mxu0 0.0
        %1975 = vmatpush1.msra.mxu0 0.0
        %1976 = vmatprep.subr.mxu0 0.0
        %1977 = vmatpush1.msra.mxu0 0.0
        %1978 = vmatprep.subr.mxu0 0.0
        %1979 = vmatpush1.msra.mxu0 0.0
        %1980 = vmatprep.subr.mxu0 0.0
        %1981 = vmatpush1.msra.mxu0 0.0
        %1982 = vmatprep.subr.mxu0 0.0
        %1983 = vmatpush1.msra.mxu0 0.0
        %1984 = vmatprep.subr.mxu0 0.0
        %1985 = vmatpush1.msra.mxu0 0.0
        %1986 = vmatprep.subr.mxu0 0.0
        %1987 = vmatpush1.msra.mxu0 0.0
        %1988 = vmatprep.subr.mxu0 0.0
        %1989 = vmatpush1.msra.mxu0 0.0
        %1990 = vmatprep.subr.mxu0 0.0
        %1991 = vmatpush1.msra.mxu0 0.0
        %1992 = vmatprep.subr.mxu0 0.0
        %1993 = vmatpush1.msra.mxu0 0.0
        %1994 = vmatprep.subr.mxu0 0.0
        %1995 = vmatpush1.msra.mxu0 0.0
        %1996 = vmatprep.subr.mxu0 0.0
        %1997 = vmatpush1.msra.mxu0 0.0
        %1998 = vmatprep.subr.mxu0 0.0
        %1999 = vmatpush1.msra.mxu0 0.0
        %2000 = vmatprep.subr.mxu0 0.0
        %2001 = vmatpush1.msra.mxu0 0.0
        %2002 = vmatprep.subr.mxu0 0.0
        %2003 = vmatpush1.msra.mxu0 0.0
        %2004 = vmatprep.subr.mxu0 0.0
        %2005 = vmatpush1.msra.mxu0 0.0
        %2006 = vmatprep.mubr.f32.mxu0 0.0
        %2007 = vmatmul.mubr.f32.gmra.mrb[0].mxu0 %v1886
        %v2008 = vpop.f32.mrb[0].mxu0
        %v2009 = vadd.f32 %v1882, %v2008
        %v2010 = vpop.f32.mrb[0].mxu0
        %2011 = vmatprep.mubr.f32.mxu0 0.0
        %2012 = vmatmul.mubr.f32.gmra.mrb[0].mxu0 %v1889
        %v2013 = vpop.f32.mrb[0].mxu0
        %v2014 = vadd.f32 %v1882, %v2013
        %v2015 = vpop.f32.mrb[0].mxu0
        %2016 = vmatprep.mubr.f32.mxu0 0.0
        %2017 = vmatmul.mubr.f32.gmra.mrb[0].mxu0 %v1892
        %v2018 = vpop.f32.mrb[0].mxu0
        %v2019 = vadd.f32 %v1882, %v2018
        %v2020 = vpop.f32.mrb[0].mxu0
        %2021 = vmatprep.mubr.f32.mxu0 0.0
        %2022 = vmatmul.mubr.f32.gmra.mrb[0].mxu0 %v1895
        %v2023 = vpop.f32.mrb[0].mxu0
        %v2024 = vadd.f32 %v1882, %v2023
        %v2025 = vpop.f32.mrb[0].mxu0
        %2026 = vmatprep.mubr.f32.mxu0 0.0
        %2027 = vmatmul.mubr.f32.gmra.mrb[0].mxu0 %v1898
        %v2028 = vpop.f32.mrb[0].mxu0
        %v2029 = vadd.f32 %v1882, %v2028
        %v2030 = vpop.f32.mrb[0].mxu0
        %2031 = vmatprep.mubr.f32.mxu0 0.0
        %2032 = vmatmul.mubr.f32.gmra.mrb[0].mxu0 %v1901
        %v2033 = vpop.f32.mrb[0].mxu0
        %v2034 = vadd.f32 %v1882, %v2033
        %v2035 = vpop.f32.mrb[0].mxu0
        %2036 = vmatprep.mubr.f32.mxu0 0.0
        %2037 = vmatmul.mubr.f32.gmra.mrb[0].mxu0 %v1904
        %v2038 = vpop.f32.mrb[0].mxu0
        %v2039 = vadd.f32 %v1882, %v2038
        %v2040 = vpop.f32.mrb[0].mxu0
        %2041 = vmatprep.mubr.f32.mxu0 0.0
        %2042 = vmatmul.mubr.f32.gmra.mrb[0].mxu0 %v1907
        %v2043 = vpop.f32.mrb[0].mxu0
        %v2044 = vadd.f32 %v1882, %v2043
        %v2045 = vpop.f32.mrb[0].mxu0
        %2046 = vmatprep.mubr.f32.mxu0 0.0
        %2047 = vmatmul.mubr.f32.gmra.mrb[0].mxu0 %v1910
        %v2048 = vpop.f32.mrb[0].mxu0
        %v2049 = vadd.f32 %v1882, %v2048
        %v2050 = vpop.f32.mrb[0].mxu0
        %2051 = vmatprep.mubr.f32.mxu0 0.0
        %2052 = vmatmul.mubr.f32.gmra.mrb[0].mxu0 %v1913
        %v2053 = vpop.f32.mrb[0].mxu0
        %v2054 = vadd.f32 %v1882, %v2053
        %v2055 = vpop.f32.mrb[0].mxu0
        %2056 = vmatprep.mubr.f32.mxu0 0.0
        %2057 = vmatmul.mubr.f32.gmra.mrb[0].mxu0 %v1916
        %v2058 = vpop.f32.mrb[0].mxu0
        %v2059 = vadd.f32 %v1882, %v2058
        %v2060 = vpop.f32.mrb[0].mxu0
        %2061 = vmatprep.mubr.f32.mxu0 0.0
        %2062 = vmatmul.mubr.f32.gmra.mrb[0].mxu0 %v1919
        %v2063 = vpop.f32.mrb[0].mxu0
        %v2064 = vadd.f32 %v1882, %v2063
        %v2065 = vpop.f32.mrb[0].mxu0
        %2066 = vmatprep.mubr.f32.mxu0 0.0
        %2067 = vmatmul.mubr.f32.gmra.mrb[0].mxu0 %v1922
        %v2068 = vpop.f32.mrb[0].mxu0
        %v2069 = vadd.f32 %v1882, %v2068
        %v2070 = vpop.f32.mrb[0].mxu0
        %2071 = vmatprep.mubr.f32.mxu0 0.0
        %2072 = vmatmul.mubr.f32.gmra.mrb[0].mxu0 %v1925
        %v2073 = vpop.f32.mrb[0].mxu0
        %v2074 = vadd.f32 %v1882, %v2073
        %v2075 = vpop.f32.mrb[0].mxu0
        %2076 = vmatprep.mubr.f32.mxu0 0.0
        %2077 = vmatmul.mubr.f32.gmra.mrb[0].mxu0 %v1928
        %v2078 = vpop.f32.mrb[0].mxu0
        %v2079 = vadd.f32 %v1882, %v2078
        %v2080 = vpop.f32.mrb[0].mxu0
        %2081 = vmatprep.mubr.f32.mxu0 0.0
        %2082 = vmatmul.mubr.f32.gmra.mrb[0].mxu0 %v1931
        %v2083 = vpop.f32.mrb[0].mxu0
        %v2084 = vadd.f32 %v1882, %v2083
        %v2085 = vpop.f32.mrb[0].mxu0
        %2086 = vmatprep.mubr.f32.mxu0 0.0
        %2087 = vmatmul.mubr.f32.gmra.mrb[0].mxu0 %v1934
        %v2088 = vpop.f32.mrb[0].mxu0
        %v2089 = vadd.f32 %v1882, %v2088
        %v2090 = vpop.f32.mrb[0].mxu0
        %2091 = vmatprep.mubr.f32.mxu0 0.0
        %2092 = vmatmul.mubr.f32.gmra.mrb[0].mxu0 %v1937
        %v2093 = vpop.f32.mrb[0].mxu0
        %v2094 = vadd.f32 %v1882, %v2093
        %v2095 = vpop.f32.mrb[0].mxu0
        %2096 = vmatprep.mubr.f32.mxu0 0.0
        %2097 = vmatmul.mubr.f32.gmra.mrb[0].mxu0 %v1940
        %v2098 = vpop.f32.mrb[0].mxu0
        %v2099 = vadd.f32 %v1882, %v2098
        %v2100 = vpop.f32.mrb[0].mxu0
        %2101 = vdwg.mxu0
        %v2102 = vmax.f32 %v2009, 0.0
        %v2103 = vmax.f32 %v2014, 0.0
        %v2104 = vmax.f32 %v2019, 0.0
        %v2105 = vmax.f32 %v2024, 0.0
        %v2106 = vmax.f32 %v2029, 0.0
        %v2107 = vmax.f32 %v2034, 0.0
        %v2108 = vmax.f32 %v2039, 0.0
        %v2109 = vmax.f32 %v2044, 0.0
        %v2110 = vmax.f32 %v2049, 0.0
        %v2111 = vmax.f32 %v2054, 0.0
        %v2112 = vmax.f32 %v2059, 0.0
        %v2113 = vmax.f32 %v2064, 0.0
        %v2114 = vmax.f32 %v2069, 0.0
        %v2115 = vmax.f32 %v2074, 0.0
        %v2116 = vmax.f32 %v2079, 0.0
        %v2117 = vmax.f32 %v2084, 0.0
        %v2118 = vmax.f32 %v2089, 0.0
        %v2119 = vmax.f32 %v2094, 0.0
        %v2120 = vmax.f32 %v2099, 0.0
        %v2121 = vld [vmem:[%s7] sm:$0xff]
        %v2122 = vld [vmem:[%s7 + $0x8] sm:$0xf]
        %v2123 = vld [vmem:[#allocation10] sm:$0x1]
        %v2125 = vlaneseq
        %v2126 = vshrl.u32 %v2125, 7
        %v2127 = vsub.s32 0, %v2126
        %v2128 = vrot.slane %v2123, %v2127
        %vm2130 = vcmask 97280
        %v2132 = vsel %vm2130, %v2102, 0
        %v2135 = vsel %vm2130, %v2103, 0
        %v2138 = vsel %vm2130, %v2104, 0
        %v2141 = vsel %vm2130, %v2105, 0
        %v2144 = vsel %vm2130, %v2106, 0
        %v2147 = vsel %vm2130, %v2107, 0
        %v2150 = vsel %vm2130, %v2108, 0
        %v2153 = vsel %vm2130, %v2109, 0
        %v2156 = vsel %vm2130, %v2110, 0
        %v2159 = vsel %vm2130, %v2111, 0
        %v2162 = vsel %vm2130, %v2112, 0
        %v2165 = vsel %vm2130, %v2113, 0
        %v2168 = vsel %vm2130, %v2114, 0
        %v2171 = vsel %vm2130, %v2115, 0
        %v2174 = vsel %vm2130, %v2116, 0
        %v2177 = vsel %vm2130, %v2117, 0
        %v2180 = vsel %vm2130, %v2118, 0
        %v2183 = vsel %vm2130, %v2119, 0
        %v2186 = vsel %vm2130, %v2120, 0
        %vm2188 = vcmask 1043456
        %v2190 = vsel %vm2188, %v2122, 0
        %2192 = vmatprep.subr.mxu0 0.0
        %2193 = vmatpush1.msra.mxu0 %v2121
        %2194 = vmatprep.subr.mxu0 0.0
        %2195 = vmatpush1.msra.mxu0 %v2190
        %2196 = vmatprep.subr.mxu0 0.0
        %2197 = vmatpush1.msra.mxu0 0.0
        %2198 = vmatprep.subr.mxu0 0.0
        %2199 = vmatpush1.msra.mxu0 0.0
        %2200 = vmatprep.subr.mxu0 0.0
        %2201 = vmatpush1.msra.mxu0 0.0
        %2202 = vmatprep.subr.mxu0 0.0
        %2203 = vmatpush1.msra.mxu0 0.0
        %2204 = vmatprep.subr.mxu0 0.0
        %2205 = vmatpush1.msra.mxu0 0.0
        %2206 = vmatprep.subr.mxu0 0.0
        %2207 = vmatpush1.msra.mxu0 0.0
        %2208 = vmatprep.subr.mxu0 0.0
        %2209 = vmatpush1.msra.mxu0 0.0
        %2210 = vmatprep.subr.mxu0 0.0
        %2211 = vmatpush1.msra.mxu0 0.0
        %2212 = vmatprep.subr.mxu0 0.0
        %2213 = vmatpush1.msra.mxu0 0.0
        %2214 = vmatprep.subr.mxu0 0.0
        %2215 = vmatpush1.msra.mxu0 0.0
        %2216 = vmatprep.subr.mxu0 0.0
        %2217 = vmatpush1.msra.mxu0 0.0
        %2218 = vmatprep.subr.mxu0 0.0
        %2219 = vmatpush1.msra.mxu0 0.0
        %2220 = vmatprep.subr.mxu0 0.0
        %2221 = vmatpush1.msra.mxu0 0.0
        %2222 = vmatprep.subr.mxu0 0.0
        %2223 = vmatpush1.msra.mxu0 0.0
        %2224 = vmatprep.subr.mxu0 0.0
        %2225 = vmatpush1.msra.mxu0 0.0
        %2226 = vmatprep.subr.mxu0 0.0
        %2227 = vmatpush1.msra.mxu0 0.0
        %2228 = vmatprep.subr.mxu0 0.0
        %2229 = vmatpush1.msra.mxu0 0.0
        %2230 = vmatprep.subr.mxu0 0.0
        %2231 = vmatpush1.msra.mxu0 0.0
        %2232 = vmatprep.subr.mxu0 0.0
        %2233 = vmatpush1.msra.mxu0 0.0
        %2234 = vmatprep.subr.mxu0 0.0
        %2235 = vmatpush1.msra.mxu0 0.0
        %2236 = vmatprep.subr.mxu0 0.0
        %2237 = vmatpush1.msra.mxu0 0.0
        %2238 = vmatprep.subr.mxu0 0.0
        %2239 = vmatpush1.msra.mxu0 0.0
        %2240 = vmatprep.subr.mxu0 0.0
        %2241 = vmatpush1.msra.mxu0 0.0
        %2242 = vmatprep.subr.mxu0 0.0
        %2243 = vmatpush1.msra.mxu0 0.0
        %2244 = vmatprep.subr.mxu0 0.0
        %2245 = vmatpush1.msra.mxu0 0.0
        %2246 = vmatprep.subr.mxu0 0.0
        %2247 = vmatpush1.msra.mxu0 0.0
        %2248 = vmatprep.subr.mxu0 0.0
        %2249 = vmatpush1.msra.mxu0 0.0
        %2250 = vmatprep.subr.mxu0 0.0
        %2251 = vmatpush1.msra.mxu0 0.0
        %2252 = vmatprep.subr.mxu0 0.0
        %2253 = vmatpush1.msra.mxu0 0.0
        %2254 = vmatprep.subr.mxu0 0.0
        %2255 = vmatpush1.msra.mxu0 0.0
        %2256 = vmatprep.mubr.f32.mxu0 0.0
        %2257 = vmatmul.mubr.f32.gmra.mrb[0].mxu0 %v2132
        %v2258 = vpop.f32.mrb[0].mxu0
        %v2259 = vadd.f32 %v2128, %v2258
        %v2260 = vpop.f32.mrb[0].mxu0
        %2261 = vmatprep.mubr.f32.mxu0 0.0
        %2262 = vmatmul.mubr.f32.gmra.mrb[0].mxu0 %v2135
        %v2263 = vpop.f32.mrb[0].mxu0
        %v2264 = vadd.f32 %v2128, %v2263
        %v2265 = vpop.f32.mrb[0].mxu0
        %2266 = vmatprep.mubr.f32.mxu0 0.0
        %2267 = vmatmul.mubr.f32.gmra.mrb[0].mxu0 %v2138
        %v2268 = vpop.f32.mrb[0].mxu0
        %v2269 = vadd.f32 %v2128, %v2268
        %v2270 = vpop.f32.mrb[0].mxu0
        %2271 = vmatprep.mubr.f32.mxu0 0.0
        %2272 = vmatmul.mubr.f32.gmra.mrb[0].mxu0 %v2141
        %v2273 = vpop.f32.mrb[0].mxu0
        %v2274 = vadd.f32 %v2128, %v2273
        %v2275 = vpop.f32.mrb[0].mxu0
        %2276 = vmatprep.mubr.f32.mxu0 0.0
        %2277 = vmatmul.mubr.f32.gmra.mrb[0].mxu0 %v2144
        %v2278 = vpop.f32.mrb[0].mxu0
        %v2279 = vadd.f32 %v2128, %v2278
        %v2280 = vpop.f32.mrb[0].mxu0
        %2281 = vmatprep.mubr.f32.mxu0 0.0
        %2282 = vmatmul.mubr.f32.gmra.mrb[0].mxu0 %v2147
        %v2283 = vpop.f32.mrb[0].mxu0
        %v2284 = vadd.f32 %v2128, %v2283
        %v2285 = vpop.f32.mrb[0].mxu0
        %2286 = vmatprep.mubr.f32.mxu0 0.0
        %2287 = vmatmul.mubr.f32.gmra.mrb[0].mxu0 %v2150
        %v2288 = vpop.f32.mrb[0].mxu0
        %v2289 = vadd.f32 %v2128, %v2288
        %v2290 = vpop.f32.mrb[0].mxu0
        %2291 = vmatprep.mubr.f32.mxu0 0.0
        %2292 = vmatmul.mubr.f32.gmra.mrb[0].mxu0 %v2153
        %v2293 = vpop.f32.mrb[0].mxu0
        %v2294 = vadd.f32 %v2128, %v2293
        %v2295 = vpop.f32.mrb[0].mxu0
        %2296 = vmatprep.mubr.f32.mxu0 0.0
        %2297 = vmatmul.mubr.f32.gmra.mrb[0].mxu0 %v2156
        %v2298 = vpop.f32.mrb[0].mxu0
        %v2299 = vadd.f32 %v2128, %v2298
        %v2300 = vpop.f32.mrb[0].mxu0
        %2301 = vmatprep.mubr.f32.mxu0 0.0
        %2302 = vmatmul.mubr.f32.gmra.mrb[0].mxu0 %v2159
        %v2303 = vpop.f32.mrb[0].mxu0
        %v2304 = vadd.f32 %v2128, %v2303
        %v2305 = vpop.f32.mrb[0].mxu0
        %2306 = vmatprep.mubr.f32.mxu0 0.0
        %2307 = vmatmul.mubr.f32.gmra.mrb[0].mxu0 %v2162
        %v2308 = vpop.f32.mrb[0].mxu0
        %v2309 = vadd.f32 %v2128, %v2308
        %v2310 = vpop.f32.mrb[0].mxu0
        %2311 = vmatprep.mubr.f32.mxu0 0.0
        %2312 = vmatmul.mubr.f32.gmra.mrb[0].mxu0 %v2165
        %v2313 = vpop.f32.mrb[0].mxu0
        %v2314 = vadd.f32 %v2128, %v2313
        %v2315 = vpop.f32.mrb[0].mxu0
        %2316 = vmatprep.mubr.f32.mxu0 0.0
        %2317 = vmatmul.mubr.f32.gmra.mrb[0].mxu0 %v2168
        %v2318 = vpop.f32.mrb[0].mxu0
        %v2319 = vadd.f32 %v2128, %v2318
        %v2320 = vpop.f32.mrb[0].mxu0
        %2321 = vmatprep.mubr.f32.mxu0 0.0
        %2322 = vmatmul.mubr.f32.gmra.mrb[0].mxu0 %v2171
        %v2323 = vpop.f32.mrb[0].mxu0
        %v2324 = vadd.f32 %v2128, %v2323
        %v2325 = vpop.f32.mrb[0].mxu0
        %2326 = vmatprep.mubr.f32.mxu0 0.0
        %2327 = vmatmul.mubr.f32.gmra.mrb[0].mxu0 %v2174
        %v2328 = vpop.f32.mrb[0].mxu0
        %v2329 = vadd.f32 %v2128, %v2328
        %v2330 = vpop.f32.mrb[0].mxu0
        %2331 = vmatprep.mubr.f32.mxu0 0.0
        %2332 = vmatmul.mubr.f32.gmra.mrb[0].mxu0 %v2177
        %v2333 = vpop.f32.mrb[0].mxu0
        %v2334 = vadd.f32 %v2128, %v2333
        %v2335 = vpop.f32.mrb[0].mxu0
        %2336 = vmatprep.mubr.f32.mxu0 0.0
        %2337 = vmatmul.mubr.f32.gmra.mrb[0].mxu0 %v2180
        %v2338 = vpop.f32.mrb[0].mxu0
        %v2339 = vadd.f32 %v2128, %v2338
        %v2340 = vpop.f32.mrb[0].mxu0
        %2341 = vmatprep.mubr.f32.mxu0 0.0
        %2342 = vmatmul.mubr.f32.gmra.mrb[0].mxu0 %v2183
        %v2343 = vpop.f32.mrb[0].mxu0
        %v2344 = vadd.f32 %v2128, %v2343
        %v2345 = vpop.f32.mrb[0].mxu0
        %2346 = vmatprep.mubr.f32.mxu0 0.0
        %2347 = vmatmul.mubr.f32.gmra.mrb[0].mxu0 %v2186
        %v2348 = vpop.f32.mrb[0].mxu0
        %v2349 = vadd.f32 %v2128, %v2348
        %v2350 = vpop.f32.mrb[0].mxu0
        %2351 = vdwg.mxu0
        %v2352 = vmax.f32 %v2259, 0.0
        %v2353 = vmax.f32 %v2264, 0.0
        %v2354 = vmax.f32 %v2269, 0.0
        %v2355 = vmax.f32 %v2274, 0.0
        %v2356 = vmax.f32 %v2279, 0.0
        %v2357 = vmax.f32 %v2284, 0.0
        %v2358 = vmax.f32 %v2289, 0.0
        %v2359 = vmax.f32 %v2294, 0.0
        %v2360 = vmax.f32 %v2299, 0.0
        %v2361 = vmax.f32 %v2304, 0.0
        %v2362 = vmax.f32 %v2309, 0.0
        %v2363 = vmax.f32 %v2314, 0.0
        %v2364 = vmax.f32 %v2319, 0.0
        %v2365 = vmax.f32 %v2324, 0.0
        %v2366 = vmax.f32 %v2329, 0.0
        %v2367 = vmax.f32 %v2334, 0.0
        %v2368 = vmax.f32 %v2339, 0.0
        %v2369 = vmax.f32 %v2344, 0.0
        %v2370 = vmax.f32 %v2349, 0.0
        %v2371 = vld [vmem:[#allocation11] sm:$0x7]
        %v2372 = vld [vmem:[#allocation13] sm:$0x1]
        %v2374 = vlaneseq
        %v2375 = vshrl.u32 %v2374, 7
        %v2376 = vsub.s32 0, %v2375
        %v2377 = vrot.slane %v2372, %v2376
        %vm2379 = vcmask 23552
        %v2381 = vsel %vm2379, %v2352, 0
        %v2384 = vsel %vm2379, %v2353, 0
        %v2387 = vsel %vm2379, %v2354, 0
        %v2390 = vsel %vm2379, %v2355, 0
        %v2393 = vsel %vm2379, %v2356, 0
        %v2396 = vsel %vm2379, %v2357, 0
        %v2399 = vsel %vm2379, %v2358, 0
        %v2402 = vsel %vm2379, %v2359, 0
        %v2405 = vsel %vm2379, %v2360, 0
        %v2408 = vsel %vm2379, %v2361, 0
        %v2411 = vsel %vm2379, %v2362, 0
        %v2414 = vsel %vm2379, %v2363, 0
        %v2417 = vsel %vm2379, %v2364, 0
        %v2420 = vsel %vm2379, %v2365, 0
        %v2423 = vsel %vm2379, %v2366, 0
        %v2426 = vsel %vm2379, %v2367, 0
        %v2429 = vsel %vm2379, %v2368, 0
        %v2432 = vsel %vm2379, %v2369, 0
        %v2435 = vsel %vm2379, %v2370, 0
        %vm2437 = vcmask 1042432
        %v2439 = vsel %vm2437, %v2371, 0
        %2441 = vmatprep.subr.mxu0 0.0
        %2442 = vmatpush1.msra.mxu0 %v2439
        %2443 = vmatprep.subr.mxu0 0.0
        %2444 = vmatpush1.msra.mxu0 0.0
        %2445 = vmatprep.subr.mxu0 0.0
        %2446 = vmatpush1.msra.mxu0 0.0
        %2447 = vmatprep.subr.mxu0 0.0
        %2448 = vmatpush1.msra.mxu0 0.0
        %2449 = vmatprep.subr.mxu0 0.0
        %2450 = vmatpush1.msra.mxu0 0.0
        %2451 = vmatprep.subr.mxu0 0.0
        %2452 = vmatpush1.msra.mxu0 0.0
        %2453 = vmatprep.subr.mxu0 0.0
        %2454 = vmatpush1.msra.mxu0 0.0
        %2455 = vmatprep.subr.mxu0 0.0
        %2456 = vmatpush1.msra.mxu0 0.0
        %2457 = vmatprep.subr.mxu0 0.0
        %2458 = vmatpush1.msra.mxu0 0.0
        %2459 = vmatprep.subr.mxu0 0.0
        %2460 = vmatpush1.msra.mxu0 0.0
        %2461 = vmatprep.subr.mxu0 0.0
        %2462 = vmatpush1.msra.mxu0 0.0
        %2463 = vmatprep.subr.mxu0 0.0
        %2464 = vmatpush1.msra.mxu0 0.0
        %2465 = vmatprep.subr.mxu0 0.0
        %2466 = vmatpush1.msra.mxu0 0.0
        %2467 = vmatprep.subr.mxu0 0.0
        %2468 = vmatpush1.msra.mxu0 0.0
        %2469 = vmatprep.subr.mxu0 0.0
        %2470 = vmatpush1.msra.mxu0 0.0
        %2471 = vmatprep.subr.mxu0 0.0
        %2472 = vmatpush1.msra.mxu0 0.0
        %2473 = vmatprep.subr.mxu0 0.0
        %2474 = vmatpush1.msra.mxu0 0.0
        %2475 = vmatprep.subr.mxu0 0.0
        %2476 = vmatpush1.msra.mxu0 0.0
        %2477 = vmatprep.subr.mxu0 0.0
        %2478 = vmatpush1.msra.mxu0 0.0
        %2479 = vmatprep.subr.mxu0 0.0
        %2480 = vmatpush1.msra.mxu0 0.0
        %2481 = vmatprep.subr.mxu0 0.0
        %2482 = vmatpush1.msra.mxu0 0.0
        %2483 = vmatprep.subr.mxu0 0.0
        %2484 = vmatpush1.msra.mxu0 0.0
        %2485 = vmatprep.subr.mxu0 0.0
        %2486 = vmatpush1.msra.mxu0 0.0
        %2487 = vmatprep.subr.mxu0 0.0
        %2488 = vmatpush1.msra.mxu0 0.0
        %2489 = vmatprep.subr.mxu0 0.0
        %2490 = vmatpush1.msra.mxu0 0.0
        %2491 = vmatprep.subr.mxu0 0.0
        %2492 = vmatpush1.msra.mxu0 0.0
        %2493 = vmatprep.subr.mxu0 0.0
        %2494 = vmatpush1.msra.mxu0 0.0
        %2495 = vmatprep.subr.mxu0 0.0
        %2496 = vmatpush1.msra.mxu0 0.0
        %2497 = vmatprep.subr.mxu0 0.0
        %2498 = vmatpush1.msra.mxu0 0.0
        %2499 = vmatprep.subr.mxu0 0.0
        %2500 = vmatpush1.msra.mxu0 0.0
        %2501 = vmatprep.subr.mxu0 0.0
        %2502 = vmatpush1.msra.mxu0 0.0
        %2503 = vmatprep.subr.mxu0 0.0
        %2504 = vmatpush1.msra.mxu0 0.0
        %2505 = vmatprep.mubr.f32.mxu0 0.0
        %2506 = vmatmul.mubr.f32.gmra.mrb[0].mxu0 %v2381
        %v2507 = vpop.f32.mrb[0].mxu0
        %v2508 = vadd.f32 %v2377, %v2507
        %v2509 = vpop.f32.mrb[0].mxu0
        %2510 = vmatprep.mubr.f32.mxu0 0.0
        %2511 = vmatmul.mubr.f32.gmra.mrb[0].mxu0 %v2384
        %v2512 = vpop.f32.mrb[0].mxu0
        %v2513 = vadd.f32 %v2377, %v2512
        %v2514 = vpop.f32.mrb[0].mxu0
        %2515 = vmatprep.mubr.f32.mxu0 0.0
        %2516 = vmatmul.mubr.f32.gmra.mrb[0].mxu0 %v2387
        %v2517 = vpop.f32.mrb[0].mxu0
        %v2518 = vadd.f32 %v2377, %v2517
        %v2519 = vpop.f32.mrb[0].mxu0
        %2520 = vmatprep.mubr.f32.mxu0 0.0
        %2521 = vmatmul.mubr.f32.gmra.mrb[0].mxu0 %v2390
        %v2522 = vpop.f32.mrb[0].mxu0
        %v2523 = vadd.f32 %v2377, %v2522
        %v2524 = vpop.f32.mrb[0].mxu0
        %2525 = vmatprep.mubr.f32.mxu0 0.0
        %2526 = vmatmul.mubr.f32.gmra.mrb[0].mxu0 %v2393
        %v2527 = vpop.f32.mrb[0].mxu0
        %v2528 = vadd.f32 %v2377, %v2527
        %v2529 = vpop.f32.mrb[0].mxu0
        %2530 = vmatprep.mubr.f32.mxu0 0.0
        %2531 = vmatmul.mubr.f32.gmra.mrb[0].mxu0 %v2396
        %v2532 = vpop.f32.mrb[0].mxu0
        %v2533 = vadd.f32 %v2377, %v2532
        %v2534 = vpop.f32.mrb[0].mxu0
        %2535 = vmatprep.mubr.f32.mxu0 0.0
        %2536 = vmatmul.mubr.f32.gmra.mrb[0].mxu0 %v2399
        %v2537 = vpop.f32.mrb[0].mxu0
        %v2538 = vadd.f32 %v2377, %v2537
        %v2539 = vpop.f32.mrb[0].mxu0
        %2540 = vmatprep.mubr.f32.mxu0 0.0
        %2541 = vmatmul.mubr.f32.gmra.mrb[0].mxu0 %v2402
        %v2542 = vpop.f32.mrb[0].mxu0
        %v2543 = vadd.f32 %v2377, %v2542
        %v2544 = vpop.f32.mrb[0].mxu0
        %2545 = vmatprep.mubr.f32.mxu0 0.0
        %2546 = vmatmul.mubr.f32.gmra.mrb[0].mxu0 %v2405
        %v2547 = vpop.f32.mrb[0].mxu0
        %v2548 = vadd.f32 %v2377, %v2547
        %v2549 = vpop.f32.mrb[0].mxu0
        %2550 = vmatprep.mubr.f32.mxu0 0.0
        %2551 = vmatmul.mubr.f32.gmra.mrb[0].mxu0 %v2408
        %v2552 = vpop.f32.mrb[0].mxu0
        %v2553 = vadd.f32 %v2377, %v2552
        %v2554 = vpop.f32.mrb[0].mxu0
        %2555 = vmatprep.mubr.f32.mxu0 0.0
        %2556 = vmatmul.mubr.f32.gmra.mrb[0].mxu0 %v2411
        %v2557 = vpop.f32.mrb[0].mxu0
        %v2558 = vadd.f32 %v2377, %v2557
        %v2559 = vpop.f32.mrb[0].mxu0
        %2560 = vmatprep.mubr.f32.mxu0 0.0
        %2561 = vmatmul.mubr.f32.gmra.mrb[0].mxu0 %v2414
        %v2562 = vpop.f32.mrb[0].mxu0
        %v2563 = vadd.f32 %v2377, %v2562
        %v2564 = vpop.f32.mrb[0].mxu0
        %2565 = vmatprep.mubr.f32.mxu0 0.0
        %2566 = vmatmul.mubr.f32.gmra.mrb[0].mxu0 %v2417
        %v2567 = vpop.f32.mrb[0].mxu0
        %v2568 = vadd.f32 %v2377, %v2567
        %v2569 = vpop.f32.mrb[0].mxu0
        %2570 = vmatprep.mubr.f32.mxu0 0.0
        %2571 = vmatmul.mubr.f32.gmra.mrb[0].mxu0 %v2420
        %v2572 = vpop.f32.mrb[0].mxu0
        %v2573 = vadd.f32 %v2377, %v2572
        %v2574 = vpop.f32.mrb[0].mxu0
        %2575 = vmatprep.mubr.f32.mxu0 0.0
        %2576 = vmatmul.mubr.f32.gmra.mrb[0].mxu0 %v2423
        %v2577 = vpop.f32.mrb[0].mxu0
        %v2578 = vadd.f32 %v2377, %v2577
        %v2579 = vpop.f32.mrb[0].mxu0
        %2580 = vmatprep.mubr.f32.mxu0 0.0
        %2581 = vmatmul.mubr.f32.gmra.mrb[0].mxu0 %v2426
        %v2582 = vpop.f32.mrb[0].mxu0
        %v2583 = vadd.f32 %v2377, %v2582
        %v2584 = vpop.f32.mrb[0].mxu0
        %2585 = vmatprep.mubr.f32.mxu0 0.0
        %2586 = vmatmul.mubr.f32.gmra.mrb[0].mxu0 %v2429
        %v2587 = vpop.f32.mrb[0].mxu0
        %v2588 = vadd.f32 %v2377, %v2587
        %v2589 = vpop.f32.mrb[0].mxu0
        %2590 = vmatprep.mubr.f32.mxu0 0.0
        %2591 = vmatmul.mubr.f32.gmra.mrb[0].mxu0 %v2432
        %v2592 = vpop.f32.mrb[0].mxu0
        %v2593 = vadd.f32 %v2377, %v2592
        %v2594 = vpop.f32.mrb[0].mxu0
        %2595 = vmatprep.mubr.f32.mxu0 0.0
        %2596 = vmatmul.mubr.f32.gmra.mrb[0].mxu0 %v2435
        %v2597 = vpop.f32.mrb[0].mxu0
        %v2598 = vadd.f32 %v2377, %v2597
        %v2599 = vpop.f32.mrb[0].mxu0
        %2600 = vdwg.mxu0
        %v2601 = vmax.f32 %v2508, 0.0
        %v2602 = vmax.f32 %v2513, 0.0
        %v2603 = vmax.f32 %v2518, 0.0
        %v2604 = vmax.f32 %v2523, 0.0
        %v2605 = vmax.f32 %v2528, 0.0
        %v2606 = vmax.f32 %v2533, 0.0
        %v2607 = vmax.f32 %v2538, 0.0
        %v2608 = vmax.f32 %v2543, 0.0
        %v2609 = vmax.f32 %v2548, 0.0
        %v2610 = vmax.f32 %v2553, 0.0
        %v2611 = vmax.f32 %v2558, 0.0
        %v2612 = vmax.f32 %v2563, 0.0
        %v2613 = vmax.f32 %v2568, 0.0
        %v2614 = vmax.f32 %v2573, 0.0
        %v2615 = vmax.f32 %v2578, 0.0
        %v2616 = vmax.f32 %v2583, 0.0
        %v2617 = vmax.f32 %v2588, 0.0
        %v2618 = vmax.f32 %v2593, 0.0
        %v2619 = vmax.f32 %v2598, 0.0
        %v2620 = vld [vmem:[#allocation14] sm:$0xff]
        %v2621 = vld [vmem:[#allocation14 + $0x8] sm:$0xf]
        %v2622 = vld [vmem:[#allocation16] sm:$0x1]
        %v2624 = vlaneseq
        %v2625 = vshrl.u32 %v2624, 7
        %v2626 = vsub.s32 0, %v2625
        %v2627 = vrot.slane %v2622, %v2626
        %v2630 = vsel %vm2130, %v2601, 0
        %v2633 = vsel %vm2130, %v2602, 0
        %v2636 = vsel %vm2130, %v2603, 0
        %v2639 = vsel %vm2130, %v2604, 0
        %v2642 = vsel %vm2130, %v2605, 0
        %v2645 = vsel %vm2130, %v2606, 0
        %v2648 = vsel %vm2130, %v2607, 0
        %v2651 = vsel %vm2130, %v2608, 0
        %v2654 = vsel %vm2130, %v2609, 0
        %v2657 = vsel %vm2130, %v2610, 0
        %v2660 = vsel %vm2130, %v2611, 0
        %v2663 = vsel %vm2130, %v2612, 0
        %v2666 = vsel %vm2130, %v2613, 0
        %v2669 = vsel %vm2130, %v2614, 0
        %v2672 = vsel %vm2130, %v2615, 0
        %v2675 = vsel %vm2130, %v2616, 0
        %v2678 = vsel %vm2130, %v2617, 0
        %v2681 = vsel %vm2130, %v2618, 0
        %v2684 = vsel %vm2130, %v2619, 0
        %v2687 = vsel %vm2188, %v2621, 0
        %2689 = vmatprep.subr.mxu0 0.0
        %2690 = vmatpush1.msra.mxu0 %v2620
        %2691 = vmatprep.subr.mxu0 0.0
        %2692 = vmatpush1.msra.mxu0 %v2687
        %2693 = vmatprep.subr.mxu0 0.0
        %2694 = vmatpush1.msra.mxu0 0.0
        %2695 = vmatprep.subr.mxu0 0.0
        %2696 = vmatpush1.msra.mxu0 0.0
        %2697 = vmatprep.subr.mxu0 0.0
        %2698 = vmatpush1.msra.mxu0 0.0
        %2699 = vmatprep.subr.mxu0 0.0
        %2700 = vmatpush1.msra.mxu0 0.0
        %2701 = vmatprep.subr.mxu0 0.0
        %2702 = vmatpush1.msra.mxu0 0.0
        %2703 = vmatprep.subr.mxu0 0.0
        %2704 = vmatpush1.msra.mxu0 0.0
        %2705 = vmatprep.subr.mxu0 0.0
        %2706 = vmatpush1.msra.mxu0 0.0
        %2707 = vmatprep.subr.mxu0 0.0
        %2708 = vmatpush1.msra.mxu0 0.0
        %2709 = vmatprep.subr.mxu0 0.0
        %2710 = vmatpush1.msra.mxu0 0.0
        %2711 = vmatprep.subr.mxu0 0.0
        %2712 = vmatpush1.msra.mxu0 0.0
        %2713 = vmatprep.subr.mxu0 0.0
        %2714 = vmatpush1.msra.mxu0 0.0
        %2715 = vmatprep.subr.mxu0 0.0
        %2716 = vmatpush1.msra.mxu0 0.0
        %2717 = vmatprep.subr.mxu0 0.0
        %2718 = vmatpush1.msra.mxu0 0.0
        %2719 = vmatprep.subr.mxu0 0.0
        %2720 = vmatpush1.msra.mxu0 0.0
        %2721 = vmatprep.subr.mxu0 0.0
        %2722 = vmatpush1.msra.mxu0 0.0
        %2723 = vmatprep.subr.mxu0 0.0
        %2724 = vmatpush1.msra.mxu0 0.0
        %2725 = vmatprep.subr.mxu0 0.0
        %2726 = vmatpush1.msra.mxu0 0.0
        %2727 = vmatprep.subr.mxu0 0.0
        %2728 = vmatpush1.msra.mxu0 0.0
        %2729 = vmatprep.subr.mxu0 0.0
        %2730 = vmatpush1.msra.mxu0 0.0
        %2731 = vmatprep.subr.mxu0 0.0
        %2732 = vmatpush1.msra.mxu0 0.0
        %2733 = vmatprep.subr.mxu0 0.0
        %2734 = vmatpush1.msra.mxu0 0.0
        %2735 = vmatprep.subr.mxu0 0.0
        %2736 = vmatpush1.msra.mxu0 0.0
        %2737 = vmatprep.subr.mxu0 0.0
        %2738 = vmatpush1.msra.mxu0 0.0
        %2739 = vmatprep.subr.mxu0 0.0
        %2740 = vmatpush1.msra.mxu0 0.0
        %2741 = vmatprep.subr.mxu0 0.0
        %2742 = vmatpush1.msra.mxu0 0.0
        %2743 = vmatprep.subr.mxu0 0.0
        %2744 = vmatpush1.msra.mxu0 0.0
        %2745 = vmatprep.subr.mxu0 0.0
        %2746 = vmatpush1.msra.mxu0 0.0
        %2747 = vmatprep.subr.mxu0 0.0
        %2748 = vmatpush1.msra.mxu0 0.0
        %2749 = vmatprep.subr.mxu0 0.0
        %2750 = vmatpush1.msra.mxu0 0.0
        %2751 = vmatprep.subr.mxu0 0.0
        %2752 = vmatpush1.msra.mxu0 0.0
        %2753 = vmatprep.mubr.f32.mxu0 0.0
        %2754 = vmatmul.mubr.f32.gmra.mrb[0].mxu0 %v2630
        %v2755 = vpop.f32.mrb[0].mxu0
        %v2756 = vadd.f32 %v2627, %v2755
        %v2757 = vpop.f32.mrb[0].mxu0
        %2758 = vmatprep.mubr.f32.mxu0 0.0
        %2759 = vmatmul.mubr.f32.gmra.mrb[0].mxu0 %v2633
        %v2760 = vpop.f32.mrb[0].mxu0
        %v2761 = vadd.f32 %v2627, %v2760
        %v2762 = vpop.f32.mrb[0].mxu0
        %2763 = vmatprep.mubr.f32.mxu0 0.0
        %2764 = vmatmul.mubr.f32.gmra.mrb[0].mxu0 %v2636
        %v2765 = vpop.f32.mrb[0].mxu0
        %v2766 = vadd.f32 %v2627, %v2765
        %v2767 = vpop.f32.mrb[0].mxu0
        %2768 = vmatprep.mubr.f32.mxu0 0.0
        %2769 = vmatmul.mubr.f32.gmra.mrb[0].mxu0 %v2639
        %v2770 = vpop.f32.mrb[0].mxu0
        %v2771 = vadd.f32 %v2627, %v2770
        %v2772 = vpop.f32.mrb[0].mxu0
        %2773 = vmatprep.mubr.f32.mxu0 0.0
        %2774 = vmatmul.mubr.f32.gmra.mrb[0].mxu0 %v2642
        %v2775 = vpop.f32.mrb[0].mxu0
        %v2776 = vadd.f32 %v2627, %v2775
        %v2777 = vpop.f32.mrb[0].mxu0
        %2778 = vmatprep.mubr.f32.mxu0 0.0
        %2779 = vmatmul.mubr.f32.gmra.mrb[0].mxu0 %v2645
        %v2780 = vpop.f32.mrb[0].mxu0
        %v2781 = vadd.f32 %v2627, %v2780
        %v2782 = vpop.f32.mrb[0].mxu0
        %2783 = vmatprep.mubr.f32.mxu0 0.0
        %2784 = vmatmul.mubr.f32.gmra.mrb[0].mxu0 %v2648
        %v2785 = vpop.f32.mrb[0].mxu0
        %v2786 = vadd.f32 %v2627, %v2785
        %v2787 = vpop.f32.mrb[0].mxu0
        %2788 = vmatprep.mubr.f32.mxu0 0.0
        %2789 = vmatmul.mubr.f32.gmra.mrb[0].mxu0 %v2651
        %v2790 = vpop.f32.mrb[0].mxu0
        %v2791 = vadd.f32 %v2627, %v2790
        %v2792 = vpop.f32.mrb[0].mxu0
        %2793 = vmatprep.mubr.f32.mxu0 0.0
        %2794 = vmatmul.mubr.f32.gmra.mrb[0].mxu0 %v2654
        %v2795 = vpop.f32.mrb[0].mxu0
        %v2796 = vadd.f32 %v2627, %v2795
        %v2797 = vpop.f32.mrb[0].mxu0
        %2798 = vmatprep.mubr.f32.mxu0 0.0
        %2799 = vmatmul.mubr.f32.gmra.mrb[0].mxu0 %v2657
        %v2800 = vpop.f32.mrb[0].mxu0
        %v2801 = vadd.f32 %v2627, %v2800
        %v2802 = vpop.f32.mrb[0].mxu0
        %2803 = vmatprep.mubr.f32.mxu0 0.0
        %2804 = vmatmul.mubr.f32.gmra.mrb[0].mxu0 %v2660
        %v2805 = vpop.f32.mrb[0].mxu0
        %v2806 = vadd.f32 %v2627, %v2805
        %v2807 = vpop.f32.mrb[0].mxu0
        %2808 = vmatprep.mubr.f32.mxu0 0.0
        %2809 = vmatmul.mubr.f32.gmra.mrb[0].mxu0 %v2663
        %v2810 = vpop.f32.mrb[0].mxu0
        %v2811 = vadd.f32 %v2627, %v2810
        %v2812 = vpop.f32.mrb[0].mxu0
        %2813 = vmatprep.mubr.f32.mxu0 0.0
        %2814 = vmatmul.mubr.f32.gmra.mrb[0].mxu0 %v2666
        %v2815 = vpop.f32.mrb[0].mxu0
        %v2816 = vadd.f32 %v2627, %v2815
        %v2817 = vpop.f32.mrb[0].mxu0
        %2818 = vmatprep.mubr.f32.mxu0 0.0
        %2819 = vmatmul.mubr.f32.gmra.mrb[0].mxu0 %v2669
        %v2820 = vpop.f32.mrb[0].mxu0
        %v2821 = vadd.f32 %v2627, %v2820
        %v2822 = vpop.f32.mrb[0].mxu0
        %2823 = vmatprep.mubr.f32.mxu0 0.0
        %2824 = vmatmul.mubr.f32.gmra.mrb[0].mxu0 %v2672
        %v2825 = vpop.f32.mrb[0].mxu0
        %v2826 = vadd.f32 %v2627, %v2825
        %v2827 = vpop.f32.mrb[0].mxu0
        %2828 = vmatprep.mubr.f32.mxu0 0.0
        %2829 = vmatmul.mubr.f32.gmra.mrb[0].mxu0 %v2675
        %v2830 = vpop.f32.mrb[0].mxu0
        %v2831 = vadd.f32 %v2627, %v2830
        %v2832 = vpop.f32.mrb[0].mxu0
        %2833 = vmatprep.mubr.f32.mxu0 0.0
        %2834 = vmatmul.mubr.f32.gmra.mrb[0].mxu0 %v2678
        %v2835 = vpop.f32.mrb[0].mxu0
        %v2836 = vadd.f32 %v2627, %v2835
        %v2837 = vpop.f32.mrb[0].mxu0
        %2838 = vmatprep.mubr.f32.mxu0 0.0
        %2839 = vmatmul.mubr.f32.gmra.mrb[0].mxu0 %v2681
        %v2840 = vpop.f32.mrb[0].mxu0
        %v2841 = vadd.f32 %v2627, %v2840
        %v2842 = vpop.f32.mrb[0].mxu0
        %2843 = vmatprep.mubr.f32.mxu0 0.0
        %2844 = vmatmul.mubr.f32.gmra.mrb[0].mxu0 %v2684
        %v2845 = vpop.f32.mrb[0].mxu0
        %v2846 = vadd.f32 %v2627, %v2845
        %v2847 = vpop.f32.mrb[0].mxu0
        %2848 = vdwg.mxu0
        %v2849 = vmax.f32 %v2756, 0.0
        %v2850 = vmax.f32 %v2761, 0.0
        %v2851 = vmax.f32 %v2766, 0.0
        %v2852 = vmax.f32 %v2771, 0.0
        %v2853 = vmax.f32 %v2776, 0.0
        %v2854 = vmax.f32 %v2781, 0.0
        %v2855 = vmax.f32 %v2786, 0.0
        %v2856 = vmax.f32 %v2791, 0.0
        %v2857 = vmax.f32 %v2796, 0.0
        %v2858 = vmax.f32 %v2801, 0.0
        %v2859 = vmax.f32 %v2806, 0.0
        %v2860 = vmax.f32 %v2811, 0.0
        %v2861 = vmax.f32 %v2816, 0.0
        %v2862 = vmax.f32 %v2821, 0.0
        %v2863 = vmax.f32 %v2826, 0.0
        %v2864 = vmax.f32 %v2831, 0.0
        %v2865 = vmax.f32 %v2836, 0.0
        %v2866 = vmax.f32 %v2841, 0.0
        %v2867 = vmax.f32 %v2846, 0.0
        %v2868 = vld [vmem:[#allocation17] sm:$0xff]
        %v2869 = vld [vmem:[#allocation17 + $0x8] sm:$0xff]
        %v2870 = vld [vmem:[#allocation17 + $0x10] sm:$0xff]
        %v2871 = vld [vmem:[#allocation17 + $0x18] sm:$0xff]
        %v2872 = vld [vmem:[#allocation17 + $0x20] sm:$0xff]
        %v2873 = vld [vmem:[#allocation17 + $0x28] sm:$0xff]
        %v2874 = vld [vmem:[#allocation17 + $0x30] sm:$0xff]
        %v2875 = vld [vmem:[#allocation17 + $0x38] sm:$0xff]
        %v2876 = vld [vmem:[#allocation19] sm:$0x1]
        %v2878 = vlaneseq
        %v2879 = vshrl.u32 %v2878, 7
        %v2880 = vsub.s32 0, %v2879
        %v2881 = vrot.slane %v2876, %v2880
        %v2884 = vsel %vm1884, %v2849, 0
        %v2887 = vsel %vm1884, %v2850, 0
        %v2890 = vsel %vm1884, %v2851, 0
        %v2893 = vsel %vm1884, %v2852, 0
        %v2896 = vsel %vm1884, %v2853, 0
        %v2899 = vsel %vm1884, %v2854, 0
        %v2902 = vsel %vm1884, %v2855, 0
        %v2905 = vsel %vm1884, %v2856, 0
        %v2908 = vsel %vm1884, %v2857, 0
        %v2911 = vsel %vm1884, %v2858, 0
        %v2914 = vsel %vm1884, %v2859, 0
        %v2917 = vsel %vm1884, %v2860, 0
        %v2920 = vsel %vm1884, %v2861, 0
        %v2923 = vsel %vm1884, %v2862, 0
        %v2926 = vsel %vm1884, %v2863, 0
        %v2929 = vsel %vm1884, %v2864, 0
        %v2932 = vsel %vm1884, %v2865, 0
        %v2935 = vsel %vm1884, %v2866, 0
        %v2938 = vsel %vm1884, %v2867, 0
        %2940 = vmatprep.subr.mxu0 0.0
        %2941 = vmatpush1.msra.mxu0 %v2868
        %2942 = vmatprep.subr.mxu0 0.0
        %2943 = vmatpush1.msra.mxu0 %v2869
        %2944 = vmatprep.subr.mxu0 0.0
        %2945 = vmatpush1.msra.mxu0 %v2870
        %2946 = vmatprep.subr.mxu0 0.0
        %2947 = vmatpush1.msra.mxu0 %v2871
        %2948 = vmatprep.subr.mxu0 0.0
        %2949 = vmatpush1.msra.mxu0 %v2872
        %2950 = vmatprep.subr.mxu0 0.0
        %2951 = vmatpush1.msra.mxu0 %v2873
        %2952 = vmatprep.subr.mxu0 0.0
        %2953 = vmatpush1.msra.mxu0 %v2874
        %2954 = vmatprep.subr.mxu0 0.0
        %2955 = vmatpush1.msra.mxu0 %v2875
        %2956 = vmatprep.subr.mxu0 0.0
        %2957 = vmatpush1.msra.mxu0 0.0
        %2958 = vmatprep.subr.mxu0 0.0
        %2959 = vmatpush1.msra.mxu0 0.0
        %2960 = vmatprep.subr.mxu0 0.0
        %2961 = vmatpush1.msra.mxu0 0.0
        %2962 = vmatprep.subr.mxu0 0.0
        %2963 = vmatpush1.msra.mxu0 0.0
        %2964 = vmatprep.subr.mxu0 0.0
        %2965 = vmatpush1.msra.mxu0 0.0
        %2966 = vmatprep.subr.mxu0 0.0
        %2967 = vmatpush1.msra.mxu0 0.0
        %2968 = vmatprep.subr.mxu0 0.0
        %2969 = vmatpush1.msra.mxu0 0.0
        %2970 = vmatprep.subr.mxu0 0.0
        %2971 = vmatpush1.msra.mxu0 0.0
        %2972 = vmatprep.subr.mxu0 0.0
        %2973 = vmatpush1.msra.mxu0 0.0
        %2974 = vmatprep.subr.mxu0 0.0
        %2975 = vmatpush1.msra.mxu0 0.0
        %2976 = vmatprep.subr.mxu0 0.0
        %2977 = vmatpush1.msra.mxu0 0.0
        %2978 = vmatprep.subr.mxu0 0.0
        %2979 = vmatpush1.msra.mxu0 0.0
        %2980 = vmatprep.subr.mxu0 0.0
        %2981 = vmatpush1.msra.mxu0 0.0
        %2982 = vmatprep.subr.mxu0 0.0
        %2983 = vmatpush1.msra.mxu0 0.0
        %2984 = vmatprep.subr.mxu0 0.0
        %2985 = vmatpush1.msra.mxu0 0.0
        %2986 = vmatprep.subr.mxu0 0.0
        %2987 = vmatpush1.msra.mxu0 0.0
        %2988 = vmatprep.subr.mxu0 0.0
        %2989 = vmatpush1.msra.mxu0 0.0
        %2990 = vmatprep.subr.mxu0 0.0
        %2991 = vmatpush1.msra.mxu0 0.0
        %2992 = vmatprep.subr.mxu0 0.0
        %2993 = vmatpush1.msra.mxu0 0.0
        %2994 = vmatprep.subr.mxu0 0.0
        %2995 = vmatpush1.msra.mxu0 0.0
        %2996 = vmatprep.subr.mxu0 0.0
        %2997 = vmatpush1.msra.mxu0 0.0
        %2998 = vmatprep.subr.mxu0 0.0
        %2999 = vmatpush1.msra.mxu0 0.0
        %3000 = vmatprep.subr.mxu0 0.0
        %3001 = vmatpush1.msra.mxu0 0.0
        %3002 = vmatprep.subr.mxu0 0.0
        %3003 = vmatpush1.msra.mxu0 0.0
        %3004 = vmatprep.mubr.f32.mxu0 0.0
        %3005 = vmatmul.mubr.f32.gmra.mrb[0].mxu0 %v2884
        %v3006 = vpop.f32.mrb[0].mxu0
        %v3007 = vadd.f32 %v2881, %v3006
        %v3008 = vpop.f32.mrb[0].mxu0
        %3009 = vmatprep.mubr.f32.mxu0 0.0
        %3010 = vmatmul.mubr.f32.gmra.mrb[0].mxu0 %v2887
        %v3011 = vpop.f32.mrb[0].mxu0
        %v3012 = vadd.f32 %v2881, %v3011
        %v3013 = vpop.f32.mrb[0].mxu0
        %3014 = vmatprep.mubr.f32.mxu0 0.0
        %3015 = vmatmul.mubr.f32.gmra.mrb[0].mxu0 %v2890
        %v3016 = vpop.f32.mrb[0].mxu0
        %v3017 = vadd.f32 %v2881, %v3016
        %v3018 = vpop.f32.mrb[0].mxu0
        %3019 = vmatprep.mubr.f32.mxu0 0.0
        %3020 = vmatmul.mubr.f32.gmra.mrb[0].mxu0 %v2893
        %v3021 = vpop.f32.mrb[0].mxu0
        %v3022 = vadd.f32 %v2881, %v3021
        %v3023 = vpop.f32.mrb[0].mxu0
        %3024 = vmatprep.mubr.f32.mxu0 0.0
        %3025 = vmatmul.mubr.f32.gmra.mrb[0].mxu0 %v2896
        %v3026 = vpop.f32.mrb[0].mxu0
        %v3027 = vadd.f32 %v2881, %v3026
        %v3028 = vpop.f32.mrb[0].mxu0
        %3029 = vmatprep.mubr.f32.mxu0 0.0
        %3030 = vmatmul.mubr.f32.gmra.mrb[0].mxu0 %v2899
        %v3031 = vpop.f32.mrb[0].mxu0
        %v3032 = vadd.f32 %v2881, %v3031
        %v3033 = vpop.f32.mrb[0].mxu0
        %3034 = vmatprep.mubr.f32.mxu0 0.0
        %3035 = vmatmul.mubr.f32.gmra.mrb[0].mxu0 %v2902
        %v3036 = vpop.f32.mrb[0].mxu0
        %v3037 = vadd.f32 %v2881, %v3036
        %v3038 = vpop.f32.mrb[0].mxu0
        %3039 = vmatprep.mubr.f32.mxu0 0.0
        %3040 = vmatmul.mubr.f32.gmra.mrb[0].mxu0 %v2905
        %v3041 = vpop.f32.mrb[0].mxu0
        %v3042 = vadd.f32 %v2881, %v3041
        %v3043 = vpop.f32.mrb[0].mxu0
        %3044 = vmatprep.mubr.f32.mxu0 0.0
        %3045 = vmatmul.mubr.f32.gmra.mrb[0].mxu0 %v2908
        %v3046 = vpop.f32.mrb[0].mxu0
        %v3047 = vadd.f32 %v2881, %v3046
        %v3048 = vpop.f32.mrb[0].mxu0
        %3049 = vmatprep.mubr.f32.mxu0 0.0
        %3050 = vmatmul.mubr.f32.gmra.mrb[0].mxu0 %v2911
        %v3051 = vpop.f32.mrb[0].mxu0
        %v3052 = vadd.f32 %v2881, %v3051
        %v3053 = vpop.f32.mrb[0].mxu0
        %3054 = vmatprep.mubr.f32.mxu0 0.0
        %3055 = vmatmul.mubr.f32.gmra.mrb[0].mxu0 %v2914
        %v3056 = vpop.f32.mrb[0].mxu0
        %v3057 = vadd.f32 %v2881, %v3056
        %v3058 = vpop.f32.mrb[0].mxu0
        %3059 = vmatprep.mubr.f32.mxu0 0.0
        %3060 = vmatmul.mubr.f32.gmra.mrb[0].mxu0 %v2917
        %v3061 = vpop.f32.mrb[0].mxu0
        %v3062 = vadd.f32 %v2881, %v3061
        %v3063 = vpop.f32.mrb[0].mxu0
        %3064 = vmatprep.mubr.f32.mxu0 0.0
        %3065 = vmatmul.mubr.f32.gmra.mrb[0].mxu0 %v2920
        %v3066 = vpop.f32.mrb[0].mxu0
        %v3067 = vadd.f32 %v2881, %v3066
        %v3068 = vpop.f32.mrb[0].mxu0
        %3069 = vmatprep.mubr.f32.mxu0 0.0
        %3070 = vmatmul.mubr.f32.gmra.mrb[0].mxu0 %v2923
        %v3071 = vpop.f32.mrb[0].mxu0
        %v3072 = vadd.f32 %v2881, %v3071
        %v3073 = vpop.f32.mrb[0].mxu0
        %3074 = vmatprep.mubr.f32.mxu0 0.0
        %3075 = vmatmul.mubr.f32.gmra.mrb[0].mxu0 %v2926
        %v3076 = vpop.f32.mrb[0].mxu0
        %v3077 = vadd.f32 %v2881, %v3076
        %v3078 = vpop.f32.mrb[0].mxu0
        %3079 = vmatprep.mubr.f32.mxu0 0.0
        %3080 = vmatmul.mubr.f32.gmra.mrb[0].mxu0 %v2929
        %v3081 = vpop.f32.mrb[0].mxu0
        %v3082 = vadd.f32 %v2881, %v3081
        %v3083 = vpop.f32.mrb[0].mxu0
        %3084 = vmatprep.mubr.f32.mxu0 0.0
        %3085 = vmatmul.mubr.f32.gmra.mrb[0].mxu0 %v2932
        %v3086 = vpop.f32.mrb[0].mxu0
        %v3087 = vadd.f32 %v2881, %v3086
        %v3088 = vpop.f32.mrb[0].mxu0
        %3089 = vmatprep.mubr.f32.mxu0 0.0
        %3090 = vmatmul.mubr.f32.gmra.mrb[0].mxu0 %v2935
        %v3091 = vpop.f32.mrb[0].mxu0
        %v3092 = vadd.f32 %v2881, %v3091
        %v3093 = vpop.f32.mrb[0].mxu0
        %3094 = vmatprep.mubr.f32.mxu0 0.0
        %3095 = vmatmul.mubr.f32.gmra.mrb[0].mxu0 %v2938
        %v3096 = vpop.f32.mrb[0].mxu0
        %v3097 = vadd.f32 %v2881, %v3096
        %v3098 = vpop.f32.mrb[0].mxu0
        %3099 = vdwg.mxu0
        %v3100 = vmax.f32 %v3007, 0.0
        %v3101 = vmax.f32 %v3012, 0.0
        %v3102 = vmax.f32 %v3017, 0.0
        %v3103 = vmax.f32 %v3022, 0.0
        %v3104 = vmax.f32 %v3027, 0.0
        %v3105 = vmax.f32 %v3032, 0.0
        %v3106 = vmax.f32 %v3037, 0.0
        %v3107 = vmax.f32 %v3042, 0.0
        %v3108 = vmax.f32 %v3047, 0.0
        %v3109 = vmax.f32 %v3052, 0.0
        %v3110 = vmax.f32 %v3057, 0.0
        %v3111 = vmax.f32 %v3062, 0.0
        %v3112 = vmax.f32 %v3067, 0.0
        %v3113 = vmax.f32 %v3072, 0.0
        %v3114 = vmax.f32 %v3077, 0.0
        %v3115 = vmax.f32 %v3082, 0.0
        %v3116 = vmax.f32 %v3087, 0.0
        %v3117 = vmax.f32 %v3092, 0.0
        %v3118 = vmax.f32 %v3097, 0.0
        %v3119 = vld [vmem:[%s15] sm:$0xff]
        %v3120 = vld [vmem:[%s15 + $0x8] sm:$0xff]
        %v3121 = vld [vmem:[%s15 + $0x10] sm:$0xff]
        %v3122 = vld [vmem:[%s15 + $0x18] sm:$0xff]
        %v3123 = vld [vmem:[%s15 + $0x20] sm:$0xff]
        %v3124 = vld [vmem:[%s15 + $0x28] sm:$0xff]
        %v3125 = vld [vmem:[%s15 + $0x30] sm:$0xff]
        %v3126 = vld [vmem:[%s15 + $0x38] sm:$0xff]
        %v3127 = vld [vmem:[%s15 + $0x40] sm:$0xff]
        %v3128 = vld [vmem:[%s15 + $0x48] sm:$0xff]
        %v3129 = vld [vmem:[%s15 + $0x50] sm:$0xff]
        %v3130 = vld [vmem:[%s15 + $0x58] sm:$0xff]
        %v3131 = vld [vmem:[%s15 + $0x60] sm:$0xff]
        %v3132 = vld [vmem:[%s15 + $0x68] sm:$0xff]
        %v3133 = vld [vmem:[%s15 + $0x70] sm:$0xff]
        %v3134 = vld [vmem:[%s15 + $0x78] sm:$0xff]
        %v3135 = vld [vmem:[%s15 + $0x80] sm:$0xff]
        %v3136 = vld [vmem:[%s15 + $0x88] sm:$0xff]
        %v3137 = vld [vmem:[%s15 + $0x90] sm:$0xff]
        %v3138 = vld [vmem:[%s15 + $0x98] sm:$0xff]
        %v3139 = vld [vmem:[%s15 + $0xa0] sm:$0xff]
        %v3140 = vld [vmem:[%s15 + $0xa8] sm:$0xff]
        %v3141 = vld [vmem:[%s15 + $0xb0] sm:$0xff]
        %v3142 = vld [vmem:[%s15 + $0xb8] sm:$0xff]
        %v3143 = vld [vmem:[%s15 + $0xc0] sm:$0xff]
        %v3144 = vld [vmem:[%s15 + $0xc8] sm:$0xff]
        %v3145 = vld [vmem:[%s15 + $0xd0] sm:$0xff]
        %v3146 = vld [vmem:[%s15 + $0xd8] sm:$0xff]
        %v3147 = vld [vmem:[%s15 + $0xe0] sm:$0xff]
        %v3148 = vld [vmem:[%s15 + $0xe8] sm:$0xff]
        %v3149 = vld [vmem:[%s15 + $0xf0] sm:$0xff]
        %v3150 = vld [vmem:[%s15 + $0xf8] sm:$0xff]
        %v3151 = vld [vmem:[%s15 + $0x100] sm:$0xff]
        %v3152 = vld [vmem:[%s15 + $0x108] sm:$0xff]
        %v3153 = vld [vmem:[%s15 + $0x110] sm:$0xff]
        %v3154 = vld [vmem:[%s15 + $0x118] sm:$0xff]
        %v3155 = vld [vmem:[%s15 + $0x120] sm:$0xff]
        %v3156 = vld [vmem:[%s15 + $0x128] sm:$0xff]
        %v3157 = vld [vmem:[%s15 + $0x130] sm:$0xff]
        %v3158 = vld [vmem:[%s15 + $0x138] sm:$0xff]
        %v3159 = vld [vmem:[%s15 + $0x140] sm:$0xff]
        %v3160 = vld [vmem:[%s15 + $0x148] sm:$0xff]
        %v3161 = vld [vmem:[%s15 + $0x150] sm:$0xff]
        %v3162 = vld [vmem:[%s15 + $0x158] sm:$0xff]
        %v3163 = vld [vmem:[%s15 + $0x160] sm:$0xff]
        %v3164 = vld [vmem:[%s15 + $0x168] sm:$0xff]
        %v3165 = vld [vmem:[%s15 + $0x170] sm:$0xff]
        %v3166 = vld [vmem:[%s15 + $0x178] sm:$0xff]
        %v3167 = vld [vmem:[%s15 + $0x180] sm:$0xff]
        %v3168 = vld [vmem:[%s15 + $0x188] sm:$0xff]
        %v3169 = vld [vmem:[%s15 + $0x190] sm:$0xff]
        %v3170 = vld [vmem:[%s15 + $0x198] sm:$0xff]
        %v3171 = vld [vmem:[%s15 + $0x1a0] sm:$0xff]
        %v3172 = vld [vmem:[%s15 + $0x1a8] sm:$0xff]
        %v3173 = vld [vmem:[%s15 + $0x1b0] sm:$0xff]
        %v3174 = vld [vmem:[%s15 + $0x1b8] sm:$0xff]
        %v3175 = vld [vmem:[%s15 + $0x1c0] sm:$0xff]
        %v3176 = vld [vmem:[%s15 + $0x1c8] sm:$0xff]
        %v3177 = vld [vmem:[%s15 + $0x1d0] sm:$0xff]
        %v3178 = vld [vmem:[%s15 + $0x1d8] sm:$0xff]
        %v3179 = vld [vmem:[%s15 + $0x1e0] sm:$0xff]
        %v3180 = vld [vmem:[%s15 + $0x1e8] sm:$0xff]
        %v3181 = vld [vmem:[%s15 + $0x1f0] sm:$0xff]
        %v3182 = vld [vmem:[%s15 + $0x1f8] sm:$0xff]
        %v3183 = vld [vmem:[%s15 + $0x200] sm:$0xff]
        %v3184 = vld [vmem:[%s15 + $0x208] sm:$0xff]
        %v3185 = vld [vmem:[%s15 + $0x210] sm:$0xff]
        %v3186 = vld [vmem:[%s15 + $0x218] sm:$0xff]
        %v3187 = vld [vmem:[%s15 + $0x220] sm:$0xff]
        %v3188 = vld [vmem:[%s15 + $0x228] sm:$0xff]
        %v3189 = vld [vmem:[%s15 + $0x230] sm:$0xff]
        %v3190 = vld [vmem:[%s15 + $0x238] sm:$0xff]
        %v3191 = vld [vmem:[%s15 + $0x240] sm:$0xff]
        %v3192 = vld [vmem:[%s15 + $0x248] sm:$0xff]
        %v3193 = vld [vmem:[%s15 + $0x250] sm:$0xff]
        %v3194 = vld [vmem:[%s15 + $0x258] sm:$0xff]
        %v3195 = vld [vmem:[%s15 + $0x260] sm:$0xff]
        %v3196 = vld [vmem:[%s15 + $0x268] sm:$0xff]
        %v3197 = vld [vmem:[%s15 + $0x270] sm:$0xff]
        %v3198 = vld [vmem:[%s15 + $0x278] sm:$0xff]
        %v3199 = vld [vmem:[%s15 + $0x280] sm:$0xff]
        %v3200 = vld [vmem:[%s15 + $0x288] sm:$0xff]
        %v3201 = vld [vmem:[%s15 + $0x290] sm:$0xff]
        %v3202 = vld [vmem:[%s15 + $0x298] sm:$0xff]
        %v3203 = vld [vmem:[%s15 + $0x2a0] sm:$0xff]
        %v3204 = vld [vmem:[%s15 + $0x2a8] sm:$0xff]
        %v3205 = vld [vmem:[%s15 + $0x2b0] sm:$0xff]
        %v3206 = vld [vmem:[%s15 + $0x2b8] sm:$0xff]
        %v3207 = vld [vmem:[%s15 + $0x2c0] sm:$0xff]
        %v3208 = vld [vmem:[%s15 + $0x2c8] sm:$0xff]
        %v3209 = vld [vmem:[%s15 + $0x2d0] sm:$0xff]
        %v3210 = vld [vmem:[%s15 + $0x2d8] sm:$0xff]
        %v3211 = vld [vmem:[%s15 + $0x2e0] sm:$0xff]
        %v3212 = vld [vmem:[%s15 + $0x2e8] sm:$0xff]
        %v3213 = vld [vmem:[%s15 + $0x2f0] sm:$0xff]
        %v3214 = vld [vmem:[%s15 + $0x2f8] sm:$0xff]
        %v3215 = vld [vmem:[%s15 + $0x300] sm:$0xff]
        %v3216 = vld [vmem:[%s15 + $0x308] sm:$0xff]
        %v3217 = vld [vmem:[%s15 + $0x310] sm:$0xff]
        %v3218 = vld [vmem:[%s15 + $0x318] sm:$0xff]
        %v3219 = vld [vmem:[%s15 + $0x320] sm:$0xff]
        %v3220 = vld [vmem:[%s15 + $0x328] sm:$0xff]
        %v3221 = vld [vmem:[%s15 + $0x330] sm:$0xff]
        %v3222 = vld [vmem:[%s15 + $0x338] sm:$0xff]
        %v3223 = vld [vmem:[%s15 + $0x340] sm:$0xff]
        %v3224 = vld [vmem:[%s15 + $0x348] sm:$0xff]
        %v3225 = vld [vmem:[%s15 + $0x350] sm:$0xff]
        %v3226 = vld [vmem:[%s15 + $0x358] sm:$0xff]
        %v3227 = vld [vmem:[%s15 + $0x360] sm:$0xff]
        %v3228 = vld [vmem:[%s15 + $0x368] sm:$0xff]
        %v3229 = vld [vmem:[%s15 + $0x370] sm:$0xff]
        %v3230 = vld [vmem:[%s15 + $0x378] sm:$0xff]
        %v3231 = vld [vmem:[#allocation20] sm:$0x7f]
        %v3233 = vlaneseq
        %v3234 = vshrl.u32 %v3233, 7
        %v3235 = vsub.s32 0, %v3234
        %v3236 = vrot.slane %v3231, %v3235
        %v3237 = vlaneseq
        %v3238 = vshrl.u32 %v3237, 7
        %v3239 = vsub.s32 1, %v3238
        %v3240 = vrot.slane %v3231, %v3239
        %v3241 = vlaneseq
        %v3242 = vshrl.u32 %v3241, 7
        %v3243 = vsub.s32 2, %v3242
        %v3244 = vrot.slane %v3231, %v3243
        %v3245 = vlaneseq
        %v3246 = vshrl.u32 %v3245, 7
        %v3247 = vsub.s32 3, %v3246
        %v3248 = vrot.slane %v3231, %v3247
        %v3249 = vlaneseq
        %v3250 = vshrl.u32 %v3249, 7
        %v3251 = vsub.s32 4, %v3250
        %v3252 = vrot.slane %v3231, %v3251
        %v3253 = vlaneseq
        %v3254 = vshrl.u32 %v3253, 7
        %v3255 = vsub.s32 5, %v3254
        %v3256 = vrot.slane %v3231, %v3255
        %v3257 = vlaneseq
        %v3258 = vshrl.u32 %v3257, 7
        %v3259 = vsub.s32 6, %v3258
        %v3260 = vrot.slane %v3231, %v3259
        %3268 = vmatprep.subr.mxu0 %v3120
        %3269 = vmatpush1.msra.mxu0 %v3119
        %3270 = vmatprep.subr.mxu0 %v3127
        %3271 = vmatpush1.msra.mxu0 %v3126
        %3272 = vmatprep.subr.mxu0 %v3134
        %3273 = vmatpush1.msra.mxu0 %v3133
        %3274 = vmatprep.subr.mxu0 %v3141
        %3275 = vmatpush1.msra.mxu0 %v3140
        %3276 = vmatprep.subr.mxu0 %v3148
        %3277 = vmatpush1.msra.mxu0 %v3147
        %3278 = vmatprep.subr.mxu0 %v3155
        %3279 = vmatpush1.msra.mxu0 %v3154
        %3280 = vmatprep.subr.mxu0 %v3162
        %3281 = vmatpush1.msra.mxu0 %v3161
        %3282 = vmatprep.subr.mxu0 %v3169
        %3283 = vmatpush1.msra.mxu0 %v3168
        %3284 = vmatprep.subr.mxu0 %v3176
        %3285 = vmatpush1.msra.mxu0 %v3175
        %3286 = vmatprep.subr.mxu0 %v3183
        %3287 = vmatpush1.msra.mxu0 %v3182
        %3288 = vmatprep.subr.mxu0 %v3190
        %3289 = vmatpush1.msra.mxu0 %v3189
        %3290 = vmatprep.subr.mxu0 %v3197
        %3291 = vmatpush1.msra.mxu0 %v3196
        %3292 = vmatprep.subr.mxu0 %v3204
        %3293 = vmatpush1.msra.mxu0 %v3203
        %3294 = vmatprep.subr.mxu0 %v3211
        %3295 = vmatpush1.msra.mxu0 %v3210
        %3296 = vmatprep.subr.mxu0 %v3218
        %3297 = vmatpush1.msra.mxu0 %v3217
        %3298 = vmatprep.subr.mxu0 %v3225
        %3299 = vmatpush1.msra.mxu0 %v3224
        %3300 = vmatprep.subr.mxu0 0.0
        %3301 = vmatpush1.msra.mxu0 0.0
        %3302 = vmatprep.subr.mxu0 0.0
        %3303 = vmatpush1.msra.mxu0 0.0
        %3304 = vmatprep.subr.mxu0 0.0
        %3305 = vmatpush1.msra.mxu0 0.0
        %3306 = vmatprep.subr.mxu0 0.0
        %3307 = vmatpush1.msra.mxu0 0.0
        %3308 = vmatprep.subr.mxu0 0.0
        %3309 = vmatpush1.msra.mxu0 0.0
        %3310 = vmatprep.subr.mxu0 0.0
        %3311 = vmatpush1.msra.mxu0 0.0
        %3312 = vmatprep.subr.mxu0 0.0
        %3313 = vmatpush1.msra.mxu0 0.0
        %3314 = vmatprep.subr.mxu0 0.0
        %3315 = vmatpush1.msra.mxu0 0.0
        %3316 = vmatprep.subr.mxu0 0.0
        %3317 = vmatpush1.msra.mxu0 0.0
        %3318 = vmatprep.subr.mxu0 0.0
        %3319 = vmatpush1.msra.mxu0 0.0
        %3320 = vmatprep.subr.mxu0 0.0
        %3321 = vmatpush1.msra.mxu0 0.0
        %3322 = vmatprep.subr.mxu0 0.0
        %3323 = vmatpush1.msra.mxu0 0.0
        %3324 = vmatprep.subr.mxu0 0.0
        %3325 = vmatpush1.msra.mxu0 0.0
        %3326 = vmatprep.subr.mxu0 0.0
        %3327 = vmatpush1.msra.mxu0 0.0
        %3328 = vmatprep.subr.mxu0 0.0
        %3329 = vmatpush1.msra.mxu0 0.0
        %3330 = vmatprep.subr.mxu0 0.0
        %3331 = vmatpush1.msra.mxu0 0.0
        %3332 = vmatprep.mubr.f32.mxu0 0.0
        %3333 = vmatmul.mubr.f32.gmra.mrb[0].mxu0 %v3100
        %v3334 = vpop.f32.mrb[0].mxu0
        %v3335 = vadd.f32 %v3236, %v3334
        %v3336 = vpop.f32.mrb[0].mxu0
        %v3337 = vadd.f32 %v3240, %v3336
        %3338 = vmatprep.mubr.f32.mxu0 0.0
        %3339 = vmatmul.mubr.f32.gmra.mrb[0].mxu0 %v3101
        %v3340 = vpop.f32.mrb[0].mxu0
        %v3341 = vadd.f32 %v3236, %v3340
        %v3342 = vpop.f32.mrb[0].mxu0
        %v3343 = vadd.f32 %v3240, %v3342
        %3344 = vmatprep.mubr.f32.mxu0 0.0
        %3345 = vmatmul.mubr.f32.gmra.mrb[0].mxu0 %v3102
        %v3346 = vpop.f32.mrb[0].mxu0
        %v3347 = vadd.f32 %v3236, %v3346
        %v3348 = vpop.f32.mrb[0].mxu0
        %v3349 = vadd.f32 %v3240, %v3348
        %3350 = vmatprep.mubr.f32.mxu0 0.0
        %3351 = vmatmul.mubr.f32.gmra.mrb[0].mxu0 %v3103
        %v3352 = vpop.f32.mrb[0].mxu0
        %v3353 = vadd.f32 %v3236, %v3352
        %v3354 = vpop.f32.mrb[0].mxu0
        %v3355 = vadd.f32 %v3240, %v3354
        %3356 = vmatprep.mubr.f32.mxu0 0.0
        %3357 = vmatmul.mubr.f32.gmra.mrb[0].mxu0 %v3104
        %v3358 = vpop.f32.mrb[0].mxu0
        %v3359 = vadd.f32 %v3236, %v3358
        %v3360 = vpop.f32.mrb[0].mxu0
        %v3361 = vadd.f32 %v3240, %v3360
        %3362 = vmatprep.mubr.f32.mxu0 0.0
        %3363 = vmatmul.mubr.f32.gmra.mrb[0].mxu0 %v3105
        %v3364 = vpop.f32.mrb[0].mxu0
        %v3365 = vadd.f32 %v3236, %v3364
        %v3366 = vpop.f32.mrb[0].mxu0
        %v3367 = vadd.f32 %v3240, %v3366
        %3368 = vmatprep.mubr.f32.mxu0 0.0
        %3369 = vmatmul.mubr.f32.gmra.mrb[0].mxu0 %v3106
        %v3370 = vpop.f32.mrb[0].mxu0
        %v3371 = vadd.f32 %v3236, %v3370
        %v3372 = vpop.f32.mrb[0].mxu0
        %v3373 = vadd.f32 %v3240, %v3372
        %3374 = vmatprep.mubr.f32.mxu0 0.0
        %3375 = vmatmul.mubr.f32.gmra.mrb[0].mxu0 %v3107
        %v3376 = vpop.f32.mrb[0].mxu0
        %v3377 = vadd.f32 %v3236, %v3376
        %v3378 = vpop.f32.mrb[0].mxu0
        %v3379 = vadd.f32 %v3240, %v3378
        %3380 = vmatprep.mubr.f32.mxu0 0.0
        %3381 = vmatmul.mubr.f32.gmra.mrb[0].mxu0 %v3108
        %v3382 = vpop.f32.mrb[0].mxu0
        %v3383 = vadd.f32 %v3236, %v3382
        %v3384 = vpop.f32.mrb[0].mxu0
        %v3385 = vadd.f32 %v3240, %v3384
        %3386 = vmatprep.mubr.f32.mxu0 0.0
        %3387 = vmatmul.mubr.f32.gmra.mrb[0].mxu0 %v3109
        %v3388 = vpop.f32.mrb[0].mxu0
        %v3389 = vadd.f32 %v3236, %v3388
        %v3390 = vpop.f32.mrb[0].mxu0
        %v3391 = vadd.f32 %v3240, %v3390
        %3392 = vmatprep.mubr.f32.mxu0 0.0
        %3393 = vmatmul.mubr.f32.gmra.mrb[0].mxu0 %v3110
        %v3394 = vpop.f32.mrb[0].mxu0
        %v3395 = vadd.f32 %v3236, %v3394
        %v3396 = vpop.f32.mrb[0].mxu0
        %v3397 = vadd.f32 %v3240, %v3396
        %3398 = vmatprep.mubr.f32.mxu0 0.0
        %3399 = vmatmul.mubr.f32.gmra.mrb[0].mxu0 %v3111
        %v3400 = vpop.f32.mrb[0].mxu0
        %v3401 = vadd.f32 %v3236, %v3400
        %v3402 = vpop.f32.mrb[0].mxu0
        %v3403 = vadd.f32 %v3240, %v3402
        %3404 = vmatprep.mubr.f32.mxu0 0.0
        %3405 = vmatmul.mubr.f32.gmra.mrb[0].mxu0 %v3112
        %v3406 = vpop.f32.mrb[0].mxu0
        %v3407 = vadd.f32 %v3236, %v3406
        %v3408 = vpop.f32.mrb[0].mxu0
        %v3409 = vadd.f32 %v3240, %v3408
        %3410 = vmatprep.mubr.f32.mxu0 0.0
        %3411 = vmatmul.mubr.f32.gmra.mrb[0].mxu0 %v3113
        %v3412 = vpop.f32.mrb[0].mxu0
        %v3413 = vadd.f32 %v3236, %v3412
        %v3414 = vpop.f32.mrb[0].mxu0
        %v3415 = vadd.f32 %v3240, %v3414
        %3416 = vmatprep.mubr.f32.mxu0 0.0
        %3417 = vmatmul.mubr.f32.gmra.mrb[0].mxu0 %v3114
        %v3418 = vpop.f32.mrb[0].mxu0
        %v3419 = vadd.f32 %v3236, %v3418
        %v3420 = vpop.f32.mrb[0].mxu0
        %v3421 = vadd.f32 %v3240, %v3420
        %3422 = vmatprep.mubr.f32.mxu0 0.0
        %3423 = vmatmul.mubr.f32.gmra.mrb[0].mxu0 %v3115
        %v3424 = vpop.f32.mrb[0].mxu0
        %v3425 = vadd.f32 %v3236, %v3424
        %v3426 = vpop.f32.mrb[0].mxu0
        %v3427 = vadd.f32 %v3240, %v3426
        %3428 = vmatprep.mubr.f32.mxu0 0.0
        %3429 = vmatmul.mubr.f32.gmra.mrb[0].mxu0 %v3116
        %v3430 = vpop.f32.mrb[0].mxu0
        %v3431 = vadd.f32 %v3236, %v3430
        %v3432 = vpop.f32.mrb[0].mxu0
        %v3433 = vadd.f32 %v3240, %v3432
        %3434 = vmatprep.mubr.f32.mxu0 0.0
        %3435 = vmatmul.mubr.f32.gmra.mrb[0].mxu0 %v3117
        %v3436 = vpop.f32.mrb[0].mxu0
        %v3437 = vadd.f32 %v3236, %v3436
        %v3438 = vpop.f32.mrb[0].mxu0
        %v3439 = vadd.f32 %v3240, %v3438
        %3440 = vmatprep.mubr.f32.mxu0 0.0
        %3441 = vmatmul.mubr.f32.gmra.mrb[0].mxu0 %v3118
        %v3442 = vpop.f32.mrb[0].mxu0
        %v3443 = vadd.f32 %v3236, %v3442
        %v3444 = vpop.f32.mrb[0].mxu0
        %v3445 = vadd.f32 %v3240, %v3444
        %3446 = vdwg.mxu0
        %3447 = vmatprep.subr.mxu0 %v3122
        %3448 = vmatpush1.msra.mxu0 %v3121
        %3449 = vmatprep.subr.mxu0 %v3129
        %3450 = vmatpush1.msra.mxu0 %v3128
        %3451 = vmatprep.subr.mxu0 %v3136
        %3452 = vmatpush1.msra.mxu0 %v3135
        %3453 = vmatprep.subr.mxu0 %v3143
        %3454 = vmatpush1.msra.mxu0 %v3142
        %3455 = vmatprep.subr.mxu0 %v3150
        %3456 = vmatpush1.msra.mxu0 %v3149
        %3457 = vmatprep.subr.mxu0 %v3157
        %3458 = vmatpush1.msra.mxu0 %v3156
        %3459 = vmatprep.subr.mxu0 %v3164
        %3460 = vmatpush1.msra.mxu0 %v3163
        %3461 = vmatprep.subr.mxu0 %v3171
        %3462 = vmatpush1.msra.mxu0 %v3170
        %3463 = vmatprep.subr.mxu0 %v3178
        %3464 = vmatpush1.msra.mxu0 %v3177
        %3465 = vmatprep.subr.mxu0 %v3185
        %3466 = vmatpush1.msra.mxu0 %v3184
        %3467 = vmatprep.subr.mxu0 %v3192
        %3468 = vmatpush1.msra.mxu0 %v3191
        %3469 = vmatprep.subr.mxu0 %v3199
        %3470 = vmatpush1.msra.mxu0 %v3198
        %3471 = vmatprep.subr.mxu0 %v3206
        %3472 = vmatpush1.msra.mxu0 %v3205
        %3473 = vmatprep.subr.mxu0 %v3213
        %3474 = vmatpush1.msra.mxu0 %v3212
        %3475 = vmatprep.subr.mxu0 %v3220
        %3476 = vmatpush1.msra.mxu0 %v3219
        %3477 = vmatprep.subr.mxu0 %v3227
        %3478 = vmatpush1.msra.mxu0 %v3226
        %3479 = vmatprep.subr.mxu0 0.0
        %3480 = vmatpush1.msra.mxu0 0.0
        %3481 = vmatprep.subr.mxu0 0.0
        %3482 = vmatpush1.msra.mxu0 0.0
        %3483 = vmatprep.subr.mxu0 0.0
        %3484 = vmatpush1.msra.mxu0 0.0
        %3485 = vmatprep.subr.mxu0 0.0
        %3486 = vmatpush1.msra.mxu0 0.0
        %3487 = vmatprep.subr.mxu0 0.0
        %3488 = vmatpush1.msra.mxu0 0.0
        %3489 = vmatprep.subr.mxu0 0.0
        %3490 = vmatpush1.msra.mxu0 0.0
        %3491 = vmatprep.subr.mxu0 0.0
        %3492 = vmatpush1.msra.mxu0 0.0
        %3493 = vmatprep.subr.mxu0 0.0
        %3494 = vmatpush1.msra.mxu0 0.0
        %3495 = vmatprep.subr.mxu0 0.0
        %3496 = vmatpush1.msra.mxu0 0.0
        %3497 = vmatprep.subr.mxu0 0.0
        %3498 = vmatpush1.msra.mxu0 0.0
        %3499 = vmatprep.subr.mxu0 0.0
        %3500 = vmatpush1.msra.mxu0 0.0
        %3501 = vmatprep.subr.mxu0 0.0
        %3502 = vmatpush1.msra.mxu0 0.0
        %3503 = vmatprep.subr.mxu0 0.0
        %3504 = vmatpush1.msra.mxu0 0.0
        %3505 = vmatprep.subr.mxu0 0.0
        %3506 = vmatpush1.msra.mxu0 0.0
        %3507 = vmatprep.subr.mxu0 0.0
        %3508 = vmatpush1.msra.mxu0 0.0
        %3509 = vmatprep.subr.mxu0 0.0
        %3510 = vmatpush1.msra.mxu0 0.0
        %3511 = vmatprep.mubr.f32.mxu0 0.0
        %3512 = vmatmul.mubr.f32.gmra.mrb[0].mxu0 %v3100
        %v3513 = vpop.f32.mrb[0].mxu0
        %v3514 = vadd.f32 %v3244, %v3513
        %v3515 = vpop.f32.mrb[0].mxu0
        %v3516 = vadd.f32 %v3248, %v3515
        %3517 = vmatprep.mubr.f32.mxu0 0.0
        %3518 = vmatmul.mubr.f32.gmra.mrb[0].mxu0 %v3101
        %v3519 = vpop.f32.mrb[0].mxu0
        %v3520 = vadd.f32 %v3244, %v3519
        %v3521 = vpop.f32.mrb[0].mxu0
        %v3522 = vadd.f32 %v3248, %v3521
        %3523 = vmatprep.mubr.f32.mxu0 0.0
        %3524 = vmatmul.mubr.f32.gmra.mrb[0].mxu0 %v3102
        %v3525 = vpop.f32.mrb[0].mxu0
        %v3526 = vadd.f32 %v3244, %v3525
        %v3527 = vpop.f32.mrb[0].mxu0
        %v3528 = vadd.f32 %v3248, %v3527
        %3529 = vmatprep.mubr.f32.mxu0 0.0
        %3530 = vmatmul.mubr.f32.gmra.mrb[0].mxu0 %v3103
        %v3531 = vpop.f32.mrb[0].mxu0
        %v3532 = vadd.f32 %v3244, %v3531
        %v3533 = vpop.f32.mrb[0].mxu0
        %v3534 = vadd.f32 %v3248, %v3533
        %3535 = vmatprep.mubr.f32.mxu0 0.0
        %3536 = vmatmul.mubr.f32.gmra.mrb[0].mxu0 %v3104
        %v3537 = vpop.f32.mrb[0].mxu0
        %v3538 = vadd.f32 %v3244, %v3537
        %v3539 = vpop.f32.mrb[0].mxu0
        %v3540 = vadd.f32 %v3248, %v3539
        %3541 = vmatprep.mubr.f32.mxu0 0.0
        %3542 = vmatmul.mubr.f32.gmra.mrb[0].mxu0 %v3105
        %v3543 = vpop.f32.mrb[0].mxu0
        %v3544 = vadd.f32 %v3244, %v3543
        %v3545 = vpop.f32.mrb[0].mxu0
        %v3546 = vadd.f32 %v3248, %v3545
        %3547 = vmatprep.mubr.f32.mxu0 0.0
        %3548 = vmatmul.mubr.f32.gmra.mrb[0].mxu0 %v3106
        %v3549 = vpop.f32.mrb[0].mxu0
        %v3550 = vadd.f32 %v3244, %v3549
        %v3551 = vpop.f32.mrb[0].mxu0
        %v3552 = vadd.f32 %v3248, %v3551
        %3553 = vmatprep.mubr.f32.mxu0 0.0
        %3554 = vmatmul.mubr.f32.gmra.mrb[0].mxu0 %v3107
        %v3555 = vpop.f32.mrb[0].mxu0
        %v3556 = vadd.f32 %v3244, %v3555
        %v3557 = vpop.f32.mrb[0].mxu0
        %v3558 = vadd.f32 %v3248, %v3557
        %3559 = vmatprep.mubr.f32.mxu0 0.0
        %3560 = vmatmul.mubr.f32.gmra.mrb[0].mxu0 %v3108
        %v3561 = vpop.f32.mrb[0].mxu0
        %v3562 = vadd.f32 %v3244, %v3561
        %v3563 = vpop.f32.mrb[0].mxu0
        %v3564 = vadd.f32 %v3248, %v3563
        %3565 = vmatprep.mubr.f32.mxu0 0.0
        %3566 = vmatmul.mubr.f32.gmra.mrb[0].mxu0 %v3109
        %v3567 = vpop.f32.mrb[0].mxu0
        %v3568 = vadd.f32 %v3244, %v3567
        %v3569 = vpop.f32.mrb[0].mxu0
        %v3570 = vadd.f32 %v3248, %v3569
        %3571 = vmatprep.mubr.f32.mxu0 0.0
        %3572 = vmatmul.mubr.f32.gmra.mrb[0].mxu0 %v3110
        %v3573 = vpop.f32.mrb[0].mxu0
        %v3574 = vadd.f32 %v3244, %v3573
        %v3575 = vpop.f32.mrb[0].mxu0
        %v3576 = vadd.f32 %v3248, %v3575
        %3577 = vmatprep.mubr.f32.mxu0 0.0
        %3578 = vmatmul.mubr.f32.gmra.mrb[0].mxu0 %v3111
        %v3579 = vpop.f32.mrb[0].mxu0
        %v3580 = vadd.f32 %v3244, %v3579
        %v3581 = vpop.f32.mrb[0].mxu0
        %v3582 = vadd.f32 %v3248, %v3581
        %3583 = vmatprep.mubr.f32.mxu0 0.0
        %3584 = vmatmul.mubr.f32.gmra.mrb[0].mxu0 %v3112
        %v3585 = vpop.f32.mrb[0].mxu0
        %v3586 = vadd.f32 %v3244, %v3585
        %v3587 = vpop.f32.mrb[0].mxu0
        %v3588 = vadd.f32 %v3248, %v3587
        %3589 = vmatprep.mubr.f32.mxu0 0.0
        %3590 = vmatmul.mubr.f32.gmra.mrb[0].mxu0 %v3113
        %v3591 = vpop.f32.mrb[0].mxu0
        %v3592 = vadd.f32 %v3244, %v3591
        %v3593 = vpop.f32.mrb[0].mxu0
        %v3594 = vadd.f32 %v3248, %v3593
        %3595 = vmatprep.mubr.f32.mxu0 0.0
        %3596 = vmatmul.mubr.f32.gmra.mrb[0].mxu0 %v3114
        %v3597 = vpop.f32.mrb[0].mxu0
        %v3598 = vadd.f32 %v3244, %v3597
        %v3599 = vpop.f32.mrb[0].mxu0
        %v3600 = vadd.f32 %v3248, %v3599
        %3601 = vmatprep.mubr.f32.mxu0 0.0
        %3602 = vmatmul.mubr.f32.gmra.mrb[0].mxu0 %v3115
        %v3603 = vpop.f32.mrb[0].mxu0
        %v3604 = vadd.f32 %v3244, %v3603
        %v3605 = vpop.f32.mrb[0].mxu0
        %v3606 = vadd.f32 %v3248, %v3605
        %3607 = vmatprep.mubr.f32.mxu0 0.0
        %3608 = vmatmul.mubr.f32.gmra.mrb[0].mxu0 %v3116
        %v3609 = vpop.f32.mrb[0].mxu0
        %v3610 = vadd.f32 %v3244, %v3609
        %v3611 = vpop.f32.mrb[0].mxu0
        %v3612 = vadd.f32 %v3248, %v3611
        %3613 = vmatprep.mubr.f32.mxu0 0.0
        %3614 = vmatmul.mubr.f32.gmra.mrb[0].mxu0 %v3117
        %v3615 = vpop.f32.mrb[0].mxu0
        %v3616 = vadd.f32 %v3244, %v3615
        %v3617 = vpop.f32.mrb[0].mxu0
        %v3618 = vadd.f32 %v3248, %v3617
        %3619 = vmatprep.mubr.f32.mxu0 0.0
        %3620 = vmatmul.mubr.f32.gmra.mrb[0].mxu0 %v3118
        %v3621 = vpop.f32.mrb[0].mxu0
        %v3622 = vadd.f32 %v3244, %v3621
        %v3623 = vpop.f32.mrb[0].mxu0
        %v3624 = vadd.f32 %v3248, %v3623
        %3625 = vdwg.mxu0
        %3626 = vmatprep.subr.mxu0 %v3124
        %3627 = vmatpush1.msra.mxu0 %v3123
        %3628 = vmatprep.subr.mxu0 %v3131
        %3629 = vmatpush1.msra.mxu0 %v3130
        %3630 = vmatprep.subr.mxu0 %v3138
        %3631 = vmatpush1.msra.mxu0 %v3137
        %3632 = vmatprep.subr.mxu0 %v3145
        %3633 = vmatpush1.msra.mxu0 %v3144
        %3634 = vmatprep.subr.mxu0 %v3152
        %3635 = vmatpush1.msra.mxu0 %v3151
        %3636 = vmatprep.subr.mxu0 %v3159
        %3637 = vmatpush1.msra.mxu0 %v3158
        %3638 = vmatprep.subr.mxu0 %v3166
        %3639 = vmatpush1.msra.mxu0 %v3165
        %3640 = vmatprep.subr.mxu0 %v3173
        %3641 = vmatpush1.msra.mxu0 %v3172
        %3642 = vmatprep.subr.mxu0 %v3180
        %3643 = vmatpush1.msra.mxu0 %v3179
        %3644 = vmatprep.subr.mxu0 %v3187
        %3645 = vmatpush1.msra.mxu0 %v3186
        %3646 = vmatprep.subr.mxu0 %v3194
        %3647 = vmatpush1.msra.mxu0 %v3193
        %3648 = vmatprep.subr.mxu0 %v3201
        %3649 = vmatpush1.msra.mxu0 %v3200
        %3650 = vmatprep.subr.mxu0 %v3208
        %3651 = vmatpush1.msra.mxu0 %v3207
        %3652 = vmatprep.subr.mxu0 %v3215
        %3653 = vmatpush1.msra.mxu0 %v3214
        %3654 = vmatprep.subr.mxu0 %v3222
        %3655 = vmatpush1.msra.mxu0 %v3221
        %3656 = vmatprep.subr.mxu0 %v3229
        %3657 = vmatpush1.msra.mxu0 %v3228
        %3658 = vmatprep.subr.mxu0 0.0
        %3659 = vmatpush1.msra.mxu0 0.0
        %3660 = vmatprep.subr.mxu0 0.0
        %3661 = vmatpush1.msra.mxu0 0.0
        %3662 = vmatprep.subr.mxu0 0.0
        %3663 = vmatpush1.msra.mxu0 0.0
        %3664 = vmatprep.subr.mxu0 0.0
        %3665 = vmatpush1.msra.mxu0 0.0
        %3666 = vmatprep.subr.mxu0 0.0
        %3667 = vmatpush1.msra.mxu0 0.0
        %3668 = vmatprep.subr.mxu0 0.0
        %3669 = vmatpush1.msra.mxu0 0.0
        %3670 = vmatprep.subr.mxu0 0.0
        %3671 = vmatpush1.msra.mxu0 0.0
        %3672 = vmatprep.subr.mxu0 0.0
        %3673 = vmatpush1.msra.mxu0 0.0
        %3674 = vmatprep.subr.mxu0 0.0
        %3675 = vmatpush1.msra.mxu0 0.0
        %3676 = vmatprep.subr.mxu0 0.0
        %3677 = vmatpush1.msra.mxu0 0.0
        %3678 = vmatprep.subr.mxu0 0.0
        %3679 = vmatpush1.msra.mxu0 0.0
        %3680 = vmatprep.subr.mxu0 0.0
        %3681 = vmatpush1.msra.mxu0 0.0
        %3682 = vmatprep.subr.mxu0 0.0
        %3683 = vmatpush1.msra.mxu0 0.0
        %3684 = vmatprep.subr.mxu0 0.0
        %3685 = vmatpush1.msra.mxu0 0.0
        %3686 = vmatprep.subr.mxu0 0.0
        %3687 = vmatpush1.msra.mxu0 0.0
        %3688 = vmatprep.subr.mxu0 0.0
        %3689 = vmatpush1.msra.mxu0 0.0
        %3690 = vmatprep.mubr.f32.mxu0 0.0
        %3691 = vmatmul.mubr.f32.gmra.mrb[0].mxu0 %v3100
        %v3692 = vpop.f32.mrb[0].mxu0
        %v3693 = vadd.f32 %v3252, %v3692
        %v3694 = vpop.f32.mrb[0].mxu0
        %v3695 = vadd.f32 %v3256, %v3694
        %3696 = vmatprep.mubr.f32.mxu0 0.0
        %3697 = vmatmul.mubr.f32.gmra.mrb[0].mxu0 %v3101
        %v3698 = vpop.f32.mrb[0].mxu0
        %v3699 = vadd.f32 %v3252, %v3698
        %v3700 = vpop.f32.mrb[0].mxu0
        %v3701 = vadd.f32 %v3256, %v3700
        %3702 = vmatprep.mubr.f32.mxu0 0.0
        %3703 = vmatmul.mubr.f32.gmra.mrb[0].mxu0 %v3102
        %v3704 = vpop.f32.mrb[0].mxu0
        %v3705 = vadd.f32 %v3252, %v3704
        %v3706 = vpop.f32.mrb[0].mxu0
        %v3707 = vadd.f32 %v3256, %v3706
        %3708 = vmatprep.mubr.f32.mxu0 0.0
        %3709 = vmatmul.mubr.f32.gmra.mrb[0].mxu0 %v3103
        %v3710 = vpop.f32.mrb[0].mxu0
        %v3711 = vadd.f32 %v3252, %v3710
        %v3712 = vpop.f32.mrb[0].mxu0
        %v3713 = vadd.f32 %v3256, %v3712
        %3714 = vmatprep.mubr.f32.mxu0 0.0
        %3715 = vmatmul.mubr.f32.gmra.mrb[0].mxu0 %v3104
        %v3716 = vpop.f32.mrb[0].mxu0
        %v3717 = vadd.f32 %v3252, %v3716
        %v3718 = vpop.f32.mrb[0].mxu0
        %v3719 = vadd.f32 %v3256, %v3718
        %3720 = vmatprep.mubr.f32.mxu0 0.0
        %3721 = vmatmul.mubr.f32.gmra.mrb[0].mxu0 %v3105
        %v3722 = vpop.f32.mrb[0].mxu0
        %v3723 = vadd.f32 %v3252, %v3722
        %v3724 = vpop.f32.mrb[0].mxu0
        %v3725 = vadd.f32 %v3256, %v3724
        %3726 = vmatprep.mubr.f32.mxu0 0.0
        %3727 = vmatmul.mubr.f32.gmra.mrb[0].mxu0 %v3106
        %v3728 = vpop.f32.mrb[0].mxu0
        %v3729 = vadd.f32 %v3252, %v3728
        %v3730 = vpop.f32.mrb[0].mxu0
        %v3731 = vadd.f32 %v3256, %v3730
        %3732 = vmatprep.mubr.f32.mxu0 0.0
        %3733 = vmatmul.mubr.f32.gmra.mrb[0].mxu0 %v3107
        %v3734 = vpop.f32.mrb[0].mxu0
        %v3735 = vadd.f32 %v3252, %v3734
        %v3736 = vpop.f32.mrb[0].mxu0
        %v3737 = vadd.f32 %v3256, %v3736
        %3738 = vmatprep.mubr.f32.mxu0 0.0
        %3739 = vmatmul.mubr.f32.gmra.mrb[0].mxu0 %v3108
        %v3740 = vpop.f32.mrb[0].mxu0
        %v3741 = vadd.f32 %v3252, %v3740
        %v3742 = vpop.f32.mrb[0].mxu0
        %v3743 = vadd.f32 %v3256, %v3742
        %3744 = vmatprep.mubr.f32.mxu0 0.0
        %3745 = vmatmul.mubr.f32.gmra.mrb[0].mxu0 %v3109
        %v3746 = vpop.f32.mrb[0].mxu0
        %v3747 = vadd.f32 %v3252, %v3746
        %v3748 = vpop.f32.mrb[0].mxu0
        %v3749 = vadd.f32 %v3256, %v3748
        %3750 = vmatprep.mubr.f32.mxu0 0.0
        %3751 = vmatmul.mubr.f32.gmra.mrb[0].mxu0 %v3110
        %v3752 = vpop.f32.mrb[0].mxu0
        %v3753 = vadd.f32 %v3252, %v3752
        %v3754 = vpop.f32.mrb[0].mxu0
        %v3755 = vadd.f32 %v3256, %v3754
        %3756 = vmatprep.mubr.f32.mxu0 0.0
        %3757 = vmatmul.mubr.f32.gmra.mrb[0].mxu0 %v3111
        %v3758 = vpop.f32.mrb[0].mxu0
        %v3759 = vadd.f32 %v3252, %v3758
        %v3760 = vpop.f32.mrb[0].mxu0
        %v3761 = vadd.f32 %v3256, %v3760
        %3762 = vmatprep.mubr.f32.mxu0 0.0
        %3763 = vmatmul.mubr.f32.gmra.mrb[0].mxu0 %v3112
        %v3764 = vpop.f32.mrb[0].mxu0
        %v3765 = vadd.f32 %v3252, %v3764
        %v3766 = vpop.f32.mrb[0].mxu0
        %v3767 = vadd.f32 %v3256, %v3766
        %3768 = vmatprep.mubr.f32.mxu0 0.0
        %3769 = vmatmul.mubr.f32.gmra.mrb[0].mxu0 %v3113
        %v3770 = vpop.f32.mrb[0].mxu0
        %v3771 = vadd.f32 %v3252, %v3770
        %v3772 = vpop.f32.mrb[0].mxu0
        %v3773 = vadd.f32 %v3256, %v3772
        %3774 = vmatprep.mubr.f32.mxu0 0.0
        %3775 = vmatmul.mubr.f32.gmra.mrb[0].mxu0 %v3114
        %v3776 = vpop.f32.mrb[0].mxu0
        %v3777 = vadd.f32 %v3252, %v3776
        %v3778 = vpop.f32.mrb[0].mxu0
        %v3779 = vadd.f32 %v3256, %v3778
        %3780 = vmatprep.mubr.f32.mxu0 0.0
        %3781 = vmatmul.mubr.f32.gmra.mrb[0].mxu0 %v3115
        %v3782 = vpop.f32.mrb[0].mxu0
        %v3783 = vadd.f32 %v3252, %v3782
        %v3784 = vpop.f32.mrb[0].mxu0
        %v3785 = vadd.f32 %v3256, %v3784
        %3786 = vmatprep.mubr.f32.mxu0 0.0
        %3787 = vmatmul.mubr.f32.gmra.mrb[0].mxu0 %v3116
        %v3788 = vpop.f32.mrb[0].mxu0
        %v3789 = vadd.f32 %v3252, %v3788
        %v3790 = vpop.f32.mrb[0].mxu0
        %v3791 = vadd.f32 %v3256, %v3790
        %3792 = vmatprep.mubr.f32.mxu0 0.0
        %3793 = vmatmul.mubr.f32.gmra.mrb[0].mxu0 %v3117
        %v3794 = vpop.f32.mrb[0].mxu0
        %v3795 = vadd.f32 %v3252, %v3794
        %v3796 = vpop.f32.mrb[0].mxu0
        %v3797 = vadd.f32 %v3256, %v3796
        %3798 = vmatprep.mubr.f32.mxu0 0.0
        %3799 = vmatmul.mubr.f32.gmra.mrb[0].mxu0 %v3118
        %v3800 = vpop.f32.mrb[0].mxu0
        %v3801 = vadd.f32 %v3252, %v3800
        %v3802 = vpop.f32.mrb[0].mxu0
        %v3803 = vadd.f32 %v3256, %v3802
        %3804 = vdwg.mxu0
        %3805 = vmatprep.subr.mxu0 0.0
        %3806 = vmatpush1.msra.mxu0 %v3125
        %3807 = vmatprep.subr.mxu0 0.0
        %3808 = vmatpush1.msra.mxu0 %v3132
        %3809 = vmatprep.subr.mxu0 0.0
        %3810 = vmatpush1.msra.mxu0 %v3139
        %3811 = vmatprep.subr.mxu0 0.0
        %3812 = vmatpush1.msra.mxu0 %v3146
        %3813 = vmatprep.subr.mxu0 0.0
        %3814 = vmatpush1.msra.mxu0 %v3153
        %3815 = vmatprep.subr.mxu0 0.0
        %3816 = vmatpush1.msra.mxu0 %v3160
        %3817 = vmatprep.subr.mxu0 0.0
        %3818 = vmatpush1.msra.mxu0 %v3167
        %3819 = vmatprep.subr.mxu0 0.0
        %3820 = vmatpush1.msra.mxu0 %v3174
        %3821 = vmatprep.subr.mxu0 0.0
        %3822 = vmatpush1.msra.mxu0 %v3181
        %3823 = vmatprep.subr.mxu0 0.0
        %3824 = vmatpush1.msra.mxu0 %v3188
        %3825 = vmatprep.subr.mxu0 0.0
        %3826 = vmatpush1.msra.mxu0 %v3195
        %3827 = vmatprep.subr.mxu0 0.0
        %3828 = vmatpush1.msra.mxu0 %v3202
        %3829 = vmatprep.subr.mxu0 0.0
        %3830 = vmatpush1.msra.mxu0 %v3209
        %3831 = vmatprep.subr.mxu0 0.0
        %3832 = vmatpush1.msra.mxu0 %v3216
        %3833 = vmatprep.subr.mxu0 0.0
        %3834 = vmatpush1.msra.mxu0 %v3223
        %3835 = vmatprep.subr.mxu0 0.0
        %3836 = vmatpush1.msra.mxu0 %v3230
        %3837 = vmatprep.subr.mxu0 0.0
        %3838 = vmatpush1.msra.mxu0 0.0
        %3839 = vmatprep.subr.mxu0 0.0
        %3840 = vmatpush1.msra.mxu0 0.0
        %3841 = vmatprep.subr.mxu0 0.0
        %3842 = vmatpush1.msra.mxu0 0.0
        %3843 = vmatprep.subr.mxu0 0.0
        %3844 = vmatpush1.msra.mxu0 0.0
        %3845 = vmatprep.subr.mxu0 0.0
        %3846 = vmatpush1.msra.mxu0 0.0
        %3847 = vmatprep.subr.mxu0 0.0
        %3848 = vmatpush1.msra.mxu0 0.0
        %3849 = vmatprep.subr.mxu0 0.0
        %3850 = vmatpush1.msra.mxu0 0.0
        %3851 = vmatprep.subr.mxu0 0.0
        %3852 = vmatpush1.msra.mxu0 0.0
        %3853 = vmatprep.subr.mxu0 0.0
        %3854 = vmatpush1.msra.mxu0 0.0
        %3855 = vmatprep.subr.mxu0 0.0
        %3856 = vmatpush1.msra.mxu0 0.0
        %3857 = vmatprep.subr.mxu0 0.0
        %3858 = vmatpush1.msra.mxu0 0.0
        %3859 = vmatprep.subr.mxu0 0.0
        %3860 = vmatpush1.msra.mxu0 0.0
        %3861 = vmatprep.subr.mxu0 0.0
        %3862 = vmatpush1.msra.mxu0 0.0
        %3863 = vmatprep.subr.mxu0 0.0
        %3864 = vmatpush1.msra.mxu0 0.0
        %3865 = vmatprep.subr.mxu0 0.0
        %3866 = vmatpush1.msra.mxu0 0.0
        %3867 = vmatprep.subr.mxu0 0.0
        %3868 = vmatpush1.msra.mxu0 0.0
        %3869 = vmatprep.mubr.f32.mxu0 0.0
        %3870 = vmatmul.mubr.f32.gmra.mrb[0].mxu0 %v3100
        %v3871 = vpop.f32.mrb[0].mxu0
        %v3872 = vadd.f32 %v3260, %v3871
        %v3873 = vpop.f32.mrb[0].mxu0
        %3874 = vmatprep.mubr.f32.mxu0 0.0
        %3875 = vmatmul.mubr.f32.gmra.mrb[0].mxu0 %v3101
        %v3876 = vpop.f32.mrb[0].mxu0
        %v3877 = vadd.f32 %v3260, %v3876
        %v3878 = vpop.f32.mrb[0].mxu0
        %3879 = vmatprep.mubr.f32.mxu0 0.0
        %3880 = vmatmul.mubr.f32.gmra.mrb[0].mxu0 %v3102
        %v3881 = vpop.f32.mrb[0].mxu0
        %v3882 = vadd.f32 %v3260, %v3881
        %v3883 = vpop.f32.mrb[0].mxu0
        %3884 = vmatprep.mubr.f32.mxu0 0.0
        %3885 = vmatmul.mubr.f32.gmra.mrb[0].mxu0 %v3103
        %v3886 = vpop.f32.mrb[0].mxu0
        %v3887 = vadd.f32 %v3260, %v3886
        %v3888 = vpop.f32.mrb[0].mxu0
        %3889 = vmatprep.mubr.f32.mxu0 0.0
        %3890 = vmatmul.mubr.f32.gmra.mrb[0].mxu0 %v3104
        %v3891 = vpop.f32.mrb[0].mxu0
        %v3892 = vadd.f32 %v3260, %v3891
        %v3893 = vpop.f32.mrb[0].mxu0
        %3894 = vmatprep.mubr.f32.mxu0 0.0
        %3895 = vmatmul.mubr.f32.gmra.mrb[0].mxu0 %v3105
        %v3896 = vpop.f32.mrb[0].mxu0
        %v3897 = vadd.f32 %v3260, %v3896
        %v3898 = vpop.f32.mrb[0].mxu0
        %3899 = vmatprep.mubr.f32.mxu0 0.0
        %3900 = vmatmul.mubr.f32.gmra.mrb[0].mxu0 %v3106
        %v3901 = vpop.f32.mrb[0].mxu0
        %v3902 = vadd.f32 %v3260, %v3901
        %v3903 = vpop.f32.mrb[0].mxu0
        %3904 = vmatprep.mubr.f32.mxu0 0.0
        %3905 = vmatmul.mubr.f32.gmra.mrb[0].mxu0 %v3107
        %v3906 = vpop.f32.mrb[0].mxu0
        %v3907 = vadd.f32 %v3260, %v3906
        %v3908 = vpop.f32.mrb[0].mxu0
        %3909 = vmatprep.mubr.f32.mxu0 0.0
        %3910 = vmatmul.mubr.f32.gmra.mrb[0].mxu0 %v3108
        %v3911 = vpop.f32.mrb[0].mxu0
        %v3912 = vadd.f32 %v3260, %v3911
        %v3913 = vpop.f32.mrb[0].mxu0
        %3914 = vmatprep.mubr.f32.mxu0 0.0
        %3915 = vmatmul.mubr.f32.gmra.mrb[0].mxu0 %v3109
        %v3916 = vpop.f32.mrb[0].mxu0
        %v3917 = vadd.f32 %v3260, %v3916
        %v3918 = vpop.f32.mrb[0].mxu0
        %3919 = vmatprep.mubr.f32.mxu0 0.0
        %3920 = vmatmul.mubr.f32.gmra.mrb[0].mxu0 %v3110
        %v3921 = vpop.f32.mrb[0].mxu0
        %v3922 = vadd.f32 %v3260, %v3921
        %v3923 = vpop.f32.mrb[0].mxu0
        %3924 = vmatprep.mubr.f32.mxu0 0.0
        %3925 = vmatmul.mubr.f32.gmra.mrb[0].mxu0 %v3111
        %v3926 = vpop.f32.mrb[0].mxu0
        %v3927 = vadd.f32 %v3260, %v3926
        %v3928 = vpop.f32.mrb[0].mxu0
        %3929 = vmatprep.mubr.f32.mxu0 0.0
        %3930 = vmatmul.mubr.f32.gmra.mrb[0].mxu0 %v3112
        %v3931 = vpop.f32.mrb[0].mxu0
        %v3932 = vadd.f32 %v3260, %v3931
        %v3933 = vpop.f32.mrb[0].mxu0
        %3934 = vmatprep.mubr.f32.mxu0 0.0
        %3935 = vmatmul.mubr.f32.gmra.mrb[0].mxu0 %v3113
        %v3936 = vpop.f32.mrb[0].mxu0
        %v3937 = vadd.f32 %v3260, %v3936
        %v3938 = vpop.f32.mrb[0].mxu0
        %3939 = vmatprep.mubr.f32.mxu0 0.0
        %3940 = vmatmul.mubr.f32.gmra.mrb[0].mxu0 %v3114
        %v3941 = vpop.f32.mrb[0].mxu0
        %v3942 = vadd.f32 %v3260, %v3941
        %v3943 = vpop.f32.mrb[0].mxu0
        %3944 = vmatprep.mubr.f32.mxu0 0.0
        %3945 = vmatmul.mubr.f32.gmra.mrb[0].mxu0 %v3115
        %v3946 = vpop.f32.mrb[0].mxu0
        %v3947 = vadd.f32 %v3260, %v3946
        %v3948 = vpop.f32.mrb[0].mxu0
        %3949 = vmatprep.mubr.f32.mxu0 0.0
        %3950 = vmatmul.mubr.f32.gmra.mrb[0].mxu0 %v3116
        %v3951 = vpop.f32.mrb[0].mxu0
        %v3952 = vadd.f32 %v3260, %v3951
        %v3953 = vpop.f32.mrb[0].mxu0
        %3954 = vmatprep.mubr.f32.mxu0 0.0
        %3955 = vmatmul.mubr.f32.gmra.mrb[0].mxu0 %v3117
        %v3956 = vpop.f32.mrb[0].mxu0
        %v3957 = vadd.f32 %v3260, %v3956
        %v3958 = vpop.f32.mrb[0].mxu0
        %3959 = vmatprep.mubr.f32.mxu0 0.0
        %3960 = vmatmul.mubr.f32.gmra.mrb[0].mxu0 %v3118
        %v3961 = vpop.f32.mrb[0].mxu0
        %v3962 = vadd.f32 %v3260, %v3961
        %v3963 = vpop.f32.mrb[0].mxu0
        %3964 = vdwg.mxu0
        %v3965 = vtanh.pop %v3335
        %v3966 = vtanh.pop %v3337
        %v3967 = vtanh.pop %v3514
        %v3968 = vtanh.pop %v3516
        %v3969 = vtanh.pop %v3693
        %v3970 = vtanh.pop %v3695
        %v3971 = vtanh.pop %v3872
        %v3972 = vtanh.pop %v3341
        %v3973 = vtanh.pop %v3343
        %v3974 = vtanh.pop %v3520
        %v3975 = vtanh.pop %v3522
        %v3976 = vtanh.pop %v3699
        %v3977 = vtanh.pop %v3701
        %v3978 = vtanh.pop %v3877
        %v3979 = vtanh.pop %v3347
        %v3980 = vtanh.pop %v3349
        %v3981 = vtanh.pop %v3526
        %v3982 = vtanh.pop %v3528
        %v3983 = vtanh.pop %v3705
        %v3984 = vtanh.pop %v3707
        %v3985 = vtanh.pop %v3882
        %v3986 = vtanh.pop %v3353
        %v3987 = vtanh.pop %v3355
        %v3988 = vtanh.pop %v3532
        %v3989 = vtanh.pop %v3534
        %v3990 = vtanh.pop %v3711
        %v3991 = vtanh.pop %v3713
        %v3992 = vtanh.pop %v3887
        %v3993 = vtanh.pop %v3359
        %v3994 = vtanh.pop %v3361
        %v3995 = vtanh.pop %v3538
        %v3996 = vtanh.pop %v3540
        %v3997 = vtanh.pop %v3717
        %v3998 = vtanh.pop %v3719
        %v3999 = vtanh.pop %v3892
        %v4000 = vtanh.pop %v3365
        %v4001 = vtanh.pop %v3367
        %v4002 = vtanh.pop %v3544
        %v4003 = vtanh.pop %v3546
        %v4004 = vtanh.pop %v3723
        %v4005 = vtanh.pop %v3725
        %v4006 = vtanh.pop %v3897
        %v4007 = vtanh.pop %v3371
        %v4008 = vtanh.pop %v3373
        %v4009 = vtanh.pop %v3550
        %v4010 = vtanh.pop %v3552
        %v4011 = vtanh.pop %v3729
        %v4012 = vtanh.pop %v3731
        %v4013 = vtanh.pop %v3902
        %v4014 = vtanh.pop %v3377
        %v4015 = vtanh.pop %v3379
        %v4016 = vtanh.pop %v3556
        %v4017 = vtanh.pop %v3558
        %v4018 = vtanh.pop %v3735
        %v4019 = vtanh.pop %v3737
        %v4020 = vtanh.pop %v3907
        %v4021 = vtanh.pop %v3383
        %v4022 = vtanh.pop %v3385
        %v4023 = vtanh.pop %v3562
        %v4024 = vtanh.pop %v3564
        %v4025 = vtanh.pop %v3741
        %v4026 = vtanh.pop %v3743
        %v4027 = vtanh.pop %v3912
        %v4028 = vtanh.pop %v3389
        %v4029 = vtanh.pop %v3391
        %v4030 = vtanh.pop %v3568
        %v4031 = vtanh.pop %v3570
        %v4032 = vtanh.pop %v3747
        %v4033 = vtanh.pop %v3749
        %v4034 = vtanh.pop %v3917
        %v4035 = vtanh.pop %v3395
        %v4036 = vtanh.pop %v3397
        %v4037 = vtanh.pop %v3574
        %v4038 = vtanh.pop %v3576
        %v4039 = vtanh.pop %v3753
        %v4040 = vtanh.pop %v3755
        %v4041 = vtanh.pop %v3922
        %v4042 = vtanh.pop %v3401
        %v4043 = vtanh.pop %v3403
        %v4044 = vtanh.pop %v3580
        %v4045 = vtanh.pop %v3582
        %v4046 = vtanh.pop %v3759
        %v4047 = vtanh.pop %v3761
        %v4048 = vtanh.pop %v3927
        %v4049 = vtanh.pop %v3407
        %v4050 = vtanh.pop %v3409
        %v4051 = vtanh.pop %v3586
        %v4052 = vtanh.pop %v3588
        %v4053 = vtanh.pop %v3765
        %v4054 = vtanh.pop %v3767
        %v4055 = vtanh.pop %v3932
        %v4056 = vtanh.pop %v3413
        %v4057 = vtanh.pop %v3415
        %v4058 = vtanh.pop %v3592
        %v4059 = vtanh.pop %v3594
        %v4060 = vtanh.pop %v3771
        %v4061 = vtanh.pop %v3773
        %v4062 = vtanh.pop %v3937
        %v4063 = vtanh.pop %v3419
        %v4064 = vtanh.pop %v3421
        %v4065 = vtanh.pop %v3598
        %v4066 = vtanh.pop %v3600
        %v4067 = vtanh.pop %v3777
        %v4068 = vtanh.pop %v3779
        %v4069 = vtanh.pop %v3942
        %v4070 = vtanh.pop %v3425
        %v4071 = vtanh.pop %v3427
        %v4072 = vtanh.pop %v3604
        %v4073 = vtanh.pop %v3606
        %v4074 = vtanh.pop %v3783
        %v4075 = vtanh.pop %v3785
        %v4076 = vtanh.pop %v3947
        %v4077 = vtanh.pop %v3431
        %v4078 = vtanh.pop %v3433
        %v4079 = vtanh.pop %v3610
        %v4080 = vtanh.pop %v3612
        %v4081 = vtanh.pop %v3789
        %v4082 = vtanh.pop %v3791
        %v4083 = vtanh.pop %v3952
        %v4084 = vtanh.pop %v3437
        %v4085 = vtanh.pop %v3439
        %v4086 = vtanh.pop %v3616
        %v4087 = vtanh.pop %v3618
        %v4088 = vtanh.pop %v3795
        %v4089 = vtanh.pop %v3797
        %v4090 = vtanh.pop %v3957
        %v4091 = vtanh.pop %v3443
        %v4092 = vtanh.pop %v3445
        %v4093 = vtanh.pop %v3622
        %v4094 = vtanh.pop %v3624
        %v4095 = vtanh.pop %v3801
        %v4096 = vtanh.pop %v3803
        %v4097 = vtanh.pop %v3962
        %4098 = vst [vmem:[%s709] sm:$0xff] %v3965
        %4099 = vst [vmem:[%s709 + $0x8] sm:$0xff] %v3966
        %4100 = vst [vmem:[%s709 + $0x10] sm:$0xff] %v3967
        %4101 = vst [vmem:[%s709 + $0x18] sm:$0xff] %v3968
        %4102 = vst [vmem:[%s709 + $0x20] sm:$0xff] %v3969
        %4103 = vst [vmem:[%s709 + $0x28] sm:$0xff] %v3970
        %4104 = vst.msk [vmem:[%s709 + $0x30] sm:$0xff] %vm950, %v3971
        %4105 = vst [vmem:[%s709 + $0x38] sm:$0xff] %v3972
        %4106 = vst [vmem:[%s709 + $0x40] sm:$0xff] %v3973
        %4107 = vst [vmem:[%s709 + $0x48] sm:$0xff] %v3974
        %4108 = vst [vmem:[%s709 + $0x50] sm:$0xff] %v3975
        %4109 = vst [vmem:[%s709 + $0x58] sm:$0xff] %v3976
        %4110 = vst [vmem:[%s709 + $0x60] sm:$0xff] %v3977
        %4111 = vst.msk [vmem:[%s709 + $0x68] sm:$0xff] %vm950, %v3978
        %4112 = vst [vmem:[%s709 + $0x70] sm:$0xff] %v3979
        %4113 = vst [vmem:[%s709 + $0x78] sm:$0xff] %v3980
        %4114 = vst [vmem:[%s709 + $0x80] sm:$0xff] %v3981
        %4115 = vst [vmem:[%s709 + $0x88] sm:$0xff] %v3982
        %4116 = vst [vmem:[%s709 + $0x90] sm:$0xff] %v3983
        %4117 = vst [vmem:[%s709 + $0x98] sm:$0xff] %v3984
        %4118 = vst.msk [vmem:[%s709 + $0xa0] sm:$0xff] %vm950, %v3985
        %4119 = vst [vmem:[%s709 + $0xa8] sm:$0xff] %v3986
        %4120 = vst [vmem:[%s709 + $0xb0] sm:$0xff] %v3987
        %4121 = vst [vmem:[%s709 + $0xb8] sm:$0xff] %v3988
        %4122 = vst [vmem:[%s709 + $0xc0] sm:$0xff] %v3989
        %4123 = vst [vmem:[%s709 + $0xc8] sm:$0xff] %v3990
        %4124 = vst [vmem:[%s709 + $0xd0] sm:$0xff] %v3991
        %4125 = vst.msk [vmem:[%s709 + $0xd8] sm:$0xff] %vm950, %v3992
        %4126 = vst [vmem:[%s709 + $0xe0] sm:$0xff] %v3993
        %4127 = vst [vmem:[%s709 + $0xe8] sm:$0xff] %v3994
        %4128 = vst [vmem:[%s709 + $0xf0] sm:$0xff] %v3995
        %4129 = vst [vmem:[%s709 + $0xf8] sm:$0xff] %v3996
        %4130 = vst [vmem:[%s709 + $0x100] sm:$0xff] %v3997
        %4131 = vst [vmem:[%s709 + $0x108] sm:$0xff] %v3998
        %4132 = vst.msk [vmem:[%s709 + $0x110] sm:$0xff] %vm950, %v3999
        %4133 = vst [vmem:[%s709 + $0x118] sm:$0xff] %v4000
        %4134 = vst [vmem:[%s709 + $0x120] sm:$0xff] %v4001
        %4135 = vst [vmem:[%s709 + $0x128] sm:$0xff] %v4002
        %4136 = vst [vmem:[%s709 + $0x130] sm:$0xff] %v4003
        %4137 = vst [vmem:[%s709 + $0x138] sm:$0xff] %v4004
        %4138 = vst [vmem:[%s709 + $0x140] sm:$0xff] %v4005
        %4139 = vst.msk [vmem:[%s709 + $0x148] sm:$0xff] %vm950, %v4006
        %4140 = vst [vmem:[%s709 + $0x150] sm:$0xff] %v4007
        %4141 = vst [vmem:[%s709 + $0x158] sm:$0xff] %v4008
        %4142 = vst [vmem:[%s709 + $0x160] sm:$0xff] %v4009
        %4143 = vst [vmem:[%s709 + $0x168] sm:$0xff] %v4010
        %4144 = vst [vmem:[%s709 + $0x170] sm:$0xff] %v4011
        %4145 = vst [vmem:[%s709 + $0x178] sm:$0xff] %v4012
        %4146 = vst.msk [vmem:[%s709 + $0x180] sm:$0xff] %vm950, %v4013
        %4147 = vst [vmem:[%s709 + $0x188] sm:$0xff] %v4014
        %4148 = vst [vmem:[%s709 + $0x190] sm:$0xff] %v4015
        %4149 = vst [vmem:[%s709 + $0x198] sm:$0xff] %v4016
        %4150 = vst [vmem:[%s709 + $0x1a0] sm:$0xff] %v4017
        %4151 = vst [vmem:[%s709 + $0x1a8] sm:$0xff] %v4018
        %4152 = vst [vmem:[%s709 + $0x1b0] sm:$0xff] %v4019
        %4153 = vst.msk [vmem:[%s709 + $0x1b8] sm:$0xff] %vm950, %v4020
        %4154 = vst [vmem:[%s709 + $0x1c0] sm:$0xff] %v4021
        %4155 = vst [vmem:[%s709 + $0x1c8] sm:$0xff] %v4022
        %4156 = vst [vmem:[%s709 + $0x1d0] sm:$0xff] %v4023
        %4157 = vst [vmem:[%s709 + $0x1d8] sm:$0xff] %v4024
        %4158 = vst [vmem:[%s709 + $0x1e0] sm:$0xff] %v4025
        %4159 = vst [vmem:[%s709 + $0x1e8] sm:$0xff] %v4026
        %4160 = vst.msk [vmem:[%s709 + $0x1f0] sm:$0xff] %vm950, %v4027
        %4161 = vst [vmem:[%s709 + $0x1f8] sm:$0xff] %v4028
        %4162 = vst [vmem:[%s709 + $0x200] sm:$0xff] %v4029
        %4163 = vst [vmem:[%s709 + $0x208] sm:$0xff] %v4030
        %4164 = vst [vmem:[%s709 + $0x210] sm:$0xff] %v4031
        %4165 = vst [vmem:[%s709 + $0x218] sm:$0xff] %v4032
        %4166 = vst [vmem:[%s709 + $0x220] sm:$0xff] %v4033
        %4167 = vst.msk [vmem:[%s709 + $0x228] sm:$0xff] %vm950, %v4034
        %4168 = vst [vmem:[%s709 + $0x230] sm:$0xff] %v4035
        %4169 = vst [vmem:[%s709 + $0x238] sm:$0xff] %v4036
        %4170 = vst [vmem:[%s709 + $0x240] sm:$0xff] %v4037
        %4171 = vst [vmem:[%s709 + $0x248] sm:$0xff] %v4038
        %4172 = vst [vmem:[%s709 + $0x250] sm:$0xff] %v4039
        %4173 = vst [vmem:[%s709 + $0x258] sm:$0xff] %v4040
        %4174 = vst.msk [vmem:[%s709 + $0x260] sm:$0xff] %vm950, %v4041
        %4175 = vst [vmem:[%s709 + $0x268] sm:$0xff] %v4042
        %4176 = vst [vmem:[%s709 + $0x270] sm:$0xff] %v4043
        %4177 = vst [vmem:[%s709 + $0x278] sm:$0xff] %v4044
        %4178 = vst [vmem:[%s709 + $0x280] sm:$0xff] %v4045
        %4179 = vst [vmem:[%s709 + $0x288] sm:$0xff] %v4046
        %4180 = vst [vmem:[%s709 + $0x290] sm:$0xff] %v4047
        %4181 = vst.msk [vmem:[%s709 + $0x298] sm:$0xff] %vm950, %v4048
        %4182 = vst [vmem:[%s709 + $0x2a0] sm:$0xff] %v4049
        %4183 = vst [vmem:[%s709 + $0x2a8] sm:$0xff] %v4050
        %4184 = vst [vmem:[%s709 + $0x2b0] sm:$0xff] %v4051
        %4185 = vst [vmem:[%s709 + $0x2b8] sm:$0xff] %v4052
        %4186 = vst [vmem:[%s709 + $0x2c0] sm:$0xff] %v4053
        %4187 = vst [vmem:[%s709 + $0x2c8] sm:$0xff] %v4054
        %4188 = vst.msk [vmem:[%s709 + $0x2d0] sm:$0xff] %vm950, %v4055
        %4189 = vst [vmem:[%s709 + $0x2d8] sm:$0xff] %v4056
        %4190 = vst [vmem:[%s709 + $0x2e0] sm:$0xff] %v4057
        %4191 = vst [vmem:[%s709 + $0x2e8] sm:$0xff] %v4058
        %4192 = vst [vmem:[%s709 + $0x2f0] sm:$0xff] %v4059
        %4193 = vst [vmem:[%s709 + $0x2f8] sm:$0xff] %v4060
        %4194 = vst [vmem:[%s709 + $0x300] sm:$0xff] %v4061
        %4195 = vst.msk [vmem:[%s709 + $0x308] sm:$0xff] %vm950, %v4062
        %4196 = vst [vmem:[%s709 + $0x310] sm:$0xff] %v4063
        %4197 = vst [vmem:[%s709 + $0x318] sm:$0xff] %v4064
        %4198 = vst [vmem:[%s709 + $0x320] sm:$0xff] %v4065
        %4199 = vst [vmem:[%s709 + $0x328] sm:$0xff] %v4066
        %4200 = vst [vmem:[%s709 + $0x330] sm:$0xff] %v4067
        %4201 = vst [vmem:[%s709 + $0x338] sm:$0xff] %v4068
        %4202 = vst.msk [vmem:[%s709 + $0x340] sm:$0xff] %vm950, %v4069
        %4203 = vst [vmem:[%s709 + $0x348] sm:$0xff] %v4070
        %4204 = vst [vmem:[%s709 + $0x350] sm:$0xff] %v4071
        %4205 = vst [vmem:[%s709 + $0x358] sm:$0xff] %v4072
        %4206 = vst [vmem:[%s709 + $0x360] sm:$0xff] %v4073
        %4207 = vst [vmem:[%s709 + $0x368] sm:$0xff] %v4074
        %4208 = vst [vmem:[%s709 + $0x370] sm:$0xff] %v4075
        %4209 = vst.msk [vmem:[%s709 + $0x378] sm:$0xff] %vm950, %v4076
        %4210 = vst [vmem:[%s709 + $0x380] sm:$0xff] %v4077
        %4211 = vst [vmem:[%s709 + $0x388] sm:$0xff] %v4078
        %4212 = vst [vmem:[%s709 + $0x390] sm:$0xff] %v4079
        %4213 = vst [vmem:[%s709 + $0x398] sm:$0xff] %v4080
        %4214 = vst [vmem:[%s709 + $0x3a0] sm:$0xff] %v4081
        %4215 = vst [vmem:[%s709 + $0x3a8] sm:$0xff] %v4082
        %4216 = vst.msk [vmem:[%s709 + $0x3b0] sm:$0xff] %vm950, %v4083
        %4217 = vst [vmem:[%s709 + $0x3b8] sm:$0xff] %v4084
        %4218 = vst [vmem:[%s709 + $0x3c0] sm:$0xff] %v4085
        %4219 = vst [vmem:[%s709 + $0x3c8] sm:$0xff] %v4086
        %4220 = vst [vmem:[%s709 + $0x3d0] sm:$0xff] %v4087
        %4221 = vst [vmem:[%s709 + $0x3d8] sm:$0xff] %v4088
        %4222 = vst [vmem:[%s709 + $0x3e0] sm:$0xff] %v4089
        %4223 = vst.msk [vmem:[%s709 + $0x3e8] sm:$0xff] %vm950, %v4090
        %4224 = vst [vmem:[%s709 + $0x3f0] sm:$0xff] %v4091
        %4225 = vst [vmem:[%s709 + $0x3f8] sm:$0xff] %v4092
        %4226 = vst [vmem:[%s709 + $0x400] sm:$0xff] %v4093
        %4227 = vst [vmem:[%s709 + $0x408] sm:$0xff] %v4094
        %4228 = vst [vmem:[%s709 + $0x410] sm:$0xff] %v4095
        %4229 = vst [vmem:[%s709 + $0x418] sm:$0xff] %v4096
        %4230 = vst.msk [vmem:[%s709 + $0x420] sm:$0xff] %vm950, %v4097
        %s4231 = sand.u32 %s410, 1
        %s4232 = scalar_lea.sflag [#allocation4], %s4231
        %s4233 = sand.u32 %s410, 1
        %s4234 = smul.addr %s4233, 1064
        %s4235 = scalar_lea.vmem [#allocation22], %s4234
        // Predicated region
        $region137: #{tpu_custom_call.1} parent=87 // pred_check
          %p4236 = pneg %p420
        $region138: #{tpu_custom_call.1} parent=87 // pred_check_branch
          %4238 = sbr.rel (%p4236) target = $region140
        $region139: #{tpu_custom_call.1} parent=87 // pred_region
          %s4239 = smul.u32 19, %s40
          %s4241 = ssub.s32 17024, 17024
          %4242 = vsyncadd %s4232, %s4241
          %s4243 = smul.addr %s4239, 7
          %s4244 = smul.addr %s4243, 128
          %s4245 = scalar_lea.hbm %s17, %s4244
          %s4246 = sshll.u32 %s4235, 4
          %s4247 = int_to_ptr.vmem [resolvable:$true] %s4246
          %4252 = dma.vmem_to_hbm [thread:$0]  %s4247, 17024, %s4245, %s4232, 896, 896, 56
        $region140: #{tpu_custom_call.1} parent=87 // pred_fallthru
          _
      $region88: #{tpu_custom_call.1} parent=5 // pred_fallthru
        _
      %p4253 = scmp.le.s32.totalorder 2, %s35
      // Predicated region
      $region141: #{tpu_custom_call.1} parent=5 // pred_check
        %p4254 = pneg %p4253
      $region142: #{tpu_custom_call.1} parent=5 // pred_check_branch
        %4256 = sbr.rel (%p4254) target = $region144
      $region143: #{tpu_custom_call.1} parent=5 // pred_region
        %s4257 = ssub.s32 %s35, 2
        // Predicated region
        $region145: #{tpu_custom_call.1} parent=143 // pred_check
          %p4258 = pneg %p426
        $region146: #{tpu_custom_call.1} parent=143 // pred_check_branch
          %4260 = sbr.rel (%p4258) target = $region148
        $region147: #{tpu_custom_call.1} parent=143 // pred_region
          %s4261 = sand.u32 %s411, 1
          %s4262 = scalar_lea.sflag [#allocation4], %s4261
          %s4263 = sand.u32 %s411, 1
          %s4264 = smul.addr %s4263, 1064
          %s4265 = scalar_lea.vmem [#allocation22], %s4264
          %4266 = dma.done %s4262, 17024
        $region148: #{tpu_custom_call.1} parent=143 // pred_fallthru
          _
      $region144: #{tpu_custom_call.1} parent=5 // pred_fallthru
        _
    $region6: #{tpu_custom_call.1} parent=1 // loop_footer
      %s39 = sadd.s32 1, %s35
    $region7: #{tpu_custom_call.1} parent=1 // loop_footer_branch
      %34 = sbr.rel target = $region3
    $region8: #{tpu_custom_call.1} parent=1 // loop_exit
      _
    %4267 = vsyncpa [#allocation3], 1
    %s4268 = scalar_lea.sflag [#allocation3], 1
    %4269 = vsyncpa %s4268, 1
    %4270 = vsyncpa [#allocation6], 1
    %4271 = vsyncpa [#allocation9], 1
    %4272 = vsyncpa [#allocation12], 1
    %4273 = vsyncpa [#allocation15], 1
    %4274 = vsyncpa [#allocation18], 1
    %4275 = vsyncpa [#allocation21], 1
    %4276 = vsyncpa [#allocation4], 1
    %s4277 = scalar_lea.sflag [#allocation4], 1
    %4278 = vsyncpa %s4277, 1

</llo_original>
